<compile_context>
chip_gen: v5e
topology: v5e:2x2
jax: 0.10.0
libtpu: 0.0.40
codegen_flags: <defaults>
</compile_context>

<pallas_src>
import functools

import jax
import jax.numpy as jnp
from jax.experimental import pallas as pl
from jax.experimental.pallas import tpu as pltpu

_ALIGN = 128  # lane-aligned start of the staged (flattened) upsample rows in scratch


# ----------------------------------------------------------------------------
# Host-side helpers (traced under jit; depend only on shapes).
# ----------------------------------------------------------------------------
def _interp_matrix(out_size: int, in_size: int) -> jnp.ndarray:
    """PyTorch bilinear (align_corners=False) 1-D interpolation matrix (f32)."""
    dst = jnp.arange(out_size, dtype=jnp.float32)
    src = (dst + 0.5) * (in_size / out_size) - 0.5
    src = jnp.clip(src, 0.0, float(in_size - 1))
    lo = jnp.floor(src).astype(jnp.int32)
    hi = jnp.minimum(lo + 1, in_size - 1)
    frac = src - lo.astype(jnp.float32)
    m = jnp.zeros((out_size, in_size), dtype=jnp.float32)
    m = m.at[jnp.arange(out_size), lo].add(1.0 - frac)
    m = m.at[jnp.arange(out_size), hi].add(frac)
    return m


def _pick_row_tile(ho: int, wo: int, target_lanes: int = 1024) -> int:
    """Largest divisor of Ho with tr*Wo <= target_lanes (at least 1)."""
    tr = max(1, min(ho, target_lanes // max(wo, 1)))
    while ho % tr:
        tr -= 1
    return tr


# ----------------------------------------------------------------------------
# Fused kernel: separable upsample -> conv3x3 -> ReLU -> conv1x1, one row tile / step.
#   x_ref   : (1, C, Hin, Win)        f32   full input image
#   mh_ref  : (1, TR+2, Hin)          f32   zero-padded row-interp slice for this tile
#   mwT_ref : (Win, Wo)               f32   column-interp operator (transposed)
#   w1_ref  : (HID, 9*C)              bf16  conv1 weights, column index = (dy*3+dx)*C + c
#   b1_ref  : (HID, 1)                f32
#   w2_ref  : (NCLS, HID)             bf16
#   b2_ref  : (NCLS, 1)               f32
#   o_ref   : (1, NCLS, TR*Wo)        f32   lane-dense output tile
#   buf_ref : (C, 2*_ALIGN + (TR+2)*Wo) f32 scratch: flattened upsampled rows (+ halos)
# ----------------------------------------------------------------------------
def _fused_kernel(x_ref, mh_ref, mwT_ref, w1_ref, b1_ref, w2_ref, b2_ref,
                  o_ref, buf_ref):
    c_in = x_ref.shape[1]
    trp = mh_ref.shape[1]                  # TR + 2 halo rows
    tr = trp - 2
    wo = mwT_ref.shape[1]
    lanes = tr * wo                        # == o_ref.shape[2]

    # ---- separable bilinear upsample (f32; tiny operands) --------------------
    # rows: (TR+2, Hin) @ (Hin, Win) per channel, then cols: (C*(TR+2), Win) @ (Win, Wo)
    mh = mh_ref[0]                                             # (TR+2, Hin)
    rowified = [jnp.dot(mh, x_ref[0, ci], preferred_element_type=jnp.float32)
                for ci in range(c_in)]                         # C x (TR+2, Win)
    tmp = jnp.concatenate(rowified, axis=0)                    # (C*(TR+2), Win)
    up = jnp.dot(tmp, mwT_ref[...],
                 preferred_element_type=jnp.float32)           # (C*(TR+2), Wo)

    # ---- stage flattened rows into scratch so conv taps are static lane slices --
    # buf[c, _ALIGN + rb*Wo + w] = up[c*(TR+2) + rb, w]; pad lanes are never trusted
    # (the jnp.where column masks below zero every wrapped read), so no zeroing needed.
    for ci in range(c_in):
        for rb in range(trp):
            row = ci * trp + rb
            off = _ALIGN + rb * wo
            buf_ref[pl.ds(ci, 1), pl.ds(off, wo)] = up[row:row + 1, :]

    # ---- 3x3 conv (padding=1): 9 shifted lane slices -> ONE K=9*C bf16 matmul ----
    col = jax.lax.broadcasted_iota(jnp.int32, (1, lanes), 1) % wo
    m_left = col >= 1                       # reading column w-1 is valid
    m_right = col <= wo - 2                 # reading column w+1 is valid
    taps = []
    for t in range(9):
        dy, dx = t // 3, t % 3
        start = _ALIGN + dy * wo + (dx - 1)                    # static lane offset
        sl = buf_ref[:, pl.ds(start, lanes)]                   # (C, lanes) f32
        if dx == 0:
            sl = jnp.where(m_left, sl, 0.0)
        elif dx == 2:
            sl = jnp.where(m_right, sl, 0.0)
        taps.append(sl.astype(jnp.bfloat16))
    stacked = jnp.concatenate(taps, axis=0)                    # (9*C, lanes) bf16

    acc = jnp.dot(w1_ref[...], stacked,
                  preferred_element_type=jnp.float32)          # (HID, lanes) f32
    h = jnp.maximum(acc + b1_ref[...], 0.0)                    # bias + ReLU in f32

    # ---- 1x1 conv ----
    out = jnp.dot(w2_ref[...], h.astype(jnp.bfloat16),
                  preferred_element_type=jnp.float32) + b2_ref[...]
    o_ref[0] = out.astype(o_ref.dtype)                         # (NCLS, lanes) lane-dense


# ----------------------------------------------------------------------------
# GanSegModel.forward (segmentor inference branch)
# ----------------------------------------------------------------------------
def gan_seg_model_forward(x_nchw: jnp.ndarray, params) -> jnp.ndarray:
    n, c, h, w = x_nchw.shape
    ho, wo = 8 * (h // 2), 8 * (w // 2)          # up_shape (== 4H, 4W for even H, W)
    hw = ho * wo
    tr = _pick_row_tile(ho, wo)                  # output rows per grid step
    trp = tr + 2
    n_tiles = ho // tr

    # Separable bilinear operators (kept f32 for PyTorch parity; they are tiny).
    mh = _interp_matrix(ho, h)                                       # (Ho, Hin)
    mh_pad = jnp.concatenate(
        [jnp.zeros((1, h), jnp.float32), mh, jnp.zeros((1, h), jnp.float32)], axis=0)
    mh_tiles = jnp.stack(
        [mh_pad[j * tr:j * tr + trp] for j in range(n_tiles)], axis=0)  # (T, TR+2, Hin)
    mwT = _interp_matrix(wo, w).T                                    # (Win, Wo)

    # Fold segmentor weights (PyTorch Conv2d layouts) for the kernel.
    w1 = params["w1"]                                                # (HID, C, 3, 3)
    hid = w1.shape[0]
    w1s = jnp.transpose(w1, (0, 2, 3, 1)).reshape(hid, 9 * c).astype(jnp.bfloat16)
    b1 = params["b1"].reshape(hid, 1).astype(jnp.float32)
    w2 = params["w2"]                                                # (NCLS, HID, 1, 1)
    ncls = w2.shape[0]
    w2t = w2.reshape(ncls, hid).astype(jnp.bfloat16)
    b2 = params["b2"].reshape(ncls, 1).astype(jnp.float32)

    x = x_nchw.astype(jnp.float32)

    out_flat = pl.pallas_call(
        _fused_kernel,
        out_shape=jax.ShapeDtypeStruct((n, ncls, hw), jnp.float32),
        grid_spec=pltpu.PrefetchScalarGridSpec(
            num_scalar_prefetch=0,
            grid=(n, n_tiles),
            in_specs=[
                pl.BlockSpec((1, c, h, w), lambda i, j: (i, 0, 0, 0)),
                pl.BlockSpec((1, trp, h), lambda i, j: (j, 0, 0)),
                pl.BlockSpec((w, wo), lambda i, j: (0, 0)),
                pl.BlockSpec((hid, 9 * c), lambda i, j: (0, 0)),
                pl.BlockSpec((hid, 1), lambda i, j: (0, 0)),
                pl.BlockSpec((ncls, hid), lambda i, j: (0, 0)),
                pl.BlockSpec((ncls, 1), lambda i, j: (0, 0)),
            ],
            out_specs=pl.BlockSpec((1, ncls, tr * wo), lambda i, j: (i, 0, j)),
            scratch_shapes=[pltpu.VMEM((c, 2 * _ALIGN + trp * wo), jnp.float32)],
        ),
        compiler_params=pltpu.CompilerParams(
            dimension_semantics=("parallel", "parallel"),
            vmem_limit_bytes=32 * 1024 * 1024),
    )(x, mh_tiles, mwT, w1s, b1, w2t, b2)

    # Free reshape: (N, NCLS, Ho*Wo) -> (N, NCLS, Ho, Wo)
    return out_flat.reshape(n, ncls, ho, wo)


# ----------------------------------------------------------------------------
# Synthetic segmentor weights (raw PyTorch Conv2d layouts).
# ----------------------------------------------------------------------------
def init_params(key, c_in: int, hidden: int, n_classes: int):
    k1, k2, k3, k4 = jax.random.split(key, 4)
    return {
        "w1": jax.random.normal(k1, (hidden, c_in, 3, 3), jnp.float32) * 0.1,
        "b1": jax.random.normal(k2, (hidden,), jnp.float32) * 0.01,
        "w2": jax.random.normal(k3, (n_classes, hidden, 1, 1), jnp.float32) * 0.1,
        "b2": jax.random.normal(k4, (n_classes,), jnp.float32) * 0.01,
    }


# ----------------------------------------------------------------------------
# Pure-JAX reference (for a loose numerical self-check).
# ----------------------------------------------------------------------------
def _reference_forward(x, params):
    n, c, h, w = x.shape
    ho, wo = 8 * (h // 2), 8 * (w // 2)
    mh = _interp_matrix(ho, h)
    mw = _interp_matrix(wo, w)
    up = jnp.einsum('Hh,nchw->ncHw', mh, x, precision='highest')
    up = jnp.einsum('Ww,ncHw->ncHW', mw, up, precision='highest')
    h1 = jax.lax.conv_general_dilated(
        up, params["w1"], window_strides=(1, 1), padding=((1, 1), (1, 1)),
        dimension_numbers=('NCHW', 'OIHW', 'NCHW'),
        precision=jax.lax.Precision.HIGHEST)
    hid = params["w1"].shape[0]
    h1 = jnp.maximum(h1 + params["b1"].reshape(1, hid, 1, 1), 0.0)
    ncls = params["w2"].shape[0]
    out = jnp.einsum('oc,nchw->nohw', params["w2"].reshape(ncls, hid), h1,
                     precision='highest')
    return out + params["b2"].reshape(1, ncls, 1, 1)


if __name__ == "__main__":
    key = jax.random.PRNGKey(0)
    kx, kp = jax.random.split(key)

    N, C, H, W = 2, 4, 16, 16            # NCHW input (matches PyTorch layout)
    HIDDEN, NCLS = 16, 3

    x = jax.random.uniform(kx, (N, C, H, W), jnp.float32)
    params = init_params(kp, C, HIDDEN, NCLS)

    fwd = jax.jit(functools.partial(gan_seg_model_forward, params=params))
    out = jax.block_until_ready(fwd(x))

    expected_shape = (N, NCLS, 8 * (H // 2), 8 * (W // 2))       # (2, 3, 64, 64)
    assert out.shape == expected_shape, out.shape
    assert bool(jnp.all(jnp.isfinite(out)))

    # Loose check vs pure-JAX reference (bf16 conv operands => small abs error).
    ref = _reference_forward(x, params)
    err = float(jnp.max(jnp.abs(out - ref)))
    assert err < 5e-2, err

    print("KERNEL_OK")
</pallas_src>

<mosaic_0001>
module attributes {stable_mosaic.version = 11 : i64} {
  func.func @_fused_kernel(%arg0: i32, %arg1: i32, %arg2: memref<1x4x16x16xf32, #tpu.memory_space<vmem>>, %arg3: memref<1x18x16xf32, #tpu.memory_space<vmem>>, %arg4: memref<16x64xf32, #tpu.memory_space<vmem>>, %arg5: memref<16x36xbf16, #tpu.memory_space<vmem>>, %arg6: memref<16x1xf32, #tpu.memory_space<vmem>>, %arg7: memref<3x16xbf16, #tpu.memory_space<vmem>>, %arg8: memref<3x1xf32, #tpu.memory_space<vmem>>, %arg9: memref<1x3x1024xf32, #tpu.memory_space<vmem>>, %arg10: memref<4x1408xf32, #tpu.memory_space<vmem>>) attributes {dimension_semantics = [#tpu.dimension_semantics<parallel>, #tpu.dimension_semantics<parallel>], iteration_bounds = array<i64: 2, 4>, scalar_prefetch = 0 : i64, scratch_operands = 1 : i64, tpu.core_type = #tpu.core_type<tc>, window_params = [{transform_indices = @transform_0, window_bounds = array<i64: 1, 4, 16, 16>}, {transform_indices = @transform_1, window_bounds = array<i64: 1, 18, 16>}, {pipeline_mode = #tpu.pipeline_mode<synchronous>, transform_indices = @transform_2, window_bounds = array<i64: 16, 64>}, {pipeline_mode = #tpu.pipeline_mode<synchronous>, transform_indices = @transform_3, window_bounds = array<i64: 16, 36>}, {pipeline_mode = #tpu.pipeline_mode<synchronous>, transform_indices = @transform_4, window_bounds = array<i64: 16, 1>}, {pipeline_mode = #tpu.pipeline_mode<synchronous>, transform_indices = @transform_5, window_bounds = array<i64: 3, 16>}, {pipeline_mode = #tpu.pipeline_mode<synchronous>, transform_indices = @transform_6, window_bounds = array<i64: 3, 1>}, {transform_indices = @transform_7, window_bounds = array<i64: 1, 3, 1024>}]} {
    %c0 = arith.constant 0 : index
    %c0_0 = arith.constant 0 : index
    %c0_1 = arith.constant 0 : index
    %0 = vector.load %arg3[%c0, %c0_0, %c0_1] : memref<1x18x16xf32, #tpu.memory_space<vmem>>, vector<1x18x16xf32>
    %1 = vector.shape_cast %0 : vector<1x18x16xf32> to vector<18x16xf32>
    %c0_2 = arith.constant 0 : index
    %c0_3 = arith.constant 0 : index
    %c0_4 = arith.constant 0 : index
    %c0_5 = arith.constant 0 : index
    %2 = vector.load %arg2[%c0_2, %c0_3, %c0_4, %c0_5] : memref<1x4x16x16xf32, #tpu.memory_space<vmem>>, vector<1x1x16x16xf32>
    %3 = vector.shape_cast %2 : vector<1x1x16x16xf32> to vector<16x16xf32>
    %cst = arith.constant dense<0.000000e+00> : vector<18x16xf32>
    %4 = tpu.matmul %1, %3, %cst {dimension_numbers = #tpu.dot_dimension_numbers<[1], [0], [0], [1], [0, 0, 1, 1], [], []>} : vector<18x16xf32>, vector<16x16xf32>, vector<18x16xf32> -> vector<18x16xf32>
    %c0_6 = arith.constant 0 : index
    %c1 = arith.constant 1 : index
    %c0_7 = arith.constant 0 : index
    %c0_8 = arith.constant 0 : index
    %5 = vector.load %arg2[%c0_6, %c1, %c0_7, %c0_8] : memref<1x4x16x16xf32, #tpu.memory_space<vmem>>, vector<1x1x16x16xf32>
    %6 = vector.shape_cast %5 : vector<1x1x16x16xf32> to vector<16x16xf32>
    %cst_9 = arith.constant dense<0.000000e+00> : vector<18x16xf32>
    %7 = tpu.matmul %1, %6, %cst_9 {dimension_numbers = #tpu.dot_dimension_numbers<[1], [0], [0], [1], [0, 0, 1, 1], [], []>} : vector<18x16xf32>, vector<16x16xf32>, vector<18x16xf32> -> vector<18x16xf32>
    %c0_10 = arith.constant 0 : index
    %c2 = arith.constant 2 : index
    %c0_11 = arith.constant 0 : index
    %c0_12 = arith.constant 0 : index
    %8 = vector.load %arg2[%c0_10, %c2, %c0_11, %c0_12] : memref<1x4x16x16xf32, #tpu.memory_space<vmem>>, vector<1x1x16x16xf32>
    %9 = vector.shape_cast %8 : vector<1x1x16x16xf32> to vector<16x16xf32>
    %cst_13 = arith.constant dense<0.000000e+00> : vector<18x16xf32>
    %10 = tpu.matmul %1, %9, %cst_13 {dimension_numbers = #tpu.dot_dimension_numbers<[1], [0], [0], [1], [0, 0, 1, 1], [], []>} : vector<18x16xf32>, vector<16x16xf32>, vector<18x16xf32> -> vector<18x16xf32>
    %c0_14 = arith.constant 0 : index
    %c3 = arith.constant 3 : index
    %c0_15 = arith.constant 0 : index
    %c0_16 = arith.constant 0 : index
    %11 = vector.load %arg2[%c0_14, %c3, %c0_15, %c0_16] : memref<1x4x16x16xf32, #tpu.memory_space<vmem>>, vector<1x1x16x16xf32>
    %12 = vector.shape_cast %11 : vector<1x1x16x16xf32> to vector<16x16xf32>
    %cst_17 = arith.constant dense<0.000000e+00> : vector<18x16xf32>
    %13 = tpu.matmul %1, %12, %cst_17 {dimension_numbers = #tpu.dot_dimension_numbers<[1], [0], [0], [1], [0, 0, 1, 1], [], []>} : vector<18x16xf32>, vector<16x16xf32>, vector<18x16xf32> -> vector<18x16xf32>
    %14 = tpu.concatenate %4, %7, %10, %13 in 0 : vector<18x16xf32>, vector<18x16xf32>, vector<18x16xf32>, vector<18x16xf32> -> vector<72x16xf32>
    %c0_18 = arith.constant 0 : index
    %c0_19 = arith.constant 0 : index
    %15 = vector.load %arg4[%c0_18, %c0_19] : memref<16x64xf32, #tpu.memory_space<vmem>>, vector<16x64xf32>
    %cst_20 = arith.constant dense<0.000000e+00> : vector<72x64xf32>
    %16 = tpu.matmul %14, %15, %cst_20 {dimension_numbers = #tpu.dot_dimension_numbers<[1], [0], [0], [1], [0, 0, 1, 1], [], []>} : vector<72x16xf32>, vector<16x64xf32>, vector<72x64xf32> -> vector<72x64xf32>
    %17 = vector.extract_strided_slice %16 {offsets = [0, 0], sizes = [1, 64], strides = [1, 1]} : vector<72x64xf32> to vector<1x64xf32>
    %c0_21 = arith.constant 0 : index
    %c128 = arith.constant 128 : index
    %18 = vector.load %arg10[%c0_21, %c128] : memref<4x1408xf32, #tpu.memory_space<vmem>>, vector<1x64xf32>
    tpu.vector_store %arg10[%c0_21, %c128], %17 {strides = array<i32>} : memref<4x1408xf32, #tpu.memory_space<vmem>>, vector<1x64xf32>,
    %19 = vector.extract_strided_slice %16 {offsets = [1, 0], sizes = [1, 64], strides = [1, 1]} : vector<72x64xf32> to vector<1x64xf32>
    %c0_22 = arith.constant 0 : index
    %c192 = arith.constant 192 : index
    %20 = vector.load %arg10[%c0_22, %c192] : memref<4x1408xf32, #tpu.memory_space<vmem>>, vector<1x64xf32>
    tpu.vector_store %arg10[%c0_22, %c192], %19 {strides = array<i32>} : memref<4x1408xf32, #tpu.memory_space<vmem>>, vector<1x64xf32>,
    %21 = vector.extract_strided_slice %16 {offsets = [2, 0], sizes = [1, 64], strides = [1, 1]} : vector<72x64xf32> to vector<1x64xf32>
    %c0_23 = arith.constant 0 : index
    %c256 = arith.constant 256 : index
    %22 = vector.load %arg10[%c0_23, %c256] : memref<4x1408xf32, #tpu.memory_space<vmem>>, vector<1x64xf32>
    tpu.vector_store %arg10[%c0_23, %c256], %21 {strides = array<i32>} : memref<4x1408xf32, #tpu.memory_space<vmem>>, vector<1x64xf32>,
    %23 = vector.extract_strided_slice %16 {offsets = [3, 0], sizes = [1, 64], strides = [1, 1]} : vector<72x64xf32> to vector<1x64xf32>
    %c0_24 = arith.constant 0 : index
    %c320 = arith.constant 320 : index
    %24 = vector.load %arg10[%c0_24, %c320] : memref<4x1408xf32, #tpu.memory_space<vmem>>, vector<1x64xf32>
    tpu.vector_store %arg10[%c0_24, %c320], %23 {strides = array<i32>} : memref<4x1408xf32, #tpu.memory_space<vmem>>, vector<1x64xf32>,
    %25 = vector.extract_strided_slice %16 {offsets = [4, 0], sizes = [1, 64], strides = [1, 1]} : vector<72x64xf32> to vector<1x64xf32>
    %c0_25 = arith.constant 0 : index
    %c384 = arith.constant 384 : index
    %26 = vector.load %arg10[%c0_25, %c384] : memref<4x1408xf32, #tpu.memory_space<vmem>>, vector<1x64xf32>
    tpu.vector_store %arg10[%c0_25, %c384], %25 {strides = array<i32>} : memref<4x1408xf32, #tpu.memory_space<vmem>>, vector<1x64xf32>,
    %27 = vector.extract_strided_slice %16 {offsets = [5, 0], sizes = [1, 64], strides = [1, 1]} : vector<72x64xf32> to vector<1x64xf32>
    %c0_26 = arith.constant 0 : index
    %c448 = arith.constant 448 : index
    %28 = vector.load %arg10[%c0_26, %c448] : memref<4x1408xf32, #tpu.memory_space<vmem>>, vector<1x64xf32>
    tpu.vector_store %arg10[%c0_26, %c448], %27 {strides = array<i32>} : memref<4x1408xf32, #tpu.memory_space<vmem>>, vector<1x64xf32>,
    %29 = vector.extract_strided_slice %16 {offsets = [6, 0], sizes = [1, 64], strides = [1, 1]} : vector<72x64xf32> to vector<1x64xf32>
    %c0_27 = arith.constant 0 : index
    %c512 = arith.constant 512 : index
    %30 = vector.load %arg10[%c0_27, %c512] : memref<4x1408xf32, #tpu.memory_space<vmem>>, vector<1x64xf32>
    tpu.vector_store %arg10[%c0_27, %c512], %29 {strides = array<i32>} : memref<4x1408xf32, #tpu.memory_space<vmem>>, vector<1x64xf32>,
    %31 = vector.extract_strided_slice %16 {offsets = [7, 0], sizes = [1, 64], strides = [1, 1]} : vector<72x64xf32> to vector<1x64xf32>
    %c0_28 = arith.constant 0 : index
    %c576 = arith.constant 576 : index
    %32 = vector.load %arg10[%c0_28, %c576] : memref<4x1408xf32, #tpu.memory_space<vmem>>, vector<1x64xf32>
    tpu.vector_store %arg10[%c0_28, %c576], %31 {strides = array<i32>} : memref<4x1408xf32, #tpu.memory_space<vmem>>, vector<1x64xf32>,
    %33 = vector.extract_strided_slice %16 {offsets = [8, 0], sizes = [1, 64], strides = [1, 1]} : vector<72x64xf32> to vector<1x64xf32>
    %c0_29 = arith.constant 0 : index
    %c640 = arith.constant 640 : index
    %34 = vector.load %arg10[%c0_29, %c640] : memref<4x1408xf32, #tpu.memory_space<vmem>>, vector<1x64xf32>
    tpu.vector_store %arg10[%c0_29, %c640], %33 {strides = array<i32>} : memref<4x1408xf32, #tpu.memory_space<vmem>>, vector<1x64xf32>,
    %35 = vector.extract_strided_slice %16 {offsets = [9, 0], sizes = [1, 64], strides = [1, 1]} : vector<72x64xf32> to vector<1x64xf32>
    %c0_30 = arith.constant 0 : index
    %c704 = arith.constant 704 : index
    %36 = vector.load %arg10[%c0_30, %c704] : memref<4x1408xf32, #tpu.memory_space<vmem>>, vector<1x64xf32>
    tpu.vector_store %arg10[%c0_30, %c704], %35 {strides = array<i32>} : memref<4x1408xf32, #tpu.memory_space<vmem>>, vector<1x64xf32>,
    %37 = vector.extract_strided_slice %16 {offsets = [10, 0], sizes = [1, 64], strides = [1, 1]} : vector<72x64xf32> to vector<1x64xf32>
    %c0_31 = arith.constant 0 : index
    %c768 = arith.constant 768 : index
    %38 = vector.load %arg10[%c0_31, %c768] : memref<4x1408xf32, #tpu.memory_space<vmem>>, vector<1x64xf32>
    tpu.vector_store %arg10[%c0_31, %c768], %37 {strides = array<i32>} : memref<4x1408xf32, #tpu.memory_space<vmem>>, vector<1x64xf32>,
    %39 = vector.extract_strided_slice %16 {offsets = [11, 0], sizes = [1, 64], strides = [1, 1]} : vector<72x64xf32> to vector<1x64xf32>
    %c0_32 = arith.constant 0 : index
    %c832 = arith.constant 832 : index
    %40 = vector.load %arg10[%c0_32, %c832] : memref<4x1408xf32, #tpu.memory_space<vmem>>, vector<1x64xf32>
    tpu.vector_store %arg10[%c0_32, %c832], %39 {strides = array<i32>} : memref<4x1408xf32, #tpu.memory_space<vmem>>, vector<1x64xf32>,
    %41 = vector.extract_strided_slice %16 {offsets = [12, 0], sizes = [1, 64], strides = [1, 1]} : vector<72x64xf32> to vector<1x64xf32>
    %c0_33 = arith.constant 0 : index
    %c896 = arith.constant 896 : index
    %42 = vector.load %arg10[%c0_33, %c896] : memref<4x1408xf32, #tpu.memory_space<vmem>>, vector<1x64xf32>
    tpu.vector_store %arg10[%c0_33, %c896], %41 {strides = array<i32>} : memref<4x1408xf32, #tpu.memory_space<vmem>>, vector<1x64xf32>,
    %43 = vector.extract_strided_slice %16 {offsets = [13, 0], sizes = [1, 64], strides = [1, 1]} : vector<72x64xf32> to vector<1x64xf32>
    %c0_34 = arith.constant 0 : index
    %c960 = arith.constant 960 : index
    %44 = vector.load %arg10[%c0_34, %c960] : memref<4x1408xf32, #tpu.memory_space<vmem>>, vector<1x64xf32>
    tpu.vector_store %arg10[%c0_34, %c960], %43 {strides = array<i32>} : memref<4x1408xf32, #tpu.memory_space<vmem>>, vector<1x64xf32>,
    %45 = vector.extract_strided_slice %16 {offsets = [14, 0], sizes = [1, 64], strides = [1, 1]} : vector<72x64xf32> to vector<1x64xf32>
    %c0_35 = arith.constant 0 : index
    %c1024 = arith.constant 1024 : index
    %46 = vector.load %arg10[%c0_35, %c1024] : memref<4x1408xf32, #tpu.memory_space<vmem>>, vector<1x64xf32>
    tpu.vector_store %arg10[%c0_35, %c1024], %45 {strides = array<i32>} : memref<4x1408xf32, #tpu.memory_space<vmem>>, vector<1x64xf32>,
    %47 = vector.extract_strided_slice %16 {offsets = [15, 0], sizes = [1, 64], strides = [1, 1]} : vector<72x64xf32> to vector<1x64xf32>
    %c0_36 = arith.constant 0 : index
    %c1088 = arith.constant 1088 : index
    %48 = vector.load %arg10[%c0_36, %c1088] : memref<4x1408xf32, #tpu.memory_space<vmem>>, vector<1x64xf32>
    tpu.vector_store %arg10[%c0_36, %c1088], %47 {strides = array<i32>} : memref<4x1408xf32, #tpu.memory_space<vmem>>, vector<1x64xf32>,
    %49 = vector.extract_strided_slice %16 {offsets = [16, 0], sizes = [1, 64], strides = [1, 1]} : vector<72x64xf32> to vector<1x64xf32>
    %c0_37 = arith.constant 0 : index
    %c1152 = arith.constant 1152 : index
    %50 = vector.load %arg10[%c0_37, %c1152] : memref<4x1408xf32, #tpu.memory_space<vmem>>, vector<1x64xf32>
    tpu.vector_store %arg10[%c0_37, %c1152], %49 {strides = array<i32>} : memref<4x1408xf32, #tpu.memory_space<vmem>>, vector<1x64xf32>,
    %51 = vector.extract_strided_slice %16 {offsets = [17, 0], sizes = [1, 64], strides = [1, 1]} : vector<72x64xf32> to vector<1x64xf32>
    %c0_38 = arith.constant 0 : index
    %c1216 = arith.constant 1216 : index
    %52 = vector.load %arg10[%c0_38, %c1216] : memref<4x1408xf32, #tpu.memory_space<vmem>>, vector<1x64xf32>
    tpu.vector_store %arg10[%c0_38, %c1216], %51 {strides = array<i32>} : memref<4x1408xf32, #tpu.memory_space<vmem>>, vector<1x64xf32>,
    %53 = vector.extract_strided_slice %16 {offsets = [18, 0], sizes = [1, 64], strides = [1, 1]} : vector<72x64xf32> to vector<1x64xf32>
    %c1_39 = arith.constant 1 : index
    %c128_40 = arith.constant 128 : index
    %54 = vector.load %arg10[%c1_39, %c128_40] : memref<4x1408xf32, #tpu.memory_space<vmem>>, vector<1x64xf32>
    tpu.vector_store %arg10[%c1_39, %c128_40], %53 {strides = array<i32>} : memref<4x1408xf32, #tpu.memory_space<vmem>>, vector<1x64xf32>,
    %55 = vector.extract_strided_slice %16 {offsets = [19, 0], sizes = [1, 64], strides = [1, 1]} : vector<72x64xf32> to vector<1x64xf32>
    %c1_41 = arith.constant 1 : index
    %c192_42 = arith.constant 192 : index
    %56 = vector.load %arg10[%c1_41, %c192_42] : memref<4x1408xf32, #tpu.memory_space<vmem>>, vector<1x64xf32>
    tpu.vector_store %arg10[%c1_41, %c192_42], %55 {strides = array<i32>} : memref<4x1408xf32, #tpu.memory_space<vmem>>, vector<1x64xf32>,
    %57 = vector.extract_strided_slice %16 {offsets = [20, 0], sizes = [1, 64], strides = [1, 1]} : vector<72x64xf32> to vector<1x64xf32>
    %c1_43 = arith.constant 1 : index
    %c256_44 = arith.constant 256 : index
    %58 = vector.load %arg10[%c1_43, %c256_44] : memref<4x1408xf32, #tpu.memory_space<vmem>>, vector<1x64xf32>
    tpu.vector_store %arg10[%c1_43, %c256_44], %57 {strides = array<i32>} : memref<4x1408xf32, #tpu.memory_space<vmem>>, vector<1x64xf32>,
    %59 = vector.extract_strided_slice %16 {offsets = [21, 0], sizes = [1, 64], strides = [1, 1]} : vector<72x64xf32> to vector<1x64xf32>
    %c1_45 = arith.constant 1 : index
    %c320_46 = arith.constant 320 : index
    %60 = vector.load %arg10[%c1_45, %c320_46] : memref<4x1408xf32, #tpu.memory_space<vmem>>, vector<1x64xf32>
    tpu.vector_store %arg10[%c1_45, %c320_46], %59 {strides = array<i32>} : memref<4x1408xf32, #tpu.memory_space<vmem>>, vector<1x64xf32>,
    %61 = vector.extract_strided_slice %16 {offsets = [22, 0], sizes = [1, 64], strides = [1, 1]} : vector<72x64xf32> to vector<1x64xf32>
    %c1_47 = arith.constant 1 : index
    %c384_48 = arith.constant 384 : index
    %62 = vector.load %arg10[%c1_47, %c384_48] : memref<4x1408xf32, #tpu.memory_space<vmem>>, vector<1x64xf32>
    tpu.vector_store %arg10[%c1_47, %c384_48], %61 {strides = array<i32>} : memref<4x1408xf32, #tpu.memory_space<vmem>>, vector<1x64xf32>,
    %63 = vector.extract_strided_slice %16 {offsets = [23, 0], sizes = [1, 64], strides = [1, 1]} : vector<72x64xf32> to vector<1x64xf32>
    %c1_49 = arith.constant 1 : index
    %c448_50 = arith.constant 448 : index
    %64 = vector.load %arg10[%c1_49, %c448_50] : memref<4x1408xf32, #tpu.memory_space<vmem>>, vector<1x64xf32>
    tpu.vector_store %arg10[%c1_49, %c448_50], %63 {strides = array<i32>} : memref<4x1408xf32, #tpu.memory_space<vmem>>, vector<1x64xf32>,
    %65 = vector.extract_strided_slice %16 {offsets = [24, 0], sizes = [1, 64], strides = [1, 1]} : vector<72x64xf32> to vector<1x64xf32>
    %c1_51 = arith.constant 1 : index
    %c512_52 = arith.constant 512 : index
    %66 = vector.load %arg10[%c1_51, %c512_52] : memref<4x1408xf32, #tpu.memory_space<vmem>>, vector<1x64xf32>
    tpu.vector_store %arg10[%c1_51, %c512_52], %65 {strides = array<i32>} : memref<4x1408xf32, #tpu.memory_space<vmem>>, vector<1x64xf32>,
    %67 = vector.extract_strided_slice %16 {offsets = [25, 0], sizes = [1, 64], strides = [1, 1]} : vector<72x64xf32> to vector<1x64xf32>
    %c1_53 = arith.constant 1 : index
    %c576_54 = arith.constant 576 : index
    %68 = vector.load %arg10[%c1_53, %c576_54] : memref<4x1408xf32, #tpu.memory_space<vmem>>, vector<1x64xf32>
    tpu.vector_store %arg10[%c1_53, %c576_54], %67 {strides = array<i32>} : memref<4x1408xf32, #tpu.memory_space<vmem>>, vector<1x64xf32>,
    %69 = vector.extract_strided_slice %16 {offsets = [26, 0], sizes = [1, 64], strides = [1, 1]} : vector<72x64xf32> to vector<1x64xf32>
    %c1_55 = arith.constant 1 : index
    %c640_56 = arith.constant 640 : index
    %70 = vector.load %arg10[%c1_55, %c640_56] : memref<4x1408xf32, #tpu.memory_space<vmem>>, vector<1x64xf32>
    tpu.vector_store %arg10[%c1_55, %c640_56], %69 {strides = array<i32>} : memref<4x1408xf32, #tpu.memory_space<vmem>>, vector<1x64xf32>,
    %71 = vector.extract_strided_slice %16 {offsets = [27, 0], sizes = [1, 64], strides = [1, 1]} : vector<72x64xf32> to vector<1x64xf32>
    %c1_57 = arith.constant 1 : index
    %c704_58 = arith.constant 704 : index
    %72 = vector.load %arg10[%c1_57, %c704_58] : memref<4x1408xf32, #tpu.memory_space<vmem>>, vector<1x64xf32>
    tpu.vector_store %arg10[%c1_57, %c704_58], %71 {strides = array<i32>} : memref<4x1408xf32, #tpu.memory_space<vmem>>, vector<1x64xf32>,
    %73 = vector.extract_strided_slice %16 {offsets = [28, 0], sizes = [1, 64], strides = [1, 1]} : vector<72x64xf32> to vector<1x64xf32>
    %c1_59 = arith.constant 1 : index
    %c768_60 = arith.constant 768 : index
    %74 = vector.load %arg10[%c1_59, %c768_60] : memref<4x1408xf32, #tpu.memory_space<vmem>>, vector<1x64xf32>
    tpu.vector_store %arg10[%c1_59, %c768_60], %73 {strides = array<i32>} : memref<4x1408xf32, #tpu.memory_space<vmem>>, vector<1x64xf32>,
    %75 = vector.extract_strided_slice %16 {offsets = [29, 0], sizes = [1, 64], strides = [1, 1]} : vector<72x64xf32> to vector<1x64xf32>
    %c1_61 = arith.constant 1 : index
    %c832_62 = arith.constant 832 : index
    %76 = vector.load %arg10[%c1_61, %c832_62] : memref<4x1408xf32, #tpu.memory_space<vmem>>, vector<1x64xf32>
    tpu.vector_store %arg10[%c1_61, %c832_62], %75 {strides = array<i32>} : memref<4x1408xf32, #tpu.memory_space<vmem>>, vector<1x64xf32>,
    %77 = vector.extract_strided_slice %16 {offsets = [30, 0], sizes = [1, 64], strides = [1, 1]} : vector<72x64xf32> to vector<1x64xf32>
    %c1_63 = arith.constant 1 : index
    %c896_64 = arith.constant 896 : index
    %78 = vector.load %arg10[%c1_63, %c896_64] : memref<4x1408xf32, #tpu.memory_space<vmem>>, vector<1x64xf32>
    tpu.vector_store %arg10[%c1_63, %c896_64], %77 {strides = array<i32>} : memref<4x1408xf32, #tpu.memory_space<vmem>>, vector<1x64xf32>,
    %79 = vector.extract_strided_slice %16 {offsets = [31, 0], sizes = [1, 64], strides = [1, 1]} : vector<72x64xf32> to vector<1x64xf32>
    %c1_65 = arith.constant 1 : index
    %c960_66 = arith.constant 960 : index
    %80 = vector.load %arg10[%c1_65, %c960_66] : memref<4x1408xf32, #tpu.memory_space<vmem>>, vector<1x64xf32>
    tpu.vector_store %arg10[%c1_65, %c960_66], %79 {strides = array<i32>} : memref<4x1408xf32, #tpu.memory_space<vmem>>, vector<1x64xf32>,
    %81 = vector.extract_strided_slice %16 {offsets = [32, 0], sizes = [1, 64], strides = [1, 1]} : vector<72x64xf32> to vector<1x64xf32>
    %c1_67 = arith.constant 1 : index
    %c1024_68 = arith.constant 1024 : index
    %82 = vector.load %arg10[%c1_67, %c1024_68] : memref<4x1408xf32, #tpu.memory_space<vmem>>, vector<1x64xf32>
    tpu.vector_store %arg10[%c1_67, %c1024_68], %81 {strides = array<i32>} : memref<4x1408xf32, #tpu.memory_space<vmem>>, vector<1x64xf32>,
    %83 = vector.extract_strided_slice %16 {offsets = [33, 0], sizes = [1, 64], strides = [1, 1]} : vector<72x64xf32> to vector<1x64xf32>
    %c1_69 = arith.constant 1 : index
    %c1088_70 = arith.constant 1088 : index
    %84 = vector.load %arg10[%c1_69, %c1088_70] : memref<4x1408xf32, #tpu.memory_space<vmem>>, vector<1x64xf32>
    tpu.vector_store %arg10[%c1_69, %c1088_70], %83 {strides = array<i32>} : memref<4x1408xf32, #tpu.memory_space<vmem>>, vector<1x64xf32>,
    %85 = vector.extract_strided_slice %16 {offsets = [34, 0], sizes = [1, 64], strides = [1, 1]} : vector<72x64xf32> to vector<1x64xf32>
    %c1_71 = arith.constant 1 : index
    %c1152_72 = arith.constant 1152 : index
    %86 = vector.load %arg10[%c1_71, %c1152_72] : memref<4x1408xf32, #tpu.memory_space<vmem>>, vector<1x64xf32>
    tpu.vector_store %arg10[%c1_71, %c1152_72], %85 {strides = array<i32>} : memref<4x1408xf32, #tpu.memory_space<vmem>>, vector<1x64xf32>,
    %87 = vector.extract_strided_slice %16 {offsets = [35, 0], sizes = [1, 64], strides = [1, 1]} : vector<72x64xf32> to vector<1x64xf32>
    %c1_73 = arith.constant 1 : index
    %c1216_74 = arith.constant 1216 : index
    %88 = vector.load %arg10[%c1_73, %c1216_74] : memref<4x1408xf32, #tpu.memory_space<vmem>>, vector<1x64xf32>
    tpu.vector_store %arg10[%c1_73, %c1216_74], %87 {strides = array<i32>} : memref<4x1408xf32, #tpu.memory_space<vmem>>, vector<1x64xf32>,
    %89 = vector.extract_strided_slice %16 {offsets = [36, 0], sizes = [1, 64], strides = [1, 1]} : vector<72x64xf32> to vector<1x64xf32>
    %c2_75 = arith.constant 2 : index
    %c128_76 = arith.constant 128 : index
    %90 = vector.load %arg10[%c2_75, %c128_76] : memref<4x1408xf32, #tpu.memory_space<vmem>>, vector<1x64xf32>
    tpu.vector_store %arg10[%c2_75, %c128_76], %89 {strides = array<i32>} : memref<4x1408xf32, #tpu.memory_space<vmem>>, vector<1x64xf32>,
    %91 = vector.extract_strided_slice %16 {offsets = [37, 0], sizes = [1, 64], strides = [1, 1]} : vector<72x64xf32> to vector<1x64xf32>
    %c2_77 = arith.constant 2 : index
    %c192_78 = arith.constant 192 : index
    %92 = vector.load %arg10[%c2_77, %c192_78] : memref<4x1408xf32, #tpu.memory_space<vmem>>, vector<1x64xf32>
    tpu.vector_store %arg10[%c2_77, %c192_78], %91 {strides = array<i32>} : memref<4x1408xf32, #tpu.memory_space<vmem>>, vector<1x64xf32>,
    %93 = vector.extract_strided_slice %16 {offsets = [38, 0], sizes = [1, 64], strides = [1, 1]} : vector<72x64xf32> to vector<1x64xf32>
    %c2_79 = arith.constant 2 : index
    %c256_80 = arith.constant 256 : index
    %94 = vector.load %arg10[%c2_79, %c256_80] : memref<4x1408xf32, #tpu.memory_space<vmem>>, vector<1x64xf32>
    tpu.vector_store %arg10[%c2_79, %c256_80], %93 {strides = array<i32>} : memref<4x1408xf32, #tpu.memory_space<vmem>>, vector<1x64xf32>,
    %95 = vector.extract_strided_slice %16 {offsets = [39, 0], sizes = [1, 64], strides = [1, 1]} : vector<72x64xf32> to vector<1x64xf32>
    %c2_81 = arith.constant 2 : index
    %c320_82 = arith.constant 320 : index
    %96 = vector.load %arg10[%c2_81, %c320_82] : memref<4x1408xf32, #tpu.memory_space<vmem>>, vector<1x64xf32>
    tpu.vector_store %arg10[%c2_81, %c320_82], %95 {strides = array<i32>} : memref<4x1408xf32, #tpu.memory_space<vmem>>, vector<1x64xf32>,
    %97 = vector.extract_strided_slice %16 {offsets = [40, 0], sizes = [1, 64], strides = [1, 1]} : vector<72x64xf32> to vector<1x64xf32>
    %c2_83 = arith.constant 2 : index
    %c384_84 = arith.constant 384 : index
    %98 = vector.load %arg10[%c2_83, %c384_84] : memref<4x1408xf32, #tpu.memory_space<vmem>>, vector<1x64xf32>
    tpu.vector_store %arg10[%c2_83, %c384_84], %97 {strides = array<i32>} : memref<4x1408xf32, #tpu.memory_space<vmem>>, vector<1x64xf32>,
    %99 = vector.extract_strided_slice %16 {offsets = [41, 0], sizes = [1, 64], strides = [1, 1]} : vector<72x64xf32> to vector<1x64xf32>
    %c2_85 = arith.constant 2 : index
    %c448_86 = arith.constant 448 : index
    %100 = vector.load %arg10[%c2_85, %c448_86] : memref<4x1408xf32, #tpu.memory_space<vmem>>, vector<1x64xf32>
    tpu.vector_store %arg10[%c2_85, %c448_86], %99 {strides = array<i32>} : memref<4x1408xf32, #tpu.memory_space<vmem>>, vector<1x64xf32>,
    %101 = vector.extract_strided_slice %16 {offsets = [42, 0], sizes = [1, 64], strides = [1, 1]} : vector<72x64xf32> to vector<1x64xf32>
    %c2_87 = arith.constant 2 : index
    %c512_88 = arith.constant 512 : index
    %102 = vector.load %arg10[%c2_87, %c512_88] : memref<4x1408xf32, #tpu.memory_space<vmem>>, vector<1x64xf32>
    tpu.vector_store %arg10[%c2_87, %c512_88], %101 {strides = array<i32>} : memref<4x1408xf32, #tpu.memory_space<vmem>>, vector<1x64xf32>,
    %103 = vector.extract_strided_slice %16 {offsets = [43, 0], sizes = [1, 64], strides = [1, 1]} : vector<72x64xf32> to vector<1x64xf32>
    %c2_89 = arith.constant 2 : index
    %c576_90 = arith.constant 576 : index
    %104 = vector.load %arg10[%c2_89, %c576_90] : memref<4x1408xf32, #tpu.memory_space<vmem>>, vector<1x64xf32>
    tpu.vector_store %arg10[%c2_89, %c576_90], %103 {strides = array<i32>} : memref<4x1408xf32, #tpu.memory_space<vmem>>, vector<1x64xf32>,
    %105 = vector.extract_strided_slice %16 {offsets = [44, 0], sizes = [1, 64], strides = [1, 1]} : vector<72x64xf32> to vector<1x64xf32>
    %c2_91 = arith.constant 2 : index
    %c640_92 = arith.constant 640 : index
    %106 = vector.load %arg10[%c2_91, %c640_92] : memref<4x1408xf32, #tpu.memory_space<vmem>>, vector<1x64xf32>
    tpu.vector_store %arg10[%c2_91, %c640_92], %105 {strides = array<i32>} : memref<4x1408xf32, #tpu.memory_space<vmem>>, vector<1x64xf32>,
    %107 = vector.extract_strided_slice %16 {offsets = [45, 0], sizes = [1, 64], strides = [1, 1]} : vector<72x64xf32> to vector<1x64xf32>
    %c2_93 = arith.constant 2 : index
    %c704_94 = arith.constant 704 : index
    %108 = vector.load %arg10[%c2_93, %c704_94] : memref<4x1408xf32, #tpu.memory_space<vmem>>, vector<1x64xf32>
    tpu.vector_store %arg10[%c2_93, %c704_94], %107 {strides = array<i32>} : memref<4x1408xf32, #tpu.memory_space<vmem>>, vector<1x64xf32>,
    %109 = vector.extract_strided_slice %16 {offsets = [46, 0], sizes = [1, 64], strides = [1, 1]} : vector<72x64xf32> to vector<1x64xf32>
    %c2_95 = arith.constant 2 : index
    %c768_96 = arith.constant 768 : index
    %110 = vector.load %arg10[%c2_95, %c768_96] : memref<4x1408xf32, #tpu.memory_space<vmem>>, vector<1x64xf32>
    tpu.vector_store %arg10[%c2_95, %c768_96], %109 {strides = array<i32>} : memref<4x1408xf32, #tpu.memory_space<vmem>>, vector<1x64xf32>,
    %111 = vector.extract_strided_slice %16 {offsets = [47, 0], sizes = [1, 64], strides = [1, 1]} : vector<72x64xf32> to vector<1x64xf32>
    %c2_97 = arith.constant 2 : index
    %c832_98 = arith.constant 832 : index
    %112 = vector.load %arg10[%c2_97, %c832_98] : memref<4x1408xf32, #tpu.memory_space<vmem>>, vector<1x64xf32>
    tpu.vector_store %arg10[%c2_97, %c832_98], %111 {strides = array<i32>} : memref<4x1408xf32, #tpu.memory_space<vmem>>, vector<1x64xf32>,
    %113 = vector.extract_strided_slice %16 {offsets = [48, 0], sizes = [1, 64], strides = [1, 1]} : vector<72x64xf32> to vector<1x64xf32>
    %c2_99 = arith.constant 2 : index
    %c896_100 = arith.constant 896 : index
    %114 = vector.load %arg10[%c2_99, %c896_100] : memref<4x1408xf32, #tpu.memory_space<vmem>>, vector<1x64xf32>
    tpu.vector_store %arg10[%c2_99, %c896_100], %113 {strides = array<i32>} : memref<4x1408xf32, #tpu.memory_space<vmem>>, vector<1x64xf32>,
    %115 = vector.extract_strided_slice %16 {offsets = [49, 0], sizes = [1, 64], strides = [1, 1]} : vector<72x64xf32> to vector<1x64xf32>
    %c2_101 = arith.constant 2 : index
    %c960_102 = arith.constant 960 : index
    %116 = vector.load %arg10[%c2_101, %c960_102] : memref<4x1408xf32, #tpu.memory_space<vmem>>, vector<1x64xf32>
    tpu.vector_store %arg10[%c2_101, %c960_102], %115 {strides = array<i32>} : memref<4x1408xf32, #tpu.memory_space<vmem>>, vector<1x64xf32>,
    %117 = vector.extract_strided_slice %16 {offsets = [50, 0], sizes = [1, 64], strides = [1, 1]} : vector<72x64xf32> to vector<1x64xf32>
    %c2_103 = arith.constant 2 : index
    %c1024_104 = arith.constant 1024 : index
    %118 = vector.load %arg10[%c2_103, %c1024_104] : memref<4x1408xf32, #tpu.memory_space<vmem>>, vector<1x64xf32>
    tpu.vector_store %arg10[%c2_103, %c1024_104], %117 {strides = array<i32>} : memref<4x1408xf32, #tpu.memory_space<vmem>>, vector<1x64xf32>,
    %119 = vector.extract_strided_slice %16 {offsets = [51, 0], sizes = [1, 64], strides = [1, 1]} : vector<72x64xf32> to vector<1x64xf32>
    %c2_105 = arith.constant 2 : index
    %c1088_106 = arith.constant 1088 : index
    %120 = vector.load %arg10[%c2_105, %c1088_106] : memref<4x1408xf32, #tpu.memory_space<vmem>>, vector<1x64xf32>
    tpu.vector_store %arg10[%c2_105, %c1088_106], %119 {strides = array<i32>} : memref<4x1408xf32, #tpu.memory_space<vmem>>, vector<1x64xf32>,
    %121 = vector.extract_strided_slice %16 {offsets = [52, 0], sizes = [1, 64], strides = [1, 1]} : vector<72x64xf32> to vector<1x64xf32>
    %c2_107 = arith.constant 2 : index
    %c1152_108 = arith.constant 1152 : index
    %122 = vector.load %arg10[%c2_107, %c1152_108] : memref<4x1408xf32, #tpu.memory_space<vmem>>, vector<1x64xf32>
    tpu.vector_store %arg10[%c2_107, %c1152_108], %121 {strides = array<i32>} : memref<4x1408xf32, #tpu.memory_space<vmem>>, vector<1x64xf32>,
    %123 = vector.extract_strided_slice %16 {offsets = [53, 0], sizes = [1, 64], strides = [1, 1]} : vector<72x64xf32> to vector<1x64xf32>
    %c2_109 = arith.constant 2 : index
    %c1216_110 = arith.constant 1216 : index
    %124 = vector.load %arg10[%c2_109, %c1216_110] : memref<4x1408xf32, #tpu.memory_space<vmem>>, vector<1x64xf32>
    tpu.vector_store %arg10[%c2_109, %c1216_110], %123 {strides = array<i32>} : memref<4x1408xf32, #tpu.memory_space<vmem>>, vector<1x64xf32>,
    %125 = vector.extract_strided_slice %16 {offsets = [54, 0], sizes = [1, 64], strides = [1, 1]} : vector<72x64xf32> to vector<1x64xf32>
    %c3_111 = arith.constant 3 : index
    %c128_112 = arith.constant 128 : index
    %126 = vector.load %arg10[%c3_111, %c128_112] : memref<4x1408xf32, #tpu.memory_space<vmem>>, vector<1x64xf32>
    tpu.vector_store %arg10[%c3_111, %c128_112], %125 {strides = array<i32>} : memref<4x1408xf32, #tpu.memory_space<vmem>>, vector<1x64xf32>,
    %127 = vector.extract_strided_slice %16 {offsets = [55, 0], sizes = [1, 64], strides = [1, 1]} : vector<72x64xf32> to vector<1x64xf32>
    %c3_113 = arith.constant 3 : index
    %c192_114 = arith.constant 192 : index
    %128 = vector.load %arg10[%c3_113, %c192_114] : memref<4x1408xf32, #tpu.memory_space<vmem>>, vector<1x64xf32>
    tpu.vector_store %arg10[%c3_113, %c192_114], %127 {strides = array<i32>} : memref<4x1408xf32, #tpu.memory_space<vmem>>, vector<1x64xf32>,
    %129 = vector.extract_strided_slice %16 {offsets = [56, 0], sizes = [1, 64], strides = [1, 1]} : vector<72x64xf32> to vector<1x64xf32>
    %c3_115 = arith.constant 3 : index
    %c256_116 = arith.constant 256 : index
    %130 = vector.load %arg10[%c3_115, %c256_116] : memref<4x1408xf32, #tpu.memory_space<vmem>>, vector<1x64xf32>
    tpu.vector_store %arg10[%c3_115, %c256_116], %129 {strides = array<i32>} : memref<4x1408xf32, #tpu.memory_space<vmem>>, vector<1x64xf32>,
    %131 = vector.extract_strided_slice %16 {offsets = [57, 0], sizes = [1, 64], strides = [1, 1]} : vector<72x64xf32> to vector<1x64xf32>
    %c3_117 = arith.constant 3 : index
    %c320_118 = arith.constant 320 : index
    %132 = vector.load %arg10[%c3_117, %c320_118] : memref<4x1408xf32, #tpu.memory_space<vmem>>, vector<1x64xf32>
    tpu.vector_store %arg10[%c3_117, %c320_118], %131 {strides = array<i32>} : memref<4x1408xf32, #tpu.memory_space<vmem>>, vector<1x64xf32>,
    %133 = vector.extract_strided_slice %16 {offsets = [58, 0], sizes = [1, 64], strides = [1, 1]} : vector<72x64xf32> to vector<1x64xf32>
    %c3_119 = arith.constant 3 : index
    %c384_120 = arith.constant 384 : index
    %134 = vector.load %arg10[%c3_119, %c384_120] : memref<4x1408xf32, #tpu.memory_space<vmem>>, vector<1x64xf32>
    tpu.vector_store %arg10[%c3_119, %c384_120], %133 {strides = array<i32>} : memref<4x1408xf32, #tpu.memory_space<vmem>>, vector<1x64xf32>,
    %135 = vector.extract_strided_slice %16 {offsets = [59, 0], sizes = [1, 64], strides = [1, 1]} : vector<72x64xf32> to vector<1x64xf32>
    %c3_121 = arith.constant 3 : index
    %c448_122 = arith.constant 448 : index
    %136 = vector.load %arg10[%c3_121, %c448_122] : memref<4x1408xf32, #tpu.memory_space<vmem>>, vector<1x64xf32>
    tpu.vector_store %arg10[%c3_121, %c448_122], %135 {strides = array<i32>} : memref<4x1408xf32, #tpu.memory_space<vmem>>, vector<1x64xf32>,
    %137 = vector.extract_strided_slice %16 {offsets = [60, 0], sizes = [1, 64], strides = [1, 1]} : vector<72x64xf32> to vector<1x64xf32>
    %c3_123 = arith.constant 3 : index
    %c512_124 = arith.constant 512 : index
    %138 = vector.load %arg10[%c3_123, %c512_124] : memref<4x1408xf32, #tpu.memory_space<vmem>>, vector<1x64xf32>
    tpu.vector_store %arg10[%c3_123, %c512_124], %137 {strides = array<i32>} : memref<4x1408xf32, #tpu.memory_space<vmem>>, vector<1x64xf32>,
    %139 = vector.extract_strided_slice %16 {offsets = [61, 0], sizes = [1, 64], strides = [1, 1]} : vector<72x64xf32> to vector<1x64xf32>
    %c3_125 = arith.constant 3 : index
    %c576_126 = arith.constant 576 : index
    %140 = vector.load %arg10[%c3_125, %c576_126] : memref<4x1408xf32, #tpu.memory_space<vmem>>, vector<1x64xf32>
    tpu.vector_store %arg10[%c3_125, %c576_126], %139 {strides = array<i32>} : memref<4x1408xf32, #tpu.memory_space<vmem>>, vector<1x64xf32>,
    %141 = vector.extract_strided_slice %16 {offsets = [62, 0], sizes = [1, 64], strides = [1, 1]} : vector<72x64xf32> to vector<1x64xf32>
    %c3_127 = arith.constant 3 : index
    %c640_128 = arith.constant 640 : index
    %142 = vector.load %arg10[%c3_127, %c640_128] : memref<4x1408xf32, #tpu.memory_space<vmem>>, vector<1x64xf32>
    tpu.vector_store %arg10[%c3_127, %c640_128], %141 {strides = array<i32>} : memref<4x1408xf32, #tpu.memory_space<vmem>>, vector<1x64xf32>,
    %143 = vector.extract_strided_slice %16 {offsets = [63, 0], sizes = [1, 64], strides = [1, 1]} : vector<72x64xf32> to vector<1x64xf32>
    %c3_129 = arith.constant 3 : index
    %c704_130 = arith.constant 704 : index
    %144 = vector.load %arg10[%c3_129, %c704_130] : memref<4x1408xf32, #tpu.memory_space<vmem>>, vector<1x64xf32>
    tpu.vector_store %arg10[%c3_129, %c704_130], %143 {strides = array<i32>} : memref<4x1408xf32, #tpu.memory_space<vmem>>, vector<1x64xf32>,
    %145 = vector.extract_strided_slice %16 {offsets = [64, 0], sizes = [1, 64], strides = [1, 1]} : vector<72x64xf32> to vector<1x64xf32>
    %c3_131 = arith.constant 3 : index
    %c768_132 = arith.constant 768 : index
    %146 = vector.load %arg10[%c3_131, %c768_132] : memref<4x1408xf32, #tpu.memory_space<vmem>>, vector<1x64xf32>
    tpu.vector_store %arg10[%c3_131, %c768_132], %145 {strides = array<i32>} : memref<4x1408xf32, #tpu.memory_space<vmem>>, vector<1x64xf32>,
    %147 = vector.extract_strided_slice %16 {offsets = [65, 0], sizes = [1, 64], strides = [1, 1]} : vector<72x64xf32> to vector<1x64xf32>
    %c3_133 = arith.constant 3 : index
    %c832_134 = arith.constant 832 : index
    %148 = vector.load %arg10[%c3_133, %c832_134] : memref<4x1408xf32, #tpu.memory_space<vmem>>, vector<1x64xf32>
    tpu.vector_store %arg10[%c3_133, %c832_134], %147 {strides = array<i32>} : memref<4x1408xf32, #tpu.memory_space<vmem>>, vector<1x64xf32>,
    %149 = vector.extract_strided_slice %16 {offsets = [66, 0], sizes = [1, 64], strides = [1, 1]} : vector<72x64xf32> to vector<1x64xf32>
    %c3_135 = arith.constant 3 : index
    %c896_136 = arith.constant 896 : index
    %150 = vector.load %arg10[%c3_135, %c896_136] : memref<4x1408xf32, #tpu.memory_space<vmem>>, vector<1x64xf32>
    tpu.vector_store %arg10[%c3_135, %c896_136], %149 {strides = array<i32>} : memref<4x1408xf32, #tpu.memory_space<vmem>>, vector<1x64xf32>,
    %151 = vector.extract_strided_slice %16 {offsets = [67, 0], sizes = [1, 64], strides = [1, 1]} : vector<72x64xf32> to vector<1x64xf32>
    %c3_137 = arith.constant 3 : index
    %c960_138 = arith.constant 960 : index
    %152 = vector.load %arg10[%c3_137, %c960_138] : memref<4x1408xf32, #tpu.memory_space<vmem>>, vector<1x64xf32>
    tpu.vector_store %arg10[%c3_137, %c960_138], %151 {strides = array<i32>} : memref<4x1408xf32, #tpu.memory_space<vmem>>, vector<1x64xf32>,
    %153 = vector.extract_strided_slice %16 {offsets = [68, 0], sizes = [1, 64], strides = [1, 1]} : vector<72x64xf32> to vector<1x64xf32>
    %c3_139 = arith.constant 3 : index
    %c1024_140 = arith.constant 1024 : index
    %154 = vector.load %arg10[%c3_139, %c1024_140] : memref<4x1408xf32, #tpu.memory_space<vmem>>, vector<1x64xf32>
    tpu.vector_store %arg10[%c3_139, %c1024_140], %153 {strides = array<i32>} : memref<4x1408xf32, #tpu.memory_space<vmem>>, vector<1x64xf32>,
    %155 = vector.extract_strided_slice %16 {offsets = [69, 0], sizes = [1, 64], strides = [1, 1]} : vector<72x64xf32> to vector<1x64xf32>
    %c3_141 = arith.constant 3 : index
    %c1088_142 = arith.constant 1088 : index
    %156 = vector.load %arg10[%c3_141, %c1088_142] : memref<4x1408xf32, #tpu.memory_space<vmem>>, vector<1x64xf32>
    tpu.vector_store %arg10[%c3_141, %c1088_142], %155 {strides = array<i32>} : memref<4x1408xf32, #tpu.memory_space<vmem>>, vector<1x64xf32>,
    %157 = vector.extract_strided_slice %16 {offsets = [70, 0], sizes = [1, 64], strides = [1, 1]} : vector<72x64xf32> to vector<1x64xf32>
    %c3_143 = arith.constant 3 : index
    %c1152_144 = arith.constant 1152 : index
    %158 = vector.load %arg10[%c3_143, %c1152_144] : memref<4x1408xf32, #tpu.memory_space<vmem>>, vector<1x64xf32>
    tpu.vector_store %arg10[%c3_143, %c1152_144], %157 {strides = array<i32>} : memref<4x1408xf32, #tpu.memory_space<vmem>>, vector<1x64xf32>,
    %159 = vector.extract_strided_slice %16 {offsets = [71, 0], sizes = [1, 64], strides = [1, 1]} : vector<72x64xf32> to vector<1x64xf32>
    %c3_145 = arith.constant 3 : index
    %c1216_146 = arith.constant 1216 : index
    %160 = vector.load %arg10[%c3_145, %c1216_146] : memref<4x1408xf32, #tpu.memory_space<vmem>>, vector<1x64xf32>
    tpu.vector_store %arg10[%c3_145, %c1216_146], %159 {strides = array<i32>} : memref<4x1408xf32, #tpu.memory_space<vmem>>, vector<1x64xf32>,
    %161 = tpu.iota {dimensions = array<i32: 1>} : vector<1x1024xi32>
    %c64_i32 = arith.constant 64 : i32
    %c0_i32 = arith.constant 0 : i32
    %162 = arith.cmpi eq, %c64_i32, %c0_i32 : i32
    %c1_i32 = arith.constant 1 : i32
    %163 = arith.select %162, %c1_i32, %c64_i32 : i32
    %164 = vector.broadcast %163 : i32 to vector<1x1024xi32>
    %165 = arith.remsi %161, %164 : vector<1x1024xi32>
    %c0_i32_147 = arith.constant 0 : i32
    %166 = vector.broadcast %c0_i32_147 : i32 to vector<1x1024xi32>
    %167 = arith.cmpi ne, %165, %166 : vector<1x1024xi32>
    %c0_i32_148 = arith.constant 0 : i32
    %168 = vector.broadcast %c0_i32_148 : i32 to vector<1x1024xi32>
    %169 = arith.cmpi slt, %165, %168 : vector<1x1024xi32>
    %c0_i32_149 = arith.constant 0 : i32
    %170 = arith.cmpi slt, %163, %c0_i32_149 : i32
    %171 = vector.broadcast %170 : i1 to vector<1x1024xi1>
    %172 = vector.broadcast %171 : vector<1x1024xi1> to vector<1x1024xi1>
    %173 = arith.xori %169, %172 : vector<1x1024xi1>
    %174 = arith.andi %173, %167 : vector<1x1024xi1>
    %175 = vector.broadcast %163 : i32 to vector<1x1024xi32>
    %176 = arith.addi %165, %175 : vector<1x1024xi32>
    %177 = arith.select %174, %176, %165 : vector<1x1024xi1>, vector<1x1024xi32>
    %c1_i32_150 = arith.constant 1 : i32
    %178 = vector.broadcast %c1_i32_150 : i32 to vector<1x1024xi32>
    %179 = arith.cmpi sge, %177, %178 : vector<1x1024xi32>
    %c62_i32 = arith.constant 62 : i32
    %180 = vector.broadcast %c62_i32 : i32 to vector<1x1024xi32>
    %181 = arith.cmpi sle, %177, %180 : vector<1x1024xi32>
    %c0_151 = arith.constant 0 : index
    %c127 = arith.constant 127 : index
    %182 = vector.load %arg10[%c0_151, %c127] : memref<4x1408xf32, #tpu.memory_space<vmem>>, vector<4x1024xf32>
    %cst_152 = arith.constant 0.000000e+00 : f32
    %183 = vector.shape_cast %179 : vector<1x1024xi1> to vector<1x1024xi1>
    %184 = vector.broadcast %183 : vector<1x1024xi1> to vector<4x1024xi1>
    %185 = vector.broadcast %cst_152 : f32 to vector<4x1024xf32>
    %186 = arith.select %184, %182, %185 : vector<4x1024xi1>, vector<4x1024xf32>
    %187 = arith.truncf %186 : vector<4x1024xf32> to vector<4x1024xbf16>
    %c0_153 = arith.constant 0 : index
    %c128_154 = arith.constant 128 : index
    %188 = vector.load %arg10[%c0_153, %c128_154] : memref<4x1408xf32, #tpu.memory_space<vmem>>, vector<4x1024xf32>
    %189 = arith.truncf %188 : vector<4x1024xf32> to vector<4x1024xbf16>
    %c0_155 = arith.constant 0 : index
    %c129 = arith.constant 129 : index
    %190 = vector.load %arg10[%c0_155, %c129] : memref<4x1408xf32, #tpu.memory_space<vmem>>, vector<4x1024xf32>
    %cst_156 = arith.constant 0.000000e+00 : f32
    %191 = vector.shape_cast %181 : vector<1x1024xi1> to vector<1x1024xi1>
    %192 = vector.broadcast %191 : vector<1x1024xi1> to vector<4x1024xi1>
    %193 = vector.broadcast %cst_156 : f32 to vector<4x1024xf32>
    %194 = arith.select %192, %190, %193 : vector<4x1024xi1>, vector<4x1024xf32>
    %195 = arith.truncf %194 : vector<4x1024xf32> to vector<4x1024xbf16>
    %c0_157 = arith.constant 0 : index
    %c191 = arith.constant 191 : index
    %196 = vector.load %arg10[%c0_157, %c191] : memref<4x1408xf32, #tpu.memory_space<vmem>>, vector<4x1024xf32>
    %cst_158 = arith.constant 0.000000e+00 : f32
    %197 = vector.shape_cast %179 : vector<1x1024xi1> to vector<1x1024xi1>
    %198 = vector.broadcast %197 : vector<1x1024xi1> to vector<4x1024xi1>
    %199 = vector.broadcast %cst_158 : f32 to vector<4x1024xf32>
    %200 = arith.select %198, %196, %199 : vector<4x1024xi1>, vector<4x1024xf32>
    %201 = arith.truncf %200 : vector<4x1024xf32> to vector<4x1024xbf16>
    %c0_159 = arith.constant 0 : index
    %c192_160 = arith.constant 192 : index
    %202 = vector.load %arg10[%c0_159, %c192_160] : memref<4x1408xf32, #tpu.memory_space<vmem>>, vector<4x1024xf32>
    %203 = arith.truncf %202 : vector<4x1024xf32> to vector<4x1024xbf16>
    %c0_161 = arith.constant 0 : index
    %c193 = arith.constant 193 : index
    %204 = vector.load %arg10[%c0_161, %c193] : memref<4x1408xf32, #tpu.memory_space<vmem>>, vector<4x1024xf32>
    %cst_162 = arith.constant 0.000000e+00 : f32
    %205 = vector.shape_cast %181 : vector<1x1024xi1> to vector<1x1024xi1>
    %206 = vector.broadcast %205 : vector<1x1024xi1> to vector<4x1024xi1>
    %207 = vector.broadcast %cst_162 : f32 to vector<4x1024xf32>
    %208 = arith.select %206, %204, %207 : vector<4x1024xi1>, vector<4x1024xf32>
    %209 = arith.truncf %208 : vector<4x1024xf32> to vector<4x1024xbf16>
    %c0_163 = arith.constant 0 : index
    %c255 = arith.constant 255 : index
    %210 = vector.load %arg10[%c0_163, %c255] : memref<4x1408xf32, #tpu.memory_space<vmem>>, vector<4x1024xf32>
    %cst_164 = arith.constant 0.000000e+00 : f32
    %211 = vector.shape_cast %179 : vector<1x1024xi1> to vector<1x1024xi1>
    %212 = vector.broadcast %211 : vector<1x1024xi1> to vector<4x1024xi1>
    %213 = vector.broadcast %cst_164 : f32 to vector<4x1024xf32>
    %214 = arith.select %212, %210, %213 : vector<4x1024xi1>, vector<4x1024xf32>
    %215 = arith.truncf %214 : vector<4x1024xf32> to vector<4x1024xbf16>
    %c0_165 = arith.constant 0 : index
    %c256_166 = arith.constant 256 : index
    %216 = vector.load %arg10[%c0_165, %c256_166] : memref<4x1408xf32, #tpu.memory_space<vmem>>, vector<4x1024xf32>
    %217 = arith.truncf %216 : vector<4x1024xf32> to vector<4x1024xbf16>
    %c0_167 = arith.constant 0 : index
    %c257 = arith.constant 257 : index
    %218 = vector.load %arg10[%c0_167, %c257] : memref<4x1408xf32, #tpu.memory_space<vmem>>, vector<4x1024xf32>
    %cst_168 = arith.constant 0.000000e+00 : f32
    %219 = vector.shape_cast %181 : vector<1x1024xi1> to vector<1x1024xi1>
    %220 = vector.broadcast %219 : vector<1x1024xi1> to vector<4x1024xi1>
    %221 = vector.broadcast %cst_168 : f32 to vector<4x1024xf32>
    %222 = arith.select %220, %218, %221 : vector<4x1024xi1>, vector<4x1024xf32>
    %223 = arith.truncf %222 : vector<4x1024xf32> to vector<4x1024xbf16>
    %224 = tpu.concatenate %187, %189, %195, %201, %203, %209, %215, %217, %223 in 0 : vector<4x1024xbf16>, vector<4x1024xbf16>, vector<4x1024xbf16>, vector<4x1024xbf16>, vector<4x1024xbf16>, vector<4x1024xbf16>, vector<4x1024xbf16>, vector<4x1024xbf16>, vector<4x1024xbf16> -> vector<36x1024xbf16>
    %c0_169 = arith.constant 0 : index
    %c0_170 = arith.constant 0 : index
    %225 = vector.load %arg5[%c0_169, %c0_170] : memref<16x36xbf16, #tpu.memory_space<vmem>>, vector<16x36xbf16>
    %cst_171 = arith.constant dense<0.000000e+00> : vector<16x1024xf32>
    %226 = tpu.matmul %225, %224, %cst_171 {dimension_numbers = #tpu.dot_dimension_numbers<[1], [0], [0], [1], [0, 0, 1, 1], [], []>} : vector<16x36xbf16>, vector<36x1024xbf16>, vector<16x1024xf32> -> vector<16x1024xf32>
    %c0_172 = arith.constant 0 : index
    %c0_173 = arith.constant 0 : index
    %227 = vector.load %arg6[%c0_172, %c0_173] : memref<16x1xf32, #tpu.memory_space<vmem>>, vector<16x1xf32>
    %228 = vector.broadcast %227 : vector<16x1xf32> to vector<16x1024xf32>
    %229 = arith.addf %226, %228 : vector<16x1024xf32>
    %cst_174 = arith.constant 0.000000e+00 : f32
    %230 = vector.broadcast %cst_174 : f32 to vector<16x1024xf32>
    %231 = arith.maximumf %229, %230 : vector<16x1024xf32>
    %c0_175 = arith.constant 0 : index
    %c0_176 = arith.constant 0 : index
    %232 = vector.load %arg7[%c0_175, %c0_176] : memref<3x16xbf16, #tpu.memory_space<vmem>>, vector<3x16xbf16>
    %233 = arith.truncf %231 : vector<16x1024xf32> to vector<16x1024xbf16>
    %cst_177 = arith.constant dense<0.000000e+00> : vector<3x1024xf32>
    %234 = tpu.matmul %232, %233, %cst_177 {dimension_numbers = #tpu.dot_dimension_numbers<[1], [0], [0], [1], [0, 0, 1, 1], [], []>} : vector<3x16xbf16>, vector<16x1024xbf16>, vector<3x1024xf32> -> vector<3x1024xf32>
    %c0_178 = arith.constant 0 : index
    %c0_179 = arith.constant 0 : index
    %235 = vector.load %arg8[%c0_178, %c0_179] : memref<3x1xf32, #tpu.memory_space<vmem>>, vector<3x1xf32>
    %236 = vector.broadcast %235 : vector<3x1xf32> to vector<3x1024xf32>
    %237 = arith.addf %234, %236 : vector<3x1024xf32>
    %c0_180 = arith.constant 0 : index
    %c0_181 = arith.constant 0 : index
    %c0_182 = arith.constant 0 : index
    %238 = vector.load %arg9[%c0_180, %c0_181, %c0_182] : memref<1x3x1024xf32, #tpu.memory_space<vmem>>, vector<1x3x1024xf32>
    %239 = vector.shape_cast %238 : vector<1x3x1024xf32> to vector<3x1024xf32>
    %240 = vector.shape_cast %237 : vector<3x1024xf32> to vector<1x3x1024xf32>
    tpu.vector_store %arg9[%c0_180, %c0_181, %c0_182], %240 {strides = array<i32>} : memref<1x3x1024xf32, #tpu.memory_space<vmem>>, vector<1x3x1024xf32>,
    return
  }
  func.func @transform_0(%arg0: i32, %arg1: i32) -> (i32, i32, i32, i32) {
    %c0_i32 = arith.constant 0 : i32
    %c0_i32_0 = arith.constant 0 : i32
    %c0_i32_1 = arith.constant 0 : i32
    %c0_i32_2 = arith.constant 0 : i32
    return %arg0, %c0_i32, %c0_i32_0, %c0_i32_1 : i32, i32, i32, i32
  }
  func.func @transform_1(%arg0: i32, %arg1: i32) -> (i32, i32, i32) {
    %c0_i32 = arith.constant 0 : i32
    %c0_i32_0 = arith.constant 0 : i32
    %c0_i32_1 = arith.constant 0 : i32
    return %arg1, %c0_i32, %c0_i32_0 : i32, i32, i32
  }
  func.func @transform_2(%arg0: i32, %arg1: i32) -> (i32, i32) {
    %c0_i32 = arith.constant 0 : i32
    %c0_i32_0 = arith.constant 0 : i32
    %c0_i32_1 = arith.constant 0 : i32
    return %c0_i32, %c0_i32_0 : i32, i32
  }
  func.func @transform_3(%arg0: i32, %arg1: i32) -> (i32, i32) {
    %c0_i32 = arith.constant 0 : i32
    %c0_i32_0 = arith.constant 0 : i32
    %c0_i32_1 = arith.constant 0 : i32
    return %c0_i32, %c0_i32_0 : i32, i32
  }
  func.func @transform_4(%arg0: i32, %arg1: i32) -> (i32, i32) {
    %c0_i32 = arith.constant 0 : i32
    %c0_i32_0 = arith.constant 0 : i32
    %c0_i32_1 = arith.constant 0 : i32
    return %c0_i32, %c0_i32_0 : i32, i32
  }
  func.func @transform_5(%arg0: i32, %arg1: i32) -> (i32, i32) {
    %c0_i32 = arith.constant 0 : i32
    %c0_i32_0 = arith.constant 0 : i32
    %c0_i32_1 = arith.constant 0 : i32
    return %c0_i32, %c0_i32_0 : i32, i32
  }
  func.func @transform_6(%arg0: i32, %arg1: i32) -> (i32, i32) {
    %c0_i32 = arith.constant 0 : i32
    %c0_i32_0 = arith.constant 0 : i32
    %c0_i32_1 = arith.constant 0 : i32
    return %c0_i32, %c0_i32_0 : i32, i32
  }
  func.func @transform_7(%arg0: i32, %arg1: i32) -> (i32, i32, i32) {
    %c0_i32 = arith.constant 0 : i32
    %c0_i32_0 = arith.constant 0 : i32
    return %arg0, %c0_i32, %arg1 : i32, i32, i32
  }
}

</mosaic_0001>

<llo_original>
// kernel: gan_seg_model_forward.1
$region0: #{gan_seg_model_forward.1}
  #allocation0 [shape = 'u32[]', space=smem, size = 0x4, offset = 0x4, fixed_abs, tag = 'smem constant byte address 0x4 - core index']
  #allocation1 [shape = 'u32[72,128]{1,0:T(1,128)}', space=vmem, size = 0x9000, scoped, tag = 'internal scratch']
  #allocation2 [shape = 'f32[4,1408]{1,0:T(4,128)}', space=vmem, size = 0x5800, scoped, tag = 'scratch operand']
  %s0 = inlined_call_operand.vmem [shape: f32[2,4,16,16], index: 0, kind: input, shape index: {}]
  %s1 = inlined_call_operand.vmem [shape: f32[4,18,16], index: 1, kind: input, shape index: {}]
  %s2 = inlined_call_operand.vmem [shape: f32[16,64], index: 2, kind: input, shape index: {}]
  %s3 = inlined_call_operand.vmem [shape: bf16[16,36], index: 3, kind: input, shape index: {}]
  %s4 = inlined_call_operand.vmem [shape: f32[16,1], index: 4, kind: input, shape index: {}]
  %s5 = inlined_call_operand.vmem [shape: bf16[3,16], index: 5, kind: input, shape index: {}]
  %s6 = inlined_call_operand.vmem [shape: f32[3,1], index: 6, kind: input, shape index: {}]
  %s7 = inlined_call_operand.vmem [shape: f32[2,3,4096], index: 7, kind: output, shape index: {}]
  %s8 = sld [smem:[#allocation0]]
  $region61: #{gan_seg_model_forward.1} parent=0
    _
  %s10 = ssub.s32 1, %s8
  %s11 = scalar_select 0, %s10, %s8
  loop: start=0, step=1, limit=10
  $region2: #{gan_seg_model_forward.1} parent=0 // loop_pre_header
    _
  $region3: #{gan_seg_model_forward.1} parent=0 // loop_header
    %s13 = sphi 0, %s17
    %p14 = scmp.ge.s32.totalorder %s13, 10
    %s20 = sphi 0, %s32
    %s21 = sphi 0, %s28
    %s22 = sphi 0, %s20
    %s23 = sphi 0, %s21
    %s24 = sphi 0, %s22
    %s25 = sphi 0, %s23
    %s35 = sphi 0, %s37
    %s38 = sphi 0, %s35
    %s39 = sphi 0, %s38
    %s55 = sphi 0, %s39
    %s61 = sphi 0, %s63
    %s64 = sphi 0, %s61
    %s65 = sphi 0, %s64
    %s81 = sphi 0, %s65
    %s85 = sphi 0, %s85
    %s87 = sphi 0, %s85
    %s88 = sphi 0, %s87
    %s102 = sphi 0, %s88
    %s106 = sphi 0, %s106
    %s108 = sphi 0, %s106
    %s109 = sphi 0, %s108
    %s123 = sphi 0, %s109
    %s127 = sphi 0, %s127
    %s129 = sphi 0, %s127
    %s130 = sphi 0, %s129
    %s144 = sphi 0, %s130
    %s148 = sphi 0, %s148
    %s150 = sphi 0, %s148
    %s151 = sphi 0, %s150
    %s165 = sphi 0, %s151
    %s169 = sphi 0, %s169
    %s171 = sphi 0, %s169
    %s172 = sphi 0, %s171
    %s186 = sphi 0, %s172
    %s194 = sphi 0, %s196
    %s197 = sphi 0, %s194
    %s198 = sphi 0, %s197
    %s214 = sphi 0, %s198
  $region4: #{gan_seg_model_forward.1} parent=0 // loop_header_branch
    %16 = sbr.rel (%p14) target = $region8
  $region5: #{gan_seg_model_forward.1} parent=0 // loop_body
    %s18 = ssub.s32 %s13, 1
    %s19 = ssub.s32 %s13, 2
    %s26 = sadd.s32 1, %s21
    %p27 = scmp.ge.s32.totalorder %s26, 4
    %s28 = scalar_select %p27, 0, %s26
    %s29 = sadd.s32 1, %s20
    %s30 = scalar_select %p27, %s29, %s20
    %p31 = scmp.ge.s32.totalorder %s30, 2
    %s32 = scalar_select %p31, 0, %s30
    %s33 = ssub.s32 %s20, %s32
    %p34 = scmp.eq.s32.totalorder %s33, 0
    %s36 = sadd.s32 %s35, 1
    %s37 = scalar_select %p34, %s35, %s36
    %p40 = pneg %p34
    %p41 = scmp.eq.s32.totalorder %s13, 7
    %p42 = por %p40, %p41
    %p43 = scmp.ne.s32.totalorder %s35, %s38
    %p44 = scmp.eq.s32.totalorder %s13, 0
    %p45 = por %p43, %p44
    %p46 = scmp.ne.s32.totalorder %s35, %s38
    %p47 = scmp.eq.s32.totalorder %s18, 7
    %p48 = por %p46, %p47
    %p49 = scmp.ne.s32.totalorder %s38, %s39
    %p50 = scmp.eq.s32.totalorder %s18, 0
    %p51 = por %p49, %p50
    %p52 = scmp.ne.s32.totalorder %s38, %s39
    %p53 = scmp.eq.s32.totalorder %s19, 7
    %p54 = por %p52, %p53
    %p56 = scmp.ne.s32.totalorder %s39, %s55
    %p57 = scmp.eq.s32.totalorder %s19, 0
    %p58 = por %p56, %p57
    %s59 = ssub.s32 %s21, %s28
    %p60 = scmp.eq.s32.totalorder %s59, 0
    %s62 = sadd.s32 %s61, 1
    %s63 = scalar_select %p60, %s61, %s62
    %p66 = pneg %p60
    %p67 = scmp.eq.s32.totalorder %s13, 7
    %p68 = por %p66, %p67
    %p69 = scmp.ne.s32.totalorder %s61, %s64
    %p70 = scmp.eq.s32.totalorder %s13, 0
    %p71 = por %p69, %p70
    %p72 = scmp.ne.s32.totalorder %s61, %s64
    %p73 = scmp.eq.s32.totalorder %s18, 7
    %p74 = por %p72, %p73
    %p75 = scmp.ne.s32.totalorder %s64, %s65
    %p76 = scmp.eq.s32.totalorder %s18, 0
    %p77 = por %p75, %p76
    %p78 = scmp.ne.s32.totalorder %s64, %s65
    %p79 = scmp.eq.s32.totalorder %s19, 7
    %p80 = por %p78, %p79
    %p82 = scmp.ne.s32.totalorder %s65, %s81
    %p83 = scmp.eq.s32.totalorder %s19, 0
    %p84 = por %p82, %p83
    %s86 = sadd.s32 %s85, 1
    %p89 = scmp.eq.s32.totalorder %s13, 7
    %p90 = scmp.ne.s32.totalorder %s85, %s87
    %p91 = scmp.eq.s32.totalorder %s13, 0
    %p92 = por %p90, %p91
    %p93 = scmp.ne.s32.totalorder %s85, %s87
    %p94 = scmp.eq.s32.totalorder %s18, 7
    %p95 = por %p93, %p94
    %p96 = scmp.ne.s32.totalorder %s87, %s88
    %p97 = scmp.eq.s32.totalorder %s18, 0
    %p98 = por %p96, %p97
    %p99 = scmp.ne.s32.totalorder %s87, %s88
    %p100 = scmp.eq.s32.totalorder %s19, 7
    %p101 = por %p99, %p100
    %p103 = scmp.ne.s32.totalorder %s88, %s102
    %p104 = scmp.eq.s32.totalorder %s19, 0
    %p105 = por %p103, %p104
    %s107 = sadd.s32 %s106, 1
    %p110 = scmp.eq.s32.totalorder %s13, 7
    %p111 = scmp.ne.s32.totalorder %s106, %s108
    %p112 = scmp.eq.s32.totalorder %s13, 0
    %p113 = por %p111, %p112
    %p114 = scmp.ne.s32.totalorder %s106, %s108
    %p115 = scmp.eq.s32.totalorder %s18, 7
    %p116 = por %p114, %p115
    %p117 = scmp.ne.s32.totalorder %s108, %s109
    %p118 = scmp.eq.s32.totalorder %s18, 0
    %p119 = por %p117, %p118
    %p120 = scmp.ne.s32.totalorder %s108, %s109
    %p121 = scmp.eq.s32.totalorder %s19, 7
    %p122 = por %p120, %p121
    %p124 = scmp.ne.s32.totalorder %s109, %s123
    %p125 = scmp.eq.s32.totalorder %s19, 0
    %p126 = por %p124, %p125
    %s128 = sadd.s32 %s127, 1
    %p131 = scmp.eq.s32.totalorder %s13, 7
    %p132 = scmp.ne.s32.totalorder %s127, %s129
    %p133 = scmp.eq.s32.totalorder %s13, 0
    %p134 = por %p132, %p133
    %p135 = scmp.ne.s32.totalorder %s127, %s129
    %p136 = scmp.eq.s32.totalorder %s18, 7
    %p137 = por %p135, %p136
    %p138 = scmp.ne.s32.totalorder %s129, %s130
    %p139 = scmp.eq.s32.totalorder %s18, 0
    %p140 = por %p138, %p139
    %p141 = scmp.ne.s32.totalorder %s129, %s130
    %p142 = scmp.eq.s32.totalorder %s19, 7
    %p143 = por %p141, %p142
    %p145 = scmp.ne.s32.totalorder %s130, %s144
    %p146 = scmp.eq.s32.totalorder %s19, 0
    %p147 = por %p145, %p146
    %s149 = sadd.s32 %s148, 1
    %p152 = scmp.eq.s32.totalorder %s13, 7
    %p153 = scmp.ne.s32.totalorder %s148, %s150
    %p154 = scmp.eq.s32.totalorder %s13, 0
    %p155 = por %p153, %p154
    %p156 = scmp.ne.s32.totalorder %s148, %s150
    %p157 = scmp.eq.s32.totalorder %s18, 7
    %p158 = por %p156, %p157
    %p159 = scmp.ne.s32.totalorder %s150, %s151
    %p160 = scmp.eq.s32.totalorder %s18, 0
    %p161 = por %p159, %p160
    %p162 = scmp.ne.s32.totalorder %s150, %s151
    %p163 = scmp.eq.s32.totalorder %s19, 7
    %p164 = por %p162, %p163
    %p166 = scmp.ne.s32.totalorder %s151, %s165
    %p167 = scmp.eq.s32.totalorder %s19, 0
    %p168 = por %p166, %p167
    %s170 = sadd.s32 %s169, 1
    %p173 = scmp.eq.s32.totalorder %s13, 7
    %p174 = scmp.ne.s32.totalorder %s169, %s171
    %p175 = scmp.eq.s32.totalorder %s13, 0
    %p176 = por %p174, %p175
    %p177 = scmp.ne.s32.totalorder %s169, %s171
    %p178 = scmp.eq.s32.totalorder %s18, 7
    %p179 = por %p177, %p178
    %p180 = scmp.ne.s32.totalorder %s171, %s172
    %p181 = scmp.eq.s32.totalorder %s18, 0
    %p182 = por %p180, %p181
    %p183 = scmp.ne.s32.totalorder %s171, %s172
    %p184 = scmp.eq.s32.totalorder %s19, 7
    %p185 = por %p183, %p184
    %p187 = scmp.ne.s32.totalorder %s172, %s186
    %p188 = scmp.eq.s32.totalorder %s19, 0
    %p189 = por %p187, %p188
    %s190 = ssub.s32 %s20, %s32
    %s191 = ssub.s32 %s21, %s28
    %s192 = sor.u32 %s190, %s191
    %p193 = scmp.eq.s32.totalorder %s192, 0
    %s195 = sadd.s32 %s194, 1
    %s196 = scalar_select %p193, %s194, %s195
    %p199 = pneg %p193
    %p200 = scmp.eq.s32.totalorder %s13, 7
    %p201 = por %p199, %p200
    %p202 = scmp.ne.s32.totalorder %s194, %s197
    %p203 = scmp.eq.s32.totalorder %s13, 0
    %p204 = por %p202, %p203
    %p205 = scmp.ne.s32.totalorder %s194, %s197
    %p206 = scmp.eq.s32.totalorder %s18, 7
    %p207 = por %p205, %p206
    %p208 = scmp.ne.s32.totalorder %s197, %s198
    %p209 = scmp.eq.s32.totalorder %s18, 0
    %p210 = por %p208, %p209
    %p211 = scmp.ne.s32.totalorder %s197, %s198
    %p212 = scmp.eq.s32.totalorder %s19, 7
    %p213 = por %p211, %p212
    %p215 = scmp.ne.s32.totalorder %s198, %s214
    %p216 = scmp.eq.s32.totalorder %s19, 0
    %p217 = por %p215, %p216
    %p218 = scmp.le.s32.totalorder 1, %s13
    %p219 = scmp.lt.s32.totalorder %s13, 9
    %p220 = pnand %p218, %p219
    %p221 = pneg %p220
    // Predicated region
    $region9: #{gan_seg_model_forward.1} parent=5 // pred_check
      _
    $region10: #{gan_seg_model_forward.1} parent=5 // pred_check_branch
      %223 = sbr.rel (%p220) target = $region12
    $region11: #{gan_seg_model_forward.1} parent=5 // pred_region
      %s224 = ssub.s32 %s13, 1
      // Predicated region
      $region13: #{gan_seg_model_forward.1} parent=11 // pred_check
        %p225 = pneg %p98
      $region14: #{gan_seg_model_forward.1} parent=11 // pred_check_branch
        %227 = sbr.rel (%p225) target = $region16
      $region15: #{gan_seg_model_forward.1} parent=11 // pred_region
        _
      $region16: #{gan_seg_model_forward.1} parent=11 // pred_fallthru
        _
      // Predicated region
      $region17: #{gan_seg_model_forward.1} parent=11 // pred_check
        %p228 = pneg %p119
      $region18: #{gan_seg_model_forward.1} parent=11 // pred_check_branch
        %230 = sbr.rel (%p228) target = $region20
      $region19: #{gan_seg_model_forward.1} parent=11 // pred_region
        _
      $region20: #{gan_seg_model_forward.1} parent=11 // pred_fallthru
        _
      // Predicated region
      $region21: #{gan_seg_model_forward.1} parent=11 // pred_check
        %p231 = pneg %p140
      $region22: #{gan_seg_model_forward.1} parent=11 // pred_check_branch
        %233 = sbr.rel (%p231) target = $region24
      $region23: #{gan_seg_model_forward.1} parent=11 // pred_region
        _
      $region24: #{gan_seg_model_forward.1} parent=11 // pred_fallthru
        _
      // Predicated region
      $region25: #{gan_seg_model_forward.1} parent=11 // pred_check
        %p234 = pneg %p161
      $region26: #{gan_seg_model_forward.1} parent=11 // pred_check_branch
        %236 = sbr.rel (%p234) target = $region28
      $region27: #{gan_seg_model_forward.1} parent=11 // pred_region
        _
      $region28: #{gan_seg_model_forward.1} parent=11 // pred_fallthru
        _
      // Predicated region
      $region29: #{gan_seg_model_forward.1} parent=11 // pred_check
        %p237 = pneg %p182
      $region30: #{gan_seg_model_forward.1} parent=11 // pred_check_branch
        %239 = sbr.rel (%p237) target = $region32
      $region31: #{gan_seg_model_forward.1} parent=11 // pred_region
        _
      $region32: #{gan_seg_model_forward.1} parent=11 // pred_fallthru
        _
    $region12: #{gan_seg_model_forward.1} parent=5 // pred_fallthru
      _
    %p240 = scmp.lt.s32.totalorder %s13, 8
    // Predicated region
    $region33: #{gan_seg_model_forward.1} parent=5 // pred_check
      %p241 = pneg %p240
    $region34: #{gan_seg_model_forward.1} parent=5 // pred_check_branch
      %243 = sbr.rel (%p241) target = $region36
    $region35: #{gan_seg_model_forward.1} parent=5 // pred_region
      // Predicated region
      $region37: #{gan_seg_model_forward.1} parent=35 // pred_check
        %p244 = pneg %p45
      $region38: #{gan_seg_model_forward.1} parent=35 // pred_check_branch
        %246 = sbr.rel (%p244) target = $region40
      $region39: #{gan_seg_model_forward.1} parent=35 // pred_region
        %p247 = scmp.lt.s32.totalorder %s20, 1
        %s248 = scalar_select %p247, %s20, 1
        %s249 = smul.addr %s248, 8
        %s250 = smul.addr %s249, 8
        %s251 = scalar_lea.vmem %s0, %s250
      $region40: #{gan_seg_model_forward.1} parent=35 // pred_fallthru
        _
      // Predicated region
      $region41: #{gan_seg_model_forward.1} parent=35 // pred_check
        %p252 = pneg %p71
      $region42: #{gan_seg_model_forward.1} parent=35 // pred_check_branch
        %254 = sbr.rel (%p252) target = $region44
      $region43: #{gan_seg_model_forward.1} parent=35 // pred_region
        %p255 = scmp.lt.s32.totalorder %s21, 3
        %s256 = scalar_select %p255, %s21, 3
        %s257 = smul.addr %s256, 3
        %s258 = smul.addr %s257, 8
        %s259 = scalar_lea.vmem %s1, %s258
      $region44: #{gan_seg_model_forward.1} parent=35 // pred_fallthru
        _
    $region36: #{gan_seg_model_forward.1} parent=5 // pred_fallthru
      _
    %p260 = scmp.le.s32.totalorder 1, %s13
    %p261 = scmp.lt.s32.totalorder %s13, 9
    %p262 = pnand %p260, %p261
    %p263 = pneg %p262
    // Predicated region
    $region45: #{gan_seg_model_forward.1} parent=5 // pred_check
      _
    $region46: #{gan_seg_model_forward.1} parent=5 // pred_check_branch
      %265 = sbr.rel (%p262) target = $region48
    $region47: #{gan_seg_model_forward.1} parent=5 // pred_region
      %s266 = ssub.s32 %s13, 1
      %p267 = scmp.lt.s32.totalorder %s22, 1
      %s268 = scalar_select %p267, %s22, 1
      %s269 = smul.addr %s268, 8
      %s270 = smul.addr %s269, 8
      %s271 = scalar_lea.vmem %s0, %s270
      %p272 = pneg %p51
      %p273 = pneg %p48
      %p274 = scmp.lt.s32.totalorder %s23, 3
      %s275 = scalar_select %p274, %s23, 3
      %s276 = smul.addr %s275, 3
      %s277 = smul.addr %s276, 8
      %s278 = scalar_lea.vmem %s1, %s277
      %p279 = pneg %p77
      %p280 = pneg %p74
      %p281 = pneg %p98
      %p282 = pneg %p95
      %p283 = pneg %p119
      %p284 = pneg %p116
      %p285 = pneg %p140
      %p286 = pneg %p137
      %p287 = pneg %p161
      %p288 = pneg %p158
      %p289 = pneg %p182
      %p290 = pneg %p179
      %p291 = pneg %p210
      %p292 = pneg %p207
      %s293 = smul.u32 8, %s23
      %p294 = scmp.lt.s32.totalorder %s22, 1
      %s295 = scalar_select %p294, %s22, 1
      %p296 = scmp.lt.s32.totalorder %s293, 31
      %s297 = scalar_select %p296, %s293, 31
      %s298 = smul.addr %s295, 32
      %s299 = sadd.s32 %s297, %s298
      %s300 = smul.addr %s299, 4
      %s301 = scalar_lea.vmem %s7, %s300
      %p302 = scmp.lt.s32.totalorder %s22, 1
      %s303 = scalar_select %p302, %s22, 1
      %s304 = smul.addr %s303, 8
      %s305 = smul.addr %s304, 8
      %s306 = scalar_lea.vmem %s0, %s305
      %p307 = scmp.lt.s32.totalorder %s23, 3
      %s308 = scalar_select %p307, %s23, 3
      %s309 = smul.addr %s308, 3
      %s310 = smul.addr %s309, 8
      %s311 = scalar_lea.vmem %s1, %s310
      %s312 = smul.u32 8, %s23
      %p313 = scmp.lt.s32.totalorder %s22, 1
      %s314 = scalar_select %p313, %s22, 1
      %p315 = scmp.lt.s32.totalorder %s312, 31
      %s316 = scalar_select %p315, %s312, 31
      %s317 = smul.addr %s314, 32
      %s318 = sadd.s32 %s316, %s317
      %s319 = smul.addr %s318, 4
      %s320 = scalar_lea.vmem %s7, %s319
      %s321 = smul.u32 8, %s23
      %v323 = vld [vmem:[%s311] sm:$0xff]
      %v324 = vld [vmem:[%s311 + $0x8] sm:$0xff]
      %v325 = vld [vmem:[%s311 + $0x10] sm:$0x3]
      %v326 = vld [vmem:[%s306] sm:$0xff]
      %v327 = vld [vmem:[%s306 + $0x8] sm:$0xff]
      %vm328 = vcmask 130048
      %v330 = vsel %vm328, %v323, 0
      %v333 = vsel %vm328, %v324, 0
      %v336 = vsel %vm328, %v325, 0
      %338 = vmatpush.msra.mxu0 0.0
      %339 = vmatpush.msra.mxu0 0.0
      %340 = vmatpush.msra.mxu0 0.0
      %341 = vmatpush.msra.mxu0 0.0
      %342 = vmatpush.msra.mxu0 0.0
      %343 = vmatpush.msra.mxu0 0.0
      %344 = vmatpush.msra.mxu0 0.0
      %345 = vmatpush.msra.mxu0 0.0
      %346 = vmatpush.msra.mxu0 0.0
      %347 = vmatpush.msra.mxu0 0.0
      %348 = vmatpush.msra.mxu0 0.0
      %349 = vmatpush.msra.mxu0 0.0
      %350 = vmatpush.msra.mxu0 0.0
      %351 = vmatpush.msra.mxu0 0.0
      %352 = vmatpush.msra.mxu0 %v327
      %353 = vmatpush.msra.mxu0 %v326
      %354 = vmatmul.f32.gmra.mxu0 %v330
      %v355 = vpop.f32.mrf.mxu0
      %v356 = vadd.f32 0.0, %v355
      %357 = vmatmul.f32.gmra.mxu0 %v333
      %v358 = vpop.f32.mrf.mxu0
      %v359 = vadd.f32 0.0, %v358
      %360 = vmatmul.f32.gmra.mxu0 %v336
      %v361 = vpop.f32.mrf.mxu0
      %v362 = vadd.f32 0.0, %v361
      %363 = vdwg.mxu0
      %s364 = scalar_lea.vmem %s306, 16
      %v365 = vld [vmem:[%s364] sm:$0xff]
      %v366 = vld [vmem:[%s364 + $0x8] sm:$0xff]
      %367 = vmatpush.msra.mxu0 0.0
      %368 = vmatpush.msra.mxu0 0.0
      %369 = vmatpush.msra.mxu0 0.0
      %370 = vmatpush.msra.mxu0 0.0
      %371 = vmatpush.msra.mxu0 0.0
      %372 = vmatpush.msra.mxu0 0.0
      %373 = vmatpush.msra.mxu0 0.0
      %374 = vmatpush.msra.mxu0 0.0
      %375 = vmatpush.msra.mxu0 0.0
      %376 = vmatpush.msra.mxu0 0.0
      %377 = vmatpush.msra.mxu0 0.0
      %378 = vmatpush.msra.mxu0 0.0
      %379 = vmatpush.msra.mxu0 0.0
      %380 = vmatpush.msra.mxu0 0.0
      %381 = vmatpush.msra.mxu0 %v366
      %382 = vmatpush.msra.mxu0 %v365
      %383 = vmatmul.f32.gmra.mxu0 %v330
      %v384 = vpop.f32.mrf.mxu0
      %v385 = vadd.f32 0.0, %v384
      %386 = vmatmul.f32.gmra.mxu0 %v333
      %v387 = vpop.f32.mrf.mxu0
      %v388 = vadd.f32 0.0, %v387
      %389 = vmatmul.f32.gmra.mxu0 %v336
      %v390 = vpop.f32.mrf.mxu0
      %v391 = vadd.f32 0.0, %v390
      %392 = vdwg.mxu0
      %s393 = scalar_lea.vmem %s306, 32
      %v394 = vld [vmem:[%s393] sm:$0xff]
      %v395 = vld [vmem:[%s393 + $0x8] sm:$0xff]
      %396 = vmatpush.msra.mxu0 0.0
      %397 = vmatpush.msra.mxu0 0.0
      %398 = vmatpush.msra.mxu0 0.0
      %399 = vmatpush.msra.mxu0 0.0
      %400 = vmatpush.msra.mxu0 0.0
      %401 = vmatpush.msra.mxu0 0.0
      %402 = vmatpush.msra.mxu0 0.0
      %403 = vmatpush.msra.mxu0 0.0
      %404 = vmatpush.msra.mxu0 0.0
      %405 = vmatpush.msra.mxu0 0.0
      %406 = vmatpush.msra.mxu0 0.0
      %407 = vmatpush.msra.mxu0 0.0
      %408 = vmatpush.msra.mxu0 0.0
      %409 = vmatpush.msra.mxu0 0.0
      %410 = vmatpush.msra.mxu0 %v395
      %411 = vmatpush.msra.mxu0 %v394
      %412 = vmatmul.f32.gmra.mxu0 %v330
      %v413 = vpop.f32.mrf.mxu0
      %v414 = vadd.f32 0.0, %v413
      %415 = vmatmul.f32.gmra.mxu0 %v333
      %v416 = vpop.f32.mrf.mxu0
      %v417 = vadd.f32 0.0, %v416
      %418 = vmatmul.f32.gmra.mxu0 %v336
      %v419 = vpop.f32.mrf.mxu0
      %v420 = vadd.f32 0.0, %v419
      %421 = vdwg.mxu0
      %s422 = scalar_lea.vmem %s306, 48
      %v423 = vld [vmem:[%s422] sm:$0xff]
      %v424 = vld [vmem:[%s422 + $0x8] sm:$0xff]
      %425 = vmatpush.msra.mxu0 0.0
      %426 = vmatpush.msra.mxu0 0.0
      %427 = vmatpush.msra.mxu0 0.0
      %428 = vmatpush.msra.mxu0 0.0
      %429 = vmatpush.msra.mxu0 0.0
      %430 = vmatpush.msra.mxu0 0.0
      %431 = vmatpush.msra.mxu0 0.0
      %432 = vmatpush.msra.mxu0 0.0
      %433 = vmatpush.msra.mxu0 0.0
      %434 = vmatpush.msra.mxu0 0.0
      %435 = vmatpush.msra.mxu0 0.0
      %436 = vmatpush.msra.mxu0 0.0
      %437 = vmatpush.msra.mxu0 0.0
      %438 = vmatpush.msra.mxu0 0.0
      %439 = vmatpush.msra.mxu0 %v424
      %440 = vmatpush.msra.mxu0 %v423
      %441 = vmatmul.f32.gmra.mxu0 %v330
      %v442 = vpop.f32.mrf.mxu0
      %v443 = vadd.f32 0.0, %v442
      %444 = vmatmul.f32.gmra.mxu0 %v333
      %v445 = vpop.f32.mrf.mxu0
      %v446 = vadd.f32 0.0, %v445
      %447 = vmatmul.f32.gmra.mxu0 %v336
      %v448 = vpop.f32.mrf.mxu0
      %v449 = vadd.f32 0.0, %v448
      %450 = vdwg.mxu0
      %vm454 = vcmask 1041408
      %v455 = vrot.slane %v385, 6
      %v456 = vrot.slane %v388, 6
      %v457 = vsel %vm454, %v455, %v456
      %v458 = vrot.slane %v391, 6
      %v459 = vsel %vm454, %v456, %v458
      %vm465 = vcmask 1043456
      %v466 = vrot.slane %v414, 4
      %v467 = vrot.slane %v417, 4
      %v468 = vsel %vm465, %v466, %v467
      %v469 = vrot.slane %v420, 4
      %v470 = vsel %vm465, %v467, %v469
      %vm476 = vcmask 1045504
      %v477 = vrot.slane %v443, 2
      %v478 = vrot.slane %v446, 2
      %v479 = vsel %vm476, %v477, %v478
      %v480 = vrot.slane %v449, 2
      %v481 = vsel %vm476, %v478, %v480
      %v483 = vsel %vm454, %v362, %v455
      %v484 = vsel %vm465, %v459, %v466
      %v485 = vsel %vm476, %v470, %v477
      %v486 = vld [vmem:[%s2] sm:$0xff]
      %v487 = vld [vmem:[%s2 + $0x8] sm:$0xff]
      %v489 = vsel %vm328, %v356, 0
      %v492 = vsel %vm328, %v359, 0
      %v495 = vsel %vm328, %v483, 0
      %v497 = vsel %vm328, %v457, 0
      %v500 = vsel %vm328, %v484, 0
      %v502 = vsel %vm328, %v468, 0
      %v505 = vsel %vm328, %v485, 0
      %v507 = vsel %vm328, %v479, 0
      %v509 = vsel %vm328, %v481, 0
      %511 = vmatpush.msra.mxu0 0.0
      %512 = vmatpush.msra.mxu0 0.0
      %513 = vmatpush.msra.mxu0 0.0
      %514 = vmatpush.msra.mxu0 0.0
      %515 = vmatpush.msra.mxu0 0.0
      %516 = vmatpush.msra.mxu0 0.0
      %517 = vmatpush.msra.mxu0 0.0
      %518 = vmatpush.msra.mxu0 0.0
      %519 = vmatpush.msra.mxu0 0.0
      %520 = vmatpush.msra.mxu0 0.0
      %521 = vmatpush.msra.mxu0 0.0
      %522 = vmatpush.msra.mxu0 0.0
      %523 = vmatpush.msra.mxu0 0.0
      %524 = vmatpush.msra.mxu0 0.0
      %525 = vmatpush.msra.mxu0 %v487
      %526 = vmatpush.msra.mxu0 %v486
      %527 = vmatmul.f32.gmra.mxu0 %v489
      %v528 = vpop.f32.mrf.mxu0
      %v529 = vadd.f32 0.0, %v528
      %530 = vmatmul.f32.gmra.mxu0 %v492
      %v531 = vpop.f32.mrf.mxu0
      %v532 = vadd.f32 0.0, %v531
      %533 = vmatmul.f32.gmra.mxu0 %v495
      %v534 = vpop.f32.mrf.mxu0
      %v535 = vadd.f32 0.0, %v534
      %536 = vmatmul.f32.gmra.mxu0 %v497
      %v537 = vpop.f32.mrf.mxu0
      %v538 = vadd.f32 0.0, %v537
      %539 = vmatmul.f32.gmra.mxu0 %v500
      %v540 = vpop.f32.mrf.mxu0
      %v541 = vadd.f32 0.0, %v540
      %542 = vmatmul.f32.gmra.mxu0 %v502
      %v543 = vpop.f32.mrf.mxu0
      %v544 = vadd.f32 0.0, %v543
      %545 = vmatmul.f32.gmra.mxu0 %v505
      %v546 = vpop.f32.mrf.mxu0
      %v547 = vadd.f32 0.0, %v546
      %548 = vmatmul.f32.gmra.mxu0 %v507
      %v549 = vpop.f32.mrf.mxu0
      %v550 = vadd.f32 0.0, %v549
      %551 = vmatmul.f32.gmra.mxu0 %v509
      %v552 = vpop.f32.mrf.mxu0
      %v553 = vadd.f32 0.0, %v552
      %554 = vdwg.mxu0
      %vm555 = vcmask 516096
      %556 = vst.msk [vmem:[#allocation2 + $0x4] sm:$0x1] %vm555, %v529
      %v558 = vrot.slane %v529, 5
      %v559 = vrot.slane %v558, 4
      %560 = vrot.lane.b32.xlu0 %v559, 64
      %v561 = vpop.permute.xlu0 %560
      %vm563 = vcmask 1040896
      %564 = vst.msk [vmem:[#allocation2 + $0x4] sm:$0x1] %vm563, %v561
      %v565 = vrot.slane %v529, 6
      %v566 = vrot.slane %v565, 4
      %568 = vst.msk [vmem:[#allocation2 + $0x8] sm:$0x1] %vm555, %v566
      %v569 = vrot.slane %v529, 7
      %v570 = vrot.slane %v569, 4
      %571 = vrot.lane.b32.xlu0 %v570, 64
      %v572 = vpop.permute.xlu0 %571
      %574 = vst.msk [vmem:[#allocation2 + $0x8] sm:$0x1] %vm563, %v572
      %575 = vst.sshfl [vmem:[#allocation1] sm:$0xff pattern:$0x75316420] %v529
      %s576 = scalar_lea.vmem [#allocation1], 1
      %v577 = vld [vmem:[%s576] ss:$2 sm:$0xff]
      %579 = vst.msk [vmem:[#allocation2 + $0xc] sm:$0x1] %vm555, %v577
      %580 = vst.sshfl [vmem:[#allocation1] sm:$0xff pattern:$0x75316420] %v529
      %s581 = scalar_lea.vmem [#allocation1], 1
      %v582 = vld [vmem:[%s581] ss:$2 sm:$0xff]
      %v583 = vrot.slane %v582, 5
      %v584 = vrot.slane %v583, 4
      %585 = vrot.lane.b32.xlu0 %v584, 64
      %v586 = vpop.permute.xlu0 %585
      %588 = vst.msk [vmem:[#allocation2 + $0xc] sm:$0x1] %vm563, %v586
      %589 = vst.sshfl [vmem:[#allocation1] sm:$0xff pattern:$0x75316420] %v529
      %s590 = scalar_lea.vmem [#allocation1], 1
      %v591 = vld [vmem:[%s590] ss:$2 sm:$0xff]
      %v592 = vrot.slane %v591, 6
      %v593 = vrot.slane %v592, 4
      %595 = vst.msk [vmem:[#allocation2 + $0x10] sm:$0x1] %vm555, %v593
      %596 = vst.sshfl [vmem:[#allocation1] sm:$0xff pattern:$0x75316420] %v529
      %s597 = scalar_lea.vmem [#allocation1], 1
      %v598 = vld [vmem:[%s597] ss:$2 sm:$0xff]
      %v599 = vrot.slane %v598, 7
      %v600 = vrot.slane %v599, 4
      %601 = vrot.lane.b32.xlu0 %v600, 64
      %v602 = vpop.permute.xlu0 %601
      %604 = vst.msk [vmem:[#allocation2 + $0x10] sm:$0x1] %vm563, %v602
      %605 = vst.msk [vmem:[#allocation2 + $0x14] sm:$0x1] %vm555, %v532
      %v607 = vrot.slane %v532, 5
      %v608 = vrot.slane %v607, 4
      %609 = vrot.lane.b32.xlu0 %v608, 64
      %v610 = vpop.permute.xlu0 %609
      %612 = vst.msk [vmem:[#allocation2 + $0x14] sm:$0x1] %vm563, %v610
      %v613 = vrot.slane %v532, 6
      %v614 = vrot.slane %v613, 4
      %616 = vst.msk [vmem:[#allocation2 + $0x18] sm:$0x1] %vm555, %v614
      %v617 = vrot.slane %v532, 7
      %v618 = vrot.slane %v617, 4
      %619 = vrot.lane.b32.xlu0 %v618, 64
      %v620 = vpop.permute.xlu0 %619
      %622 = vst.msk [vmem:[#allocation2 + $0x18] sm:$0x1] %vm563, %v620
      %623 = vst.sshfl [vmem:[#allocation1] sm:$0xff pattern:$0x75316420] %v532
      %s624 = scalar_lea.vmem [#allocation1], 1
      %v625 = vld [vmem:[%s624] ss:$2 sm:$0xff]
      %627 = vst.msk [vmem:[#allocation2 + $0x1c] sm:$0x1] %vm555, %v625
      %628 = vst.sshfl [vmem:[#allocation1] sm:$0xff pattern:$0x75316420] %v532
      %s629 = scalar_lea.vmem [#allocation1], 1
      %v630 = vld [vmem:[%s629] ss:$2 sm:$0xff]
      %v631 = vrot.slane %v630, 5
      %v632 = vrot.slane %v631, 4
      %633 = vrot.lane.b32.xlu0 %v632, 64
      %v634 = vpop.permute.xlu0 %633
      %636 = vst.msk [vmem:[#allocation2 + $0x1c] sm:$0x1] %vm563, %v634
      %637 = vst.sshfl [vmem:[#allocation1] sm:$0xff pattern:$0x75316420] %v532
      %s638 = scalar_lea.vmem [#allocation1], 1
      %v639 = vld [vmem:[%s638] ss:$2 sm:$0xff]
      %v640 = vrot.slane %v639, 6
      %v641 = vrot.slane %v640, 4
      %643 = vst.msk [vmem:[#allocation2 + $0x20] sm:$0x1] %vm555, %v641
      %644 = vst.sshfl [vmem:[#allocation1] sm:$0xff pattern:$0x75316420] %v532
      %s645 = scalar_lea.vmem [#allocation1], 1
      %v646 = vld [vmem:[%s645] ss:$2 sm:$0xff]
      %v647 = vrot.slane %v646, 7
      %v648 = vrot.slane %v647, 4
      %649 = vrot.lane.b32.xlu0 %v648, 64
      %v650 = vpop.permute.xlu0 %649
      %652 = vst.msk [vmem:[#allocation2 + $0x20] sm:$0x1] %vm563, %v650
      %653 = vst.msk [vmem:[#allocation2 + $0x24] sm:$0x1] %vm555, %v535
      %v655 = vrot.slane %v535, 5
      %v656 = vrot.slane %v655, 4
      %657 = vrot.lane.b32.xlu0 %v656, 64
      %v658 = vpop.permute.xlu0 %657
      %660 = vst.msk [vmem:[#allocation2 + $0x24] sm:$0x1] %vm563, %v658
      %v661 = vrot.slane %v535, 6
      %v662 = vrot.slane %v661, 4
      %664 = vst.msk [vmem:[#allocation2 + $0x5] sm:$0x1] %vm555, %v662
      %v665 = vrot.slane %v535, 7
      %v666 = vrot.slane %v665, 4
      %667 = vrot.lane.b32.xlu0 %v666, 64
      %v668 = vpop.permute.xlu0 %667
      %670 = vst.msk [vmem:[#allocation2 + $0x5] sm:$0x1] %vm563, %v668
      %671 = vst.sshfl [vmem:[#allocation1] sm:$0xff pattern:$0x75316420] %v535
      %s672 = scalar_lea.vmem [#allocation1], 1
      %v673 = vld [vmem:[%s672] ss:$2 sm:$0xff]
      %675 = vst.msk [vmem:[#allocation2 + $0x9] sm:$0x1] %vm555, %v673
      %676 = vst.sshfl [vmem:[#allocation1] sm:$0xff pattern:$0x75316420] %v535
      %s677 = scalar_lea.vmem [#allocation1], 1
      %v678 = vld [vmem:[%s677] ss:$2 sm:$0xff]
      %v679 = vrot.slane %v678, 5
      %v680 = vrot.slane %v679, 4
      %681 = vrot.lane.b32.xlu0 %v680, 64
      %v682 = vpop.permute.xlu0 %681
      %684 = vst.msk [vmem:[#allocation2 + $0x9] sm:$0x1] %vm563, %v682
      %685 = vst.sshfl [vmem:[#allocation1] sm:$0xff pattern:$0x75316420] %v535
      %s686 = scalar_lea.vmem [#allocation1], 1
      %v687 = vld [vmem:[%s686] ss:$2 sm:$0xff]
      %v688 = vrot.slane %v687, 6
      %v689 = vrot.slane %v688, 4
      %691 = vst.msk [vmem:[#allocation2 + $0xd] sm:$0x1] %vm555, %v689
      %692 = vst.sshfl [vmem:[#allocation1] sm:$0xff pattern:$0x75316420] %v535
      %s693 = scalar_lea.vmem [#allocation1], 1
      %v694 = vld [vmem:[%s693] ss:$2 sm:$0xff]
      %v695 = vrot.slane %v694, 7
      %v696 = vrot.slane %v695, 4
      %697 = vrot.lane.b32.xlu0 %v696, 64
      %v698 = vpop.permute.xlu0 %697
      %700 = vst.msk [vmem:[#allocation2 + $0xd] sm:$0x1] %vm563, %v698
      %701 = vst.msk [vmem:[#allocation2 + $0x11] sm:$0x1] %vm555, %v538
      %v703 = vrot.slane %v538, 5
      %v704 = vrot.slane %v703, 4
      %705 = vrot.lane.b32.xlu0 %v704, 64
      %v706 = vpop.permute.xlu0 %705
      %708 = vst.msk [vmem:[#allocation2 + $0x11] sm:$0x1] %vm563, %v706
      %v709 = vrot.slane %v538, 6
      %v710 = vrot.slane %v709, 4
      %712 = vst.msk [vmem:[#allocation2 + $0x15] sm:$0x1] %vm555, %v710
      %v713 = vrot.slane %v538, 7
      %v714 = vrot.slane %v713, 4
      %715 = vrot.lane.b32.xlu0 %v714, 64
      %v716 = vpop.permute.xlu0 %715
      %718 = vst.msk [vmem:[#allocation2 + $0x15] sm:$0x1] %vm563, %v716
      %719 = vst.sshfl [vmem:[#allocation1] sm:$0xff pattern:$0x75316420] %v538
      %s720 = scalar_lea.vmem [#allocation1], 1
      %v721 = vld [vmem:[%s720] ss:$2 sm:$0xff]
      %723 = vst.msk [vmem:[#allocation2 + $0x19] sm:$0x1] %vm555, %v721
      %724 = vst.sshfl [vmem:[#allocation1] sm:$0xff pattern:$0x75316420] %v538
      %s725 = scalar_lea.vmem [#allocation1], 1
      %v726 = vld [vmem:[%s725] ss:$2 sm:$0xff]
      %v727 = vrot.slane %v726, 5
      %v728 = vrot.slane %v727, 4
      %729 = vrot.lane.b32.xlu0 %v728, 64
      %v730 = vpop.permute.xlu0 %729
      %732 = vst.msk [vmem:[#allocation2 + $0x19] sm:$0x1] %vm563, %v730
      %733 = vst.sshfl [vmem:[#allocation1] sm:$0xff pattern:$0x75316420] %v538
      %s734 = scalar_lea.vmem [#allocation1], 1
      %v735 = vld [vmem:[%s734] ss:$2 sm:$0xff]
      %v736 = vrot.slane %v735, 6
      %v737 = vrot.slane %v736, 4
      %739 = vst.msk [vmem:[#allocation2 + $0x1d] sm:$0x1] %vm555, %v737
      %740 = vst.sshfl [vmem:[#allocation1] sm:$0xff pattern:$0x75316420] %v538
      %s741 = scalar_lea.vmem [#allocation1], 1
      %v742 = vld [vmem:[%s741] ss:$2 sm:$0xff]
      %v743 = vrot.slane %v742, 7
      %v744 = vrot.slane %v743, 4
      %745 = vrot.lane.b32.xlu0 %v744, 64
      %v746 = vpop.permute.xlu0 %745
      %748 = vst.msk [vmem:[#allocation2 + $0x1d] sm:$0x1] %vm563, %v746
      %749 = vst.msk [vmem:[#allocation2 + $0x21] sm:$0x1] %vm555, %v541
      %v751 = vrot.slane %v541, 5
      %v752 = vrot.slane %v751, 4
      %753 = vrot.lane.b32.xlu0 %v752, 64
      %v754 = vpop.permute.xlu0 %753
      %756 = vst.msk [vmem:[#allocation2 + $0x21] sm:$0x1] %vm563, %v754
      %v757 = vrot.slane %v541, 6
      %v758 = vrot.slane %v757, 4
      %760 = vst.msk [vmem:[#allocation2 + $0x25] sm:$0x1] %vm555, %v758
      %v761 = vrot.slane %v541, 7
      %v762 = vrot.slane %v761, 4
      %763 = vrot.lane.b32.xlu0 %v762, 64
      %v764 = vpop.permute.xlu0 %763
      %766 = vst.msk [vmem:[#allocation2 + $0x25] sm:$0x1] %vm563, %v764
      %767 = vst.sshfl [vmem:[#allocation1] sm:$0xff pattern:$0x75316420] %v541
      %s768 = scalar_lea.vmem [#allocation1], 1
      %v769 = vld [vmem:[%s768] ss:$2 sm:$0xff]
      %771 = vst.msk [vmem:[#allocation2 + $0x6] sm:$0x1] %vm555, %v769
      %772 = vst.sshfl [vmem:[#allocation1] sm:$0xff pattern:$0x75316420] %v541
      %s773 = scalar_lea.vmem [#allocation1], 1
      %v774 = vld [vmem:[%s773] ss:$2 sm:$0xff]
      %v775 = vrot.slane %v774, 5
      %v776 = vrot.slane %v775, 4
      %777 = vrot.lane.b32.xlu0 %v776, 64
      %v778 = vpop.permute.xlu0 %777
      %780 = vst.msk [vmem:[#allocation2 + $0x6] sm:$0x1] %vm563, %v778
      %781 = vst.sshfl [vmem:[#allocation1] sm:$0xff pattern:$0x75316420] %v541
      %s782 = scalar_lea.vmem [#allocation1], 1
      %v783 = vld [vmem:[%s782] ss:$2 sm:$0xff]
      %v784 = vrot.slane %v783, 6
      %v785 = vrot.slane %v784, 4
      %787 = vst.msk [vmem:[#allocation2 + $0xa] sm:$0x1] %vm555, %v785
      %788 = vst.sshfl [vmem:[#allocation1] sm:$0xff pattern:$0x75316420] %v541
      %s789 = scalar_lea.vmem [#allocation1], 1
      %v790 = vld [vmem:[%s789] ss:$2 sm:$0xff]
      %v791 = vrot.slane %v790, 7
      %v792 = vrot.slane %v791, 4
      %793 = vrot.lane.b32.xlu0 %v792, 64
      %v794 = vpop.permute.xlu0 %793
      %796 = vst.msk [vmem:[#allocation2 + $0xa] sm:$0x1] %vm563, %v794
      %797 = vst.msk [vmem:[#allocation2 + $0xe] sm:$0x1] %vm555, %v544
      %v799 = vrot.slane %v544, 5
      %v800 = vrot.slane %v799, 4
      %801 = vrot.lane.b32.xlu0 %v800, 64
      %v802 = vpop.permute.xlu0 %801
      %804 = vst.msk [vmem:[#allocation2 + $0xe] sm:$0x1] %vm563, %v802
      %v805 = vrot.slane %v544, 6
      %v806 = vrot.slane %v805, 4
      %808 = vst.msk [vmem:[#allocation2 + $0x12] sm:$0x1] %vm555, %v806
      %v809 = vrot.slane %v544, 7
      %v810 = vrot.slane %v809, 4
      %811 = vrot.lane.b32.xlu0 %v810, 64
      %v812 = vpop.permute.xlu0 %811
      %814 = vst.msk [vmem:[#allocation2 + $0x12] sm:$0x1] %vm563, %v812
      %815 = vst.sshfl [vmem:[#allocation1] sm:$0xff pattern:$0x75316420] %v544
      %s816 = scalar_lea.vmem [#allocation1], 1
      %v817 = vld [vmem:[%s816] ss:$2 sm:$0xff]
      %819 = vst.msk [vmem:[#allocation2 + $0x16] sm:$0x1] %vm555, %v817
      %820 = vst.sshfl [vmem:[#allocation1] sm:$0xff pattern:$0x75316420] %v544
      %s821 = scalar_lea.vmem [#allocation1], 1
      %v822 = vld [vmem:[%s821] ss:$2 sm:$0xff]
      %v823 = vrot.slane %v822, 5
      %v824 = vrot.slane %v823, 4
      %825 = vrot.lane.b32.xlu0 %v824, 64
      %v826 = vpop.permute.xlu0 %825
      %828 = vst.msk [vmem:[#allocation2 + $0x16] sm:$0x1] %vm563, %v826
      %829 = vst.sshfl [vmem:[#allocation1] sm:$0xff pattern:$0x75316420] %v544
      %s830 = scalar_lea.vmem [#allocation1], 1
      %v831 = vld [vmem:[%s830] ss:$2 sm:$0xff]
      %v832 = vrot.slane %v831, 6
      %v833 = vrot.slane %v832, 4
      %835 = vst.msk [vmem:[#allocation2 + $0x1a] sm:$0x1] %vm555, %v833
      %836 = vst.sshfl [vmem:[#allocation1] sm:$0xff pattern:$0x75316420] %v544
      %s837 = scalar_lea.vmem [#allocation1], 1
      %v838 = vld [vmem:[%s837] ss:$2 sm:$0xff]
      %v839 = vrot.slane %v838, 7
      %v840 = vrot.slane %v839, 4
      %841 = vrot.lane.b32.xlu0 %v840, 64
      %v842 = vpop.permute.xlu0 %841
      %844 = vst.msk [vmem:[#allocation2 + $0x1a] sm:$0x1] %vm563, %v842
      %845 = vst.msk [vmem:[#allocation2 + $0x1e] sm:$0x1] %vm555, %v547
      %v847 = vrot.slane %v547, 5
      %v848 = vrot.slane %v847, 4
      %849 = vrot.lane.b32.xlu0 %v848, 64
      %v850 = vpop.permute.xlu0 %849
      %852 = vst.msk [vmem:[#allocation2 + $0x1e] sm:$0x1] %vm563, %v850
      %v853 = vrot.slane %v547, 6
      %v854 = vrot.slane %v853, 4
      %856 = vst.msk [vmem:[#allocation2 + $0x22] sm:$0x1] %vm555, %v854
      %v857 = vrot.slane %v547, 7
      %v858 = vrot.slane %v857, 4
      %859 = vrot.lane.b32.xlu0 %v858, 64
      %v860 = vpop.permute.xlu0 %859
      %862 = vst.msk [vmem:[#allocation2 + $0x22] sm:$0x1] %vm563, %v860
      %863 = vst.sshfl [vmem:[#allocation1] sm:$0xff pattern:$0x75316420] %v547
      %s864 = scalar_lea.vmem [#allocation1], 1
      %v865 = vld [vmem:[%s864] ss:$2 sm:$0xff]
      %867 = vst.msk [vmem:[#allocation2 + $0x26] sm:$0x1] %vm555, %v865
      %868 = vst.sshfl [vmem:[#allocation1] sm:$0xff pattern:$0x75316420] %v547
      %s869 = scalar_lea.vmem [#allocation1], 1
      %v870 = vld [vmem:[%s869] ss:$2 sm:$0xff]
      %v871 = vrot.slane %v870, 5
      %v872 = vrot.slane %v871, 4
      %873 = vrot.lane.b32.xlu0 %v872, 64
      %v874 = vpop.permute.xlu0 %873
      %876 = vst.msk [vmem:[#allocation2 + $0x26] sm:$0x1] %vm563, %v874
      %877 = vst.sshfl [vmem:[#allocation1] sm:$0xff pattern:$0x75316420] %v547
      %s878 = scalar_lea.vmem [#allocation1], 1
      %v879 = vld [vmem:[%s878] ss:$2 sm:$0xff]
      %v880 = vrot.slane %v879, 6
      %v881 = vrot.slane %v880, 4
      %883 = vst.msk [vmem:[#allocation2 + $0x7] sm:$0x1] %vm555, %v881
      %884 = vst.sshfl [vmem:[#allocation1] sm:$0xff pattern:$0x75316420] %v547
      %s885 = scalar_lea.vmem [#allocation1], 1
      %v886 = vld [vmem:[%s885] ss:$2 sm:$0xff]
      %v887 = vrot.slane %v886, 7
      %v888 = vrot.slane %v887, 4
      %889 = vrot.lane.b32.xlu0 %v888, 64
      %v890 = vpop.permute.xlu0 %889
      %892 = vst.msk [vmem:[#allocation2 + $0x7] sm:$0x1] %vm563, %v890
      %893 = vst.msk [vmem:[#allocation2 + $0xb] sm:$0x1] %vm555, %v550
      %v895 = vrot.slane %v550, 5
      %v896 = vrot.slane %v895, 4
      %897 = vrot.lane.b32.xlu0 %v896, 64
      %v898 = vpop.permute.xlu0 %897
      %900 = vst.msk [vmem:[#allocation2 + $0xb] sm:$0x1] %vm563, %v898
      %v901 = vrot.slane %v550, 6
      %v902 = vrot.slane %v901, 4
      %904 = vst.msk [vmem:[#allocation2 + $0xf] sm:$0x1] %vm555, %v902
      %v905 = vrot.slane %v550, 7
      %v906 = vrot.slane %v905, 4
      %907 = vrot.lane.b32.xlu0 %v906, 64
      %v908 = vpop.permute.xlu0 %907
      %910 = vst.msk [vmem:[#allocation2 + $0xf] sm:$0x1] %vm563, %v908
      %911 = vst.sshfl [vmem:[#allocation1] sm:$0xff pattern:$0x75316420] %v550
      %s912 = scalar_lea.vmem [#allocation1], 1
      %v913 = vld [vmem:[%s912] ss:$2 sm:$0xff]
      %915 = vst.msk [vmem:[#allocation2 + $0x13] sm:$0x1] %vm555, %v913
      %916 = vst.sshfl [vmem:[#allocation1] sm:$0xff pattern:$0x75316420] %v550
      %s917 = scalar_lea.vmem [#allocation1], 1
      %v918 = vld [vmem:[%s917] ss:$2 sm:$0xff]
      %v919 = vrot.slane %v918, 5
      %v920 = vrot.slane %v919, 4
      %921 = vrot.lane.b32.xlu0 %v920, 64
      %v922 = vpop.permute.xlu0 %921
      %924 = vst.msk [vmem:[#allocation2 + $0x13] sm:$0x1] %vm563, %v922
      %925 = vst.sshfl [vmem:[#allocation1] sm:$0xff pattern:$0x75316420] %v550
      %s926 = scalar_lea.vmem [#allocation1], 1
      %v927 = vld [vmem:[%s926] ss:$2 sm:$0xff]
      %v928 = vrot.slane %v927, 6
      %v929 = vrot.slane %v928, 4
      %931 = vst.msk [vmem:[#allocation2 + $0x17] sm:$0x1] %vm555, %v929
      %932 = vst.sshfl [vmem:[#allocation1] sm:$0xff pattern:$0x75316420] %v550
      %s933 = scalar_lea.vmem [#allocation1], 1
      %v934 = vld [vmem:[%s933] ss:$2 sm:$0xff]
      %v935 = vrot.slane %v934, 7
      %v936 = vrot.slane %v935, 4
      %937 = vrot.lane.b32.xlu0 %v936, 64
      %v938 = vpop.permute.xlu0 %937
      %940 = vst.msk [vmem:[#allocation2 + $0x17] sm:$0x1] %vm563, %v938
      %941 = vst.msk [vmem:[#allocation2 + $0x1b] sm:$0x1] %vm555, %v553
      %v943 = vrot.slane %v553, 5
      %v944 = vrot.slane %v943, 4
      %945 = vrot.lane.b32.xlu0 %v944, 64
      %v946 = vpop.permute.xlu0 %945
      %948 = vst.msk [vmem:[#allocation2 + $0x1b] sm:$0x1] %vm563, %v946
      %v949 = vrot.slane %v553, 6
      %v950 = vrot.slane %v949, 4
      %952 = vst.msk [vmem:[#allocation2 + $0x1f] sm:$0x1] %vm555, %v950
      %v953 = vrot.slane %v553, 7
      %v954 = vrot.slane %v953, 4
      %955 = vrot.lane.b32.xlu0 %v954, 64
      %v956 = vpop.permute.xlu0 %955
      %958 = vst.msk [vmem:[#allocation2 + $0x1f] sm:$0x1] %vm563, %v956
      %959 = vst.sshfl [vmem:[#allocation1] sm:$0xff pattern:$0x75316420] %v553
      %s960 = scalar_lea.vmem [#allocation1], 1
      %v961 = vld [vmem:[%s960] ss:$2 sm:$0xff]
      %963 = vst.msk [vmem:[#allocation2 + $0x23] sm:$0x1] %vm555, %v961
      %964 = vst.sshfl [vmem:[#allocation1] sm:$0xff pattern:$0x75316420] %v553
      %s965 = scalar_lea.vmem [#allocation1], 1
      %v966 = vld [vmem:[%s965] ss:$2 sm:$0xff]
      %v967 = vrot.slane %v966, 5
      %v968 = vrot.slane %v967, 4
      %969 = vrot.lane.b32.xlu0 %v968, 64
      %v970 = vpop.permute.xlu0 %969
      %972 = vst.msk [vmem:[#allocation2 + $0x23] sm:$0x1] %vm563, %v970
      %973 = vst.sshfl [vmem:[#allocation1] sm:$0xff pattern:$0x75316420] %v553
      %s974 = scalar_lea.vmem [#allocation1], 1
      %v975 = vld [vmem:[%s974] ss:$2 sm:$0xff]
      %v976 = vrot.slane %v975, 6
      %v977 = vrot.slane %v976, 4
      %979 = vst.msk [vmem:[#allocation2 + $0x27] sm:$0x1] %vm555, %v977
      %980 = vst.sshfl [vmem:[#allocation1] sm:$0xff pattern:$0x75316420] %v553
      %s981 = scalar_lea.vmem [#allocation1], 1
      %v982 = vld [vmem:[%s981] ss:$2 sm:$0xff]
      %v983 = vrot.slane %v982, 7
      %v984 = vrot.slane %v983, 4
      %985 = vrot.lane.b32.xlu0 %v984, 64
      %v986 = vpop.permute.xlu0 %985
      %988 = vst.msk [vmem:[#allocation2 + $0x27] sm:$0x1] %vm563, %v986
      %v989 = vlaneseq
      %v990 = vand.u32 %v989, 127
      %v991 = vadd.s32 %v990, 128
      %v992 = vadd.s32 %v990, 256
      %v993 = vadd.s32 %v990, 384
      %v994 = vadd.s32 %v990, 512
      %v995 = vadd.s32 %v990, 640
      %v996 = vadd.s32 %v990, 768
      %v997 = vadd.s32 %v990, 896
      %vm998 = vcmp.lt.s32.totalorder %v990, 0
      %v999 = vsub.s32 0, %v990
      %v1000 = vsel %vm998, %v999, %v990
      %v1001 = vshrl.u32 %v1000, 6
      %v1002 = vand.u32 %v1000, 63
      %v1003 = vsub.s32 0, %v1002
      %v1004 = vsel %vm998, %v1003, %v1002
      %vm1005 = vcmp.lt.s32.totalorder %v991, 0
      %v1006 = vsub.s32 0, %v991
      %v1007 = vsel %vm1005, %v1006, %v991
      %v1008 = vshrl.u32 %v1007, 6
      %v1009 = vand.u32 %v1007, 63
      %v1010 = vsub.s32 0, %v1009
      %v1011 = vsel %vm1005, %v1010, %v1009
      %vm1012 = vcmp.lt.s32.totalorder %v992, 0
      %v1013 = vsub.s32 0, %v992
      %v1014 = vsel %vm1012, %v1013, %v992
      %v1015 = vshrl.u32 %v1014, 6
      %v1016 = vand.u32 %v1014, 63
      %v1017 = vsub.s32 0, %v1016
      %v1018 = vsel %vm1012, %v1017, %v1016
      %vm1019 = vcmp.lt.s32.totalorder %v993, 0
      %v1020 = vsub.s32 0, %v993
      %v1021 = vsel %vm1019, %v1020, %v993
      %v1022 = vshrl.u32 %v1021, 6
      %v1023 = vand.u32 %v1021, 63
      %v1024 = vsub.s32 0, %v1023
      %v1025 = vsel %vm1019, %v1024, %v1023
      %vm1026 = vcmp.lt.s32.totalorder %v994, 0
      %v1027 = vsub.s32 0, %v994
      %v1028 = vsel %vm1026, %v1027, %v994
      %v1029 = vshrl.u32 %v1028, 6
      %v1030 = vand.u32 %v1028, 63
      %v1031 = vsub.s32 0, %v1030
      %v1032 = vsel %vm1026, %v1031, %v1030
      %vm1033 = vcmp.lt.s32.totalorder %v995, 0
      %v1034 = vsub.s32 0, %v995
      %v1035 = vsel %vm1033, %v1034, %v995
      %v1036 = vshrl.u32 %v1035, 6
      %v1037 = vand.u32 %v1035, 63
      %v1038 = vsub.s32 0, %v1037
      %v1039 = vsel %vm1033, %v1038, %v1037
      %vm1040 = vcmp.lt.s32.totalorder %v996, 0
      %v1041 = vsub.s32 0, %v996
      %v1042 = vsel %vm1040, %v1041, %v996
      %v1043 = vshrl.u32 %v1042, 6
      %v1044 = vand.u32 %v1042, 63
      %v1045 = vsub.s32 0, %v1044
      %v1046 = vsel %vm1040, %v1045, %v1044
      %vm1047 = vcmp.lt.s32.totalorder %v997, 0
      %v1048 = vsub.s32 0, %v997
      %v1049 = vsel %vm1047, %v1048, %v997
      %v1050 = vshrl.u32 %v1049, 6
      %v1051 = vand.u32 %v1049, 63
      %v1052 = vsub.s32 0, %v1051
      %v1053 = vsel %vm1047, %v1052, %v1051
      %vm1054 = vcmp.ne.s32.totalorder %v1004, 0
      %vm1055 = vcmp.ne.s32.totalorder %v1011, 0
      %vm1056 = vcmp.ne.s32.totalorder %v1018, 0
      %vm1057 = vcmp.ne.s32.totalorder %v1025, 0
      %vm1058 = vcmp.ne.s32.totalorder %v1032, 0
      %vm1059 = vcmp.ne.s32.totalorder %v1039, 0
      %vm1060 = vcmp.ne.s32.totalorder %v1046, 0
      %vm1061 = vcmp.ne.s32.totalorder %v1053, 0
      %vm1062 = vcmp.lt.s32.totalorder %v1004, 0
      %vm1063 = vcmp.lt.s32.totalorder %v1011, 0
      %vm1064 = vcmp.lt.s32.totalorder %v1018, 0
      %vm1065 = vcmp.lt.s32.totalorder %v1025, 0
      %vm1066 = vcmp.lt.s32.totalorder %v1032, 0
      %vm1067 = vcmp.lt.s32.totalorder %v1039, 0
      %vm1068 = vcmp.lt.s32.totalorder %v1046, 0
      %vm1069 = vcmp.lt.s32.totalorder %v1053, 0
      %vm1070 = vmand %vm1062, %vm1054
      %vm1071 = vmand %vm1063, %vm1055
      %vm1072 = vmand %vm1064, %vm1056
      %vm1073 = vmand %vm1065, %vm1057
      %vm1074 = vmand %vm1066, %vm1058
      %vm1075 = vmand %vm1067, %vm1059
      %vm1076 = vmand %vm1068, %vm1060
      %vm1077 = vmand %vm1069, %vm1061
      %v1078 = vadd.s32 %v1004, 64
      %v1079 = vadd.s32 %v1011, 64
      %v1080 = vadd.s32 %v1018, 64
      %v1081 = vadd.s32 %v1025, 64
      %v1082 = vadd.s32 %v1032, 64
      %v1083 = vadd.s32 %v1039, 64
      %v1084 = vadd.s32 %v1046, 64
      %v1085 = vadd.s32 %v1053, 64
      %v1086 = vsel %vm1070, %v1078, %v1004
      %v1087 = vsel %vm1071, %v1079, %v1011
      %v1088 = vsel %vm1072, %v1080, %v1018
      %v1089 = vsel %vm1073, %v1081, %v1025
      %v1090 = vsel %vm1074, %v1082, %v1032
      %v1091 = vsel %vm1075, %v1083, %v1039
      %v1092 = vsel %vm1076, %v1084, %v1046
      %v1093 = vsel %vm1077, %v1085, %v1053
      %vm1094 = vcmp.ge.s32.totalorder %v1086, 1
      %vm1095 = vcmp.ge.s32.totalorder %v1087, 1
      %vm1096 = vcmp.ge.s32.totalorder %v1088, 1
      %vm1097 = vcmp.ge.s32.totalorder %v1089, 1
      %vm1098 = vcmp.ge.s32.totalorder %v1090, 1
      %vm1099 = vcmp.ge.s32.totalorder %v1091, 1
      %vm1100 = vcmp.ge.s32.totalorder %v1092, 1
      %vm1101 = vcmp.ge.s32.totalorder %v1093, 1
      %vm1102 = vcmp.le.s32.totalorder %v1086, 62
      %vm1103 = vcmp.le.s32.totalorder %v1087, 62
      %vm1104 = vcmp.le.s32.totalorder %v1088, 62
      %vm1105 = vcmp.le.s32.totalorder %v1089, 62
      %vm1106 = vcmp.le.s32.totalorder %v1090, 62
      %vm1107 = vcmp.le.s32.totalorder %v1091, 62
      %vm1108 = vcmp.le.s32.totalorder %v1092, 62
      %vm1109 = vcmp.le.s32.totalorder %v1093, 62
      %v1110 = vld [vmem:[#allocation2] sm:$0xff]
      %v1111 = vld [vmem:[#allocation2 + $0x8] sm:$0xff]
      %v1112 = vld [vmem:[#allocation2 + $0x10] sm:$0xff]
      %v1113 = vld [vmem:[#allocation2 + $0x18] sm:$0xff]
      %v1114 = vld [vmem:[#allocation2 + $0x20] sm:$0xf]
      %v1115 = vsel %vm1094, 1, 0
      %v1116 = vsel %vm1095, 1, 0
      %v1117 = vsel %vm1096, 1, 0
      %v1118 = vsel %vm1097, 1, 0
      %v1119 = vsel %vm1098, 1, 0
      %v1120 = vsel %vm1099, 1, 0
      %v1121 = vsel %vm1100, 1, 0
      %v1122 = vsel %vm1101, 1, 0
      %vm1123 = vcmp.eq.s32.totalorder %v1115, 1
      %vm1124 = vcmp.eq.s32.totalorder %v1116, 1
      %vm1125 = vcmp.eq.s32.totalorder %v1117, 1
      %vm1126 = vcmp.eq.s32.totalorder %v1118, 1
      %vm1127 = vcmp.eq.s32.totalorder %v1119, 1
      %vm1128 = vcmp.eq.s32.totalorder %v1120, 1
      %vm1129 = vcmp.eq.s32.totalorder %v1121, 1
      %vm1130 = vcmp.eq.s32.totalorder %v1122, 1
      %1136 = vst [vmem:[#allocation1] ss:$2 sm:$0xff] %v1110
      %s1137 = scalar_lea.vmem [#allocation1], 16
      %1138 = vst [vmem:[%s1137] ss:$2 sm:$0xff] %v1111
      %s1139 = scalar_lea.vmem [#allocation1], 32
      %1140 = vst [vmem:[%s1139] ss:$2 sm:$0xff] %v1112
      %s1141 = scalar_lea.vmem [#allocation1], 48
      %1142 = vst [vmem:[%s1141] ss:$2 sm:$0xff] %v1113
      %v1143 = vld.sshfl [vmem:[#allocation1] sm:$0xff pattern:$0x75316420]
      %v1144 = vld.sshfl [vmem:[#allocation1 + $0x8] sm:$0xff pattern:$0x75316420]
      %v1145 = vld.sshfl [vmem:[#allocation1 + $0x10] sm:$0xff pattern:$0x75316420]
      %v1146 = vld.sshfl [vmem:[#allocation1 + $0x18] sm:$0xff pattern:$0x75316420]
      %v1147 = vld.sshfl [vmem:[#allocation1 + $0x20] sm:$0xff pattern:$0x75316420]
      %v1148 = vld.sshfl [vmem:[#allocation1 + $0x28] sm:$0xff pattern:$0x75316420]
      %v1149 = vld.sshfl [vmem:[#allocation1 + $0x30] sm:$0xff pattern:$0x75316420]
      %v1150 = vld.sshfl [vmem:[#allocation1 + $0x38] sm:$0xff pattern:$0x75316420]
      %1151 = vst [vmem:[#allocation1] ss:$2 sm:$0xff] %v1114
      %v1152 = vld.sshfl [vmem:[#allocation1] sm:$0xff pattern:$0x75316420]
      %1153 = vrot.lane.b32.xlu0 %v1143, 1
      %v1154 = vpop.permute.xlu0 %1153
      %1155 = vrot.lane.b32.xlu0 %v1144, 1
      %v1156 = vpop.permute.xlu0 %1155
      %1157 = vrot.lane.b32.xlu0 %v1145, 1
      %v1158 = vpop.permute.xlu0 %1157
      %1159 = vrot.lane.b32.xlu0 %v1146, 1
      %v1160 = vpop.permute.xlu0 %1159
      %1161 = vrot.lane.b32.xlu0 %v1147, 1
      %v1162 = vpop.permute.xlu0 %1161
      %1163 = vrot.lane.b32.xlu0 %v1148, 1
      %v1164 = vpop.permute.xlu0 %1163
      %1165 = vrot.lane.b32.xlu0 %v1149, 1
      %v1166 = vpop.permute.xlu0 %1165
      %1167 = vrot.lane.b32.xlu0 %v1150, 1
      %v1168 = vpop.permute.xlu0 %1167
      %1169 = vrot.lane.b32.xlu0 %v1152, 1
      %v1170 = vpop.permute.xlu0 %1169
      %vm1171 = vcmask 7168
      %v1172 = vsel %vm1171, %v1154, %v1156
      %v1173 = vsel %vm1171, %v1156, %v1158
      %v1174 = vsel %vm1171, %v1158, %v1160
      %v1175 = vsel %vm1171, %v1160, %v1162
      %v1176 = vsel %vm1171, %v1162, %v1164
      %v1177 = vsel %vm1171, %v1164, %v1166
      %v1178 = vsel %vm1171, %v1166, %v1168
      %v1179 = vsel %vm1171, %v1168, %v1170
      %v1188 = vsel %vm1123, %v1172, 0.0
      %v1189 = vsel %vm1124, %v1173, 0.0
      %v1190 = vsel %vm1125, %v1174, 0.0
      %v1191 = vsel %vm1126, %v1175, 0.0
      %v1192 = vsel %vm1127, %v1176, 0.0
      %v1193 = vsel %vm1128, %v1177, 0.0
      %v1194 = vsel %vm1129, %v1178, 0.0
      %v1195 = vsel %vm1130, %v1179, 0.0
      %v1196 = vpack.c.bf16 %v1189, %v1188
      %v1197 = vpack.c.bf16 %v1191, %v1190
      %v1198 = vpack.c.bf16 %v1193, %v1192
      %v1199 = vpack.c.bf16 %v1195, %v1194
      %v1200 = vld [vmem:[#allocation2 + $0x4] sm:$0xff]
      %v1201 = vld [vmem:[#allocation2 + $0xc] sm:$0xff]
      %v1202 = vld [vmem:[#allocation2 + $0x14] sm:$0xff]
      %v1203 = vld [vmem:[#allocation2 + $0x1c] sm:$0xff]
      %1208 = vst [vmem:[#allocation1] ss:$2 sm:$0xff] %v1200
      %s1209 = scalar_lea.vmem [#allocation1], 16
      %1210 = vst [vmem:[%s1209] ss:$2 sm:$0xff] %v1201
      %s1211 = scalar_lea.vmem [#allocation1], 32
      %1212 = vst [vmem:[%s1211] ss:$2 sm:$0xff] %v1202
      %s1213 = scalar_lea.vmem [#allocation1], 48
      %1214 = vst [vmem:[%s1213] ss:$2 sm:$0xff] %v1203
      %v1215 = vld.sshfl [vmem:[#allocation1] sm:$0xff pattern:$0x75316420]
      %v1216 = vld.sshfl [vmem:[#allocation1 + $0x8] sm:$0xff pattern:$0x75316420]
      %v1217 = vld.sshfl [vmem:[#allocation1 + $0x10] sm:$0xff pattern:$0x75316420]
      %v1218 = vld.sshfl [vmem:[#allocation1 + $0x18] sm:$0xff pattern:$0x75316420]
      %v1219 = vld.sshfl [vmem:[#allocation1 + $0x20] sm:$0xff pattern:$0x75316420]
      %v1220 = vld.sshfl [vmem:[#allocation1 + $0x28] sm:$0xff pattern:$0x75316420]
      %v1221 = vld.sshfl [vmem:[#allocation1 + $0x30] sm:$0xff pattern:$0x75316420]
      %v1222 = vld.sshfl [vmem:[#allocation1 + $0x38] sm:$0xff pattern:$0x75316420]
      %v1231 = vpack.c.bf16 %v1216, %v1215
      %v1232 = vpack.c.bf16 %v1218, %v1217
      %v1233 = vpack.c.bf16 %v1220, %v1219
      %v1234 = vpack.c.bf16 %v1222, %v1221
      %v1235 = vld [vmem:[#allocation2 + $0x4] sm:$0xff]
      %v1236 = vld [vmem:[#allocation2 + $0xc] sm:$0xff]
      %v1237 = vld [vmem:[#allocation2 + $0x14] sm:$0xff]
      %v1238 = vld [vmem:[#allocation2 + $0x1c] sm:$0xff]
      %v1239 = vld [vmem:[#allocation2 + $0x24] sm:$0xf]
      %v1240 = vsel %vm1102, 1, 0
      %v1241 = vsel %vm1103, 1, 0
      %v1242 = vsel %vm1104, 1, 0
      %v1243 = vsel %vm1105, 1, 0
      %v1244 = vsel %vm1106, 1, 0
      %v1245 = vsel %vm1107, 1, 0
      %v1246 = vsel %vm1108, 1, 0
      %v1247 = vsel %vm1109, 1, 0
      %vm1248 = vcmp.eq.s32.totalorder %v1240, 1
      %vm1249 = vcmp.eq.s32.totalorder %v1241, 1
      %vm1250 = vcmp.eq.s32.totalorder %v1242, 1
      %vm1251 = vcmp.eq.s32.totalorder %v1243, 1
      %vm1252 = vcmp.eq.s32.totalorder %v1244, 1
      %vm1253 = vcmp.eq.s32.totalorder %v1245, 1
      %vm1254 = vcmp.eq.s32.totalorder %v1246, 1
      %vm1255 = vcmp.eq.s32.totalorder %v1247, 1
      %1261 = vst [vmem:[#allocation1] ss:$2 sm:$0xff] %v1235
      %s1262 = scalar_lea.vmem [#allocation1], 16
      %1263 = vst [vmem:[%s1262] ss:$2 sm:$0xff] %v1236
      %s1264 = scalar_lea.vmem [#allocation1], 32
      %1265 = vst [vmem:[%s1264] ss:$2 sm:$0xff] %v1237
      %s1266 = scalar_lea.vmem [#allocation1], 48
      %1267 = vst [vmem:[%s1266] ss:$2 sm:$0xff] %v1238
      %v1268 = vld.sshfl [vmem:[#allocation1] sm:$0xff pattern:$0x75316420]
      %v1269 = vld.sshfl [vmem:[#allocation1 + $0x8] sm:$0xff pattern:$0x75316420]
      %v1270 = vld.sshfl [vmem:[#allocation1 + $0x10] sm:$0xff pattern:$0x75316420]
      %v1271 = vld.sshfl [vmem:[#allocation1 + $0x18] sm:$0xff pattern:$0x75316420]
      %v1272 = vld.sshfl [vmem:[#allocation1 + $0x20] sm:$0xff pattern:$0x75316420]
      %v1273 = vld.sshfl [vmem:[#allocation1 + $0x28] sm:$0xff pattern:$0x75316420]
      %v1274 = vld.sshfl [vmem:[#allocation1 + $0x30] sm:$0xff pattern:$0x75316420]
      %v1275 = vld.sshfl [vmem:[#allocation1 + $0x38] sm:$0xff pattern:$0x75316420]
      %1276 = vst [vmem:[#allocation1] ss:$2 sm:$0xff] %v1239
      %v1277 = vld.sshfl [vmem:[#allocation1] sm:$0xff pattern:$0x75316420]
      %1278 = vrot.lane.b32.xlu0 %v1268, 127
      %v1279 = vpop.permute.xlu0 %1278
      %1280 = vrot.lane.b32.xlu0 %v1269, 127
      %v1281 = vpop.permute.xlu0 %1280
      %1282 = vrot.lane.b32.xlu0 %v1270, 127
      %v1283 = vpop.permute.xlu0 %1282
      %1284 = vrot.lane.b32.xlu0 %v1271, 127
      %v1285 = vpop.permute.xlu0 %1284
      %1286 = vrot.lane.b32.xlu0 %v1272, 127
      %v1287 = vpop.permute.xlu0 %1286
      %1288 = vrot.lane.b32.xlu0 %v1273, 127
      %v1289 = vpop.permute.xlu0 %1288
      %1290 = vrot.lane.b32.xlu0 %v1274, 127
      %v1291 = vpop.permute.xlu0 %1290
      %1292 = vrot.lane.b32.xlu0 %v1275, 127
      %v1293 = vpop.permute.xlu0 %1292
      %1294 = vrot.lane.b32.xlu0 %v1277, 127
      %v1295 = vpop.permute.xlu0 %1294
      %vm1296 = vcmask 1039360
      %v1297 = vsel %vm1296, %v1279, %v1281
      %v1298 = vsel %vm1296, %v1281, %v1283
      %v1299 = vsel %vm1296, %v1283, %v1285
      %v1300 = vsel %vm1296, %v1285, %v1287
      %v1301 = vsel %vm1296, %v1287, %v1289
      %v1302 = vsel %vm1296, %v1289, %v1291
      %v1303 = vsel %vm1296, %v1291, %v1293
      %v1304 = vsel %vm1296, %v1293, %v1295
      %v1313 = vsel %vm1248, %v1297, 0.0
      %v1314 = vsel %vm1249, %v1298, 0.0
      %v1315 = vsel %vm1250, %v1299, 0.0
      %v1316 = vsel %vm1251, %v1300, 0.0
      %v1317 = vsel %vm1252, %v1301, 0.0
      %v1318 = vsel %vm1253, %v1302, 0.0
      %v1319 = vsel %vm1254, %v1303, 0.0
      %v1320 = vsel %vm1255, %v1304, 0.0
      %v1321 = vpack.c.bf16 %v1314, %v1313
      %v1322 = vpack.c.bf16 %v1316, %v1315
      %v1323 = vpack.c.bf16 %v1318, %v1317
      %v1324 = vpack.c.bf16 %v1320, %v1319
      %v1325 = vld [vmem:[#allocation2 + $0x4] sm:$0xff]
      %v1326 = vld [vmem:[#allocation2 + $0xc] sm:$0xff]
      %v1327 = vld [vmem:[#allocation2 + $0x14] sm:$0xff]
      %v1328 = vld [vmem:[#allocation2 + $0x1c] sm:$0xff]
      %v1329 = vld [vmem:[#allocation2 + $0x24] sm:$0xf]
      %1335 = vst [vmem:[#allocation1] ss:$2 sm:$0xff] %v1325
      %s1336 = scalar_lea.vmem [#allocation1], 16
      %1337 = vst [vmem:[%s1336] ss:$2 sm:$0xff] %v1326
      %s1338 = scalar_lea.vmem [#allocation1], 32
      %1339 = vst [vmem:[%s1338] ss:$2 sm:$0xff] %v1327
      %s1340 = scalar_lea.vmem [#allocation1], 48
      %1341 = vst [vmem:[%s1340] ss:$2 sm:$0xff] %v1328
      %v1342 = vld.sshfl [vmem:[#allocation1] sm:$0xff pattern:$0x75316420]
      %v1343 = vld.sshfl [vmem:[#allocation1 + $0x8] sm:$0xff pattern:$0x75316420]
      %v1344 = vld.sshfl [vmem:[#allocation1 + $0x10] sm:$0xff pattern:$0x75316420]
      %v1345 = vld.sshfl [vmem:[#allocation1 + $0x18] sm:$0xff pattern:$0x75316420]
      %v1346 = vld.sshfl [vmem:[#allocation1 + $0x20] sm:$0xff pattern:$0x75316420]
      %v1347 = vld.sshfl [vmem:[#allocation1 + $0x28] sm:$0xff pattern:$0x75316420]
      %v1348 = vld.sshfl [vmem:[#allocation1 + $0x30] sm:$0xff pattern:$0x75316420]
      %v1349 = vld.sshfl [vmem:[#allocation1 + $0x38] sm:$0xff pattern:$0x75316420]
      %1350 = vst [vmem:[#allocation1] ss:$2 sm:$0xff] %v1329
      %v1351 = vld.sshfl [vmem:[#allocation1] sm:$0xff pattern:$0x75316420]
      %1352 = vrot.lane.b32.xlu0 %v1342, 65
      %v1353 = vpop.permute.xlu0 %1352
      %1354 = vrot.lane.b32.xlu0 %v1343, 65
      %v1355 = vpop.permute.xlu0 %1354
      %1356 = vrot.lane.b32.xlu0 %v1344, 65
      %v1357 = vpop.permute.xlu0 %1356
      %1358 = vrot.lane.b32.xlu0 %v1345, 65
      %v1359 = vpop.permute.xlu0 %1358
      %1360 = vrot.lane.b32.xlu0 %v1346, 65
      %v1361 = vpop.permute.xlu0 %1360
      %1362 = vrot.lane.b32.xlu0 %v1347, 65
      %v1363 = vpop.permute.xlu0 %1362
      %1364 = vrot.lane.b32.xlu0 %v1348, 65
      %v1365 = vpop.permute.xlu0 %1364
      %1366 = vrot.lane.b32.xlu0 %v1349, 65
      %v1367 = vpop.permute.xlu0 %1366
      %1368 = vrot.lane.b32.xlu0 %v1351, 65
      %v1369 = vpop.permute.xlu0 %1368
      %vm1370 = vcmask 531456
      %v1371 = vsel %vm1370, %v1353, %v1355
      %v1372 = vsel %vm1370, %v1355, %v1357
      %v1373 = vsel %vm1370, %v1357, %v1359
      %v1374 = vsel %vm1370, %v1359, %v1361
      %v1375 = vsel %vm1370, %v1361, %v1363
      %v1376 = vsel %vm1370, %v1363, %v1365
      %v1377 = vsel %vm1370, %v1365, %v1367
      %v1378 = vsel %vm1370, %v1367, %v1369
      %v1387 = vsel %vm1123, %v1371, 0.0
      %v1388 = vsel %vm1124, %v1372, 0.0
      %v1389 = vsel %vm1125, %v1373, 0.0
      %v1390 = vsel %vm1126, %v1374, 0.0
      %v1391 = vsel %vm1127, %v1375, 0.0
      %v1392 = vsel %vm1128, %v1376, 0.0
      %v1393 = vsel %vm1129, %v1377, 0.0
      %v1394 = vsel %vm1130, %v1378, 0.0
      %v1395 = vpack.c.bf16 %v1388, %v1387
      %v1396 = vpack.c.bf16 %v1390, %v1389
      %v1397 = vpack.c.bf16 %v1392, %v1391
      %v1398 = vpack.c.bf16 %v1394, %v1393
      %v1399 = vld [vmem:[#allocation2 + $0x4] sm:$0xff]
      %v1400 = vld [vmem:[#allocation2 + $0xc] sm:$0xff]
      %v1401 = vld [vmem:[#allocation2 + $0x14] sm:$0xff]
      %v1402 = vld [vmem:[#allocation2 + $0x1c] sm:$0xff]
      %v1403 = vld [vmem:[#allocation2 + $0x24] sm:$0xf]
      %1409 = vst [vmem:[#allocation1] ss:$2 sm:$0xff] %v1399
      %s1410 = scalar_lea.vmem [#allocation1], 16
      %1411 = vst [vmem:[%s1410] ss:$2 sm:$0xff] %v1400
      %s1412 = scalar_lea.vmem [#allocation1], 32
      %1413 = vst [vmem:[%s1412] ss:$2 sm:$0xff] %v1401
      %s1414 = scalar_lea.vmem [#allocation1], 48
      %1415 = vst [vmem:[%s1414] ss:$2 sm:$0xff] %v1402
      %v1416 = vld.sshfl [vmem:[#allocation1] sm:$0xff pattern:$0x75316420]
      %v1417 = vld.sshfl [vmem:[#allocation1 + $0x8] sm:$0xff pattern:$0x75316420]
      %v1418 = vld.sshfl [vmem:[#allocation1 + $0x10] sm:$0xff pattern:$0x75316420]
      %v1419 = vld.sshfl [vmem:[#allocation1 + $0x18] sm:$0xff pattern:$0x75316420]
      %v1420 = vld.sshfl [vmem:[#allocation1 + $0x20] sm:$0xff pattern:$0x75316420]
      %v1421 = vld.sshfl [vmem:[#allocation1 + $0x28] sm:$0xff pattern:$0x75316420]
      %v1422 = vld.sshfl [vmem:[#allocation1 + $0x30] sm:$0xff pattern:$0x75316420]
      %v1423 = vld.sshfl [vmem:[#allocation1 + $0x38] sm:$0xff pattern:$0x75316420]
      %1424 = vst [vmem:[#allocation1] ss:$2 sm:$0xff] %v1403
      %v1425 = vld.sshfl [vmem:[#allocation1] sm:$0xff pattern:$0x75316420]
      %v1435 = vpack.c.bf16 %v1417, %v1416
      %v1436 = vpack.c.bf16 %v1419, %v1418
      %v1437 = vpack.c.bf16 %v1421, %v1420
      %v1438 = vpack.c.bf16 %v1423, %v1422
      %v1439 = vpack.c.bf16 %v1425, %v1425
      %v1440 = vld [vmem:[#allocation2 + $0x4] sm:$0xff]
      %v1441 = vld [vmem:[#allocation2 + $0xc] sm:$0xff]
      %v1442 = vld [vmem:[#allocation2 + $0x14] sm:$0xff]
      %v1443 = vld [vmem:[#allocation2 + $0x1c] sm:$0xff]
      %v1444 = vld [vmem:[#allocation2 + $0x24] sm:$0xf]
      %1450 = vst [vmem:[#allocation1] ss:$2 sm:$0xff] %v1440
      %s1451 = scalar_lea.vmem [#allocation1], 16
      %1452 = vst [vmem:[%s1451] ss:$2 sm:$0xff] %v1441
      %s1453 = scalar_lea.vmem [#allocation1], 32
      %1454 = vst [vmem:[%s1453] ss:$2 sm:$0xff] %v1442
      %s1455 = scalar_lea.vmem [#allocation1], 48
      %1456 = vst [vmem:[%s1455] ss:$2 sm:$0xff] %v1443
      %v1457 = vld.sshfl [vmem:[#allocation1] sm:$0xff pattern:$0x75316420]
      %v1458 = vld.sshfl [vmem:[#allocation1 + $0x8] sm:$0xff pattern:$0x75316420]
      %v1459 = vld.sshfl [vmem:[#allocation1 + $0x10] sm:$0xff pattern:$0x75316420]
      %v1460 = vld.sshfl [vmem:[#allocation1 + $0x18] sm:$0xff pattern:$0x75316420]
      %v1461 = vld.sshfl [vmem:[#allocation1 + $0x20] sm:$0xff pattern:$0x75316420]
      %v1462 = vld.sshfl [vmem:[#allocation1 + $0x28] sm:$0xff pattern:$0x75316420]
      %v1463 = vld.sshfl [vmem:[#allocation1 + $0x30] sm:$0xff pattern:$0x75316420]
      %v1464 = vld.sshfl [vmem:[#allocation1 + $0x38] sm:$0xff pattern:$0x75316420]
      %1465 = vst [vmem:[#allocation1] ss:$2 sm:$0xff] %v1444
      %v1466 = vld.sshfl [vmem:[#allocation1] sm:$0xff pattern:$0x75316420]
      %1467 = vrot.lane.b32.xlu0 %v1457, 63
      %v1468 = vpop.permute.xlu0 %1467
      %1469 = vrot.lane.b32.xlu0 %v1458, 63
      %v1470 = vpop.permute.xlu0 %1469
      %1471 = vrot.lane.b32.xlu0 %v1459, 63
      %v1472 = vpop.permute.xlu0 %1471
      %1473 = vrot.lane.b32.xlu0 %v1460, 63
      %v1474 = vpop.permute.xlu0 %1473
      %1475 = vrot.lane.b32.xlu0 %v1461, 63
      %v1476 = vpop.permute.xlu0 %1475
      %1477 = vrot.lane.b32.xlu0 %v1462, 63
      %v1478 = vpop.permute.xlu0 %1477
      %1479 = vrot.lane.b32.xlu0 %v1463, 63
      %v1480 = vpop.permute.xlu0 %1479
      %1481 = vrot.lane.b32.xlu0 %v1464, 63
      %v1482 = vpop.permute.xlu0 %1481
      %1483 = vrot.lane.b32.xlu0 %v1466, 63
      %v1484 = vpop.permute.xlu0 %1483
      %vm1485 = vcmask 515072
      %v1486 = vsel %vm1485, %v1468, %v1470
      %v1487 = vsel %vm1485, %v1470, %v1472
      %v1488 = vsel %vm1485, %v1472, %v1474
      %v1489 = vsel %vm1485, %v1474, %v1476
      %v1490 = vsel %vm1485, %v1476, %v1478
      %v1491 = vsel %vm1485, %v1478, %v1480
      %v1492 = vsel %vm1485, %v1480, %v1482
      %v1493 = vsel %vm1485, %v1482, %v1484
      %v1502 = vsel %vm1248, %v1486, 0.0
      %v1503 = vsel %vm1249, %v1487, 0.0
      %v1504 = vsel %vm1250, %v1488, 0.0
      %v1505 = vsel %vm1251, %v1489, 0.0
      %v1506 = vsel %vm1252, %v1490, 0.0
      %v1507 = vsel %vm1253, %v1491, 0.0
      %v1508 = vsel %vm1254, %v1492, 0.0
      %v1509 = vsel %vm1255, %v1493, 0.0
      %v1510 = vpack.c.bf16 %v1503, %v1502
      %v1511 = vpack.c.bf16 %v1505, %v1504
      %v1512 = vpack.c.bf16 %v1507, %v1506
      %v1513 = vpack.c.bf16 %v1509, %v1508
      %v1514 = vld [vmem:[#allocation2 + $0x4] sm:$0xff]
      %v1515 = vld [vmem:[#allocation2 + $0xc] sm:$0xff]
      %v1516 = vld [vmem:[#allocation2 + $0x14] sm:$0xff]
      %v1517 = vld [vmem:[#allocation2 + $0x1c] sm:$0xff]
      %v1518 = vld [vmem:[#allocation2 + $0x24] sm:$0xf]
      %1524 = vst [vmem:[#allocation1] ss:$2 sm:$0xff] %v1514
      %s1525 = scalar_lea.vmem [#allocation1], 16
      %1526 = vst [vmem:[%s1525] ss:$2 sm:$0xff] %v1515
      %s1527 = scalar_lea.vmem [#allocation1], 32
      %1528 = vst [vmem:[%s1527] ss:$2 sm:$0xff] %v1516
      %s1529 = scalar_lea.vmem [#allocation1], 48
      %1530 = vst [vmem:[%s1529] ss:$2 sm:$0xff] %v1517
      %v1531 = vld.sshfl [vmem:[#allocation1] sm:$0xff pattern:$0x75316420]
      %v1532 = vld.sshfl [vmem:[#allocation1 + $0x8] sm:$0xff pattern:$0x75316420]
      %v1533 = vld.sshfl [vmem:[#allocation1 + $0x10] sm:$0xff pattern:$0x75316420]
      %v1534 = vld.sshfl [vmem:[#allocation1 + $0x18] sm:$0xff pattern:$0x75316420]
      %v1535 = vld.sshfl [vmem:[#allocation1 + $0x20] sm:$0xff pattern:$0x75316420]
      %v1536 = vld.sshfl [vmem:[#allocation1 + $0x28] sm:$0xff pattern:$0x75316420]
      %v1537 = vld.sshfl [vmem:[#allocation1 + $0x30] sm:$0xff pattern:$0x75316420]
      %v1538 = vld.sshfl [vmem:[#allocation1 + $0x38] sm:$0xff pattern:$0x75316420]
      %1539 = vst [vmem:[#allocation1] ss:$2 sm:$0xff] %v1518
      %v1540 = vld.sshfl [vmem:[#allocation1] sm:$0xff pattern:$0x75316420]
      %1541 = vrot.lane.b32.xlu0 %v1531, 1
      %v1542 = vpop.permute.xlu0 %1541
      %1543 = vrot.lane.b32.xlu0 %v1532, 1
      %v1544 = vpop.permute.xlu0 %1543
      %1545 = vrot.lane.b32.xlu0 %v1533, 1
      %v1546 = vpop.permute.xlu0 %1545
      %1547 = vrot.lane.b32.xlu0 %v1534, 1
      %v1548 = vpop.permute.xlu0 %1547
      %1549 = vrot.lane.b32.xlu0 %v1535, 1
      %v1550 = vpop.permute.xlu0 %1549
      %1551 = vrot.lane.b32.xlu0 %v1536, 1
      %v1552 = vpop.permute.xlu0 %1551
      %1553 = vrot.lane.b32.xlu0 %v1537, 1
      %v1554 = vpop.permute.xlu0 %1553
      %1555 = vrot.lane.b32.xlu0 %v1538, 1
      %v1556 = vpop.permute.xlu0 %1555
      %1557 = vrot.lane.b32.xlu0 %v1540, 1
      %v1558 = vpop.permute.xlu0 %1557
      %v1559 = vsel %vm1171, %v1542, %v1544
      %v1560 = vsel %vm1171, %v1544, %v1546
      %v1561 = vsel %vm1171, %v1546, %v1548
      %v1562 = vsel %vm1171, %v1548, %v1550
      %v1563 = vsel %vm1171, %v1550, %v1552
      %v1564 = vsel %vm1171, %v1552, %v1554
      %v1565 = vsel %vm1171, %v1554, %v1556
      %v1566 = vsel %vm1171, %v1556, %v1558
      %v1575 = vsel %vm1123, %v1559, 0.0
      %v1576 = vsel %vm1124, %v1560, 0.0
      %v1577 = vsel %vm1125, %v1561, 0.0
      %v1578 = vsel %vm1126, %v1562, 0.0
      %v1579 = vsel %vm1127, %v1563, 0.0
      %v1580 = vsel %vm1128, %v1564, 0.0
      %v1581 = vsel %vm1129, %v1565, 0.0
      %v1582 = vsel %vm1130, %v1566, 0.0
      %v1583 = vpack.c.bf16 %v1576, %v1575
      %v1584 = vpack.c.bf16 %v1578, %v1577
      %v1585 = vpack.c.bf16 %v1580, %v1579
      %v1586 = vpack.c.bf16 %v1582, %v1581
      %v1587 = vld [vmem:[#allocation2 + $0x8] sm:$0xff]
      %v1588 = vld [vmem:[#allocation2 + $0x10] sm:$0xff]
      %v1589 = vld [vmem:[#allocation2 + $0x18] sm:$0xff]
      %v1590 = vld [vmem:[#allocation2 + $0x20] sm:$0xff]
      %1595 = vst [vmem:[#allocation1] ss:$2 sm:$0xff] %v1587
      %s1596 = scalar_lea.vmem [#allocation1], 16
      %1597 = vst [vmem:[%s1596] ss:$2 sm:$0xff] %v1588
      %s1598 = scalar_lea.vmem [#allocation1], 32
      %1599 = vst [vmem:[%s1598] ss:$2 sm:$0xff] %v1589
      %s1600 = scalar_lea.vmem [#allocation1], 48
      %1601 = vst [vmem:[%s1600] ss:$2 sm:$0xff] %v1590
      %v1602 = vld.sshfl [vmem:[#allocation1] sm:$0xff pattern:$0x75316420]
      %v1603 = vld.sshfl [vmem:[#allocation1 + $0x8] sm:$0xff pattern:$0x75316420]
      %v1604 = vld.sshfl [vmem:[#allocation1 + $0x10] sm:$0xff pattern:$0x75316420]
      %v1605 = vld.sshfl [vmem:[#allocation1 + $0x18] sm:$0xff pattern:$0x75316420]
      %v1606 = vld.sshfl [vmem:[#allocation1 + $0x20] sm:$0xff pattern:$0x75316420]
      %v1607 = vld.sshfl [vmem:[#allocation1 + $0x28] sm:$0xff pattern:$0x75316420]
      %v1608 = vld.sshfl [vmem:[#allocation1 + $0x30] sm:$0xff pattern:$0x75316420]
      %v1609 = vld.sshfl [vmem:[#allocation1 + $0x38] sm:$0xff pattern:$0x75316420]
      %v1618 = vpack.c.bf16 %v1603, %v1602
      %v1619 = vpack.c.bf16 %v1605, %v1604
      %v1620 = vpack.c.bf16 %v1607, %v1606
      %v1621 = vpack.c.bf16 %v1609, %v1608
      %v1622 = vld [vmem:[#allocation2 + $0x8] sm:$0xff]
      %v1623 = vld [vmem:[#allocation2 + $0x10] sm:$0xff]
      %v1624 = vld [vmem:[#allocation2 + $0x18] sm:$0xff]
      %v1625 = vld [vmem:[#allocation2 + $0x20] sm:$0xff]
      %v1626 = vld [vmem:[#allocation2 + $0x28] sm:$0xf]
      %1632 = vst [vmem:[#allocation1] ss:$2 sm:$0xff] %v1622
      %s1633 = scalar_lea.vmem [#allocation1], 16
      %1634 = vst [vmem:[%s1633] ss:$2 sm:$0xff] %v1623
      %s1635 = scalar_lea.vmem [#allocation1], 32
      %1636 = vst [vmem:[%s1635] ss:$2 sm:$0xff] %v1624
      %s1637 = scalar_lea.vmem [#allocation1], 48
      %1638 = vst [vmem:[%s1637] ss:$2 sm:$0xff] %v1625
      %v1639 = vld.sshfl [vmem:[#allocation1] sm:$0xff pattern:$0x75316420]
      %v1640 = vld.sshfl [vmem:[#allocation1 + $0x8] sm:$0xff pattern:$0x75316420]
      %v1641 = vld.sshfl [vmem:[#allocation1 + $0x10] sm:$0xff pattern:$0x75316420]
      %v1642 = vld.sshfl [vmem:[#allocation1 + $0x18] sm:$0xff pattern:$0x75316420]
      %v1643 = vld.sshfl [vmem:[#allocation1 + $0x20] sm:$0xff pattern:$0x75316420]
      %v1644 = vld.sshfl [vmem:[#allocation1 + $0x28] sm:$0xff pattern:$0x75316420]
      %v1645 = vld.sshfl [vmem:[#allocation1 + $0x30] sm:$0xff pattern:$0x75316420]
      %v1646 = vld.sshfl [vmem:[#allocation1 + $0x38] sm:$0xff pattern:$0x75316420]
      %1647 = vst [vmem:[#allocation1] ss:$2 sm:$0xff] %v1626
      %v1648 = vld.sshfl [vmem:[#allocation1] sm:$0xff pattern:$0x75316420]
      %1649 = vrot.lane.b32.xlu0 %v1639, 127
      %v1650 = vpop.permute.xlu0 %1649
      %1651 = vrot.lane.b32.xlu0 %v1640, 127
      %v1652 = vpop.permute.xlu0 %1651
      %1653 = vrot.lane.b32.xlu0 %v1641, 127
      %v1654 = vpop.permute.xlu0 %1653
      %1655 = vrot.lane.b32.xlu0 %v1642, 127
      %v1656 = vpop.permute.xlu0 %1655
      %1657 = vrot.lane.b32.xlu0 %v1643, 127
      %v1658 = vpop.permute.xlu0 %1657
      %1659 = vrot.lane.b32.xlu0 %v1644, 127
      %v1660 = vpop.permute.xlu0 %1659
      %1661 = vrot.lane.b32.xlu0 %v1645, 127
      %v1662 = vpop.permute.xlu0 %1661
      %1663 = vrot.lane.b32.xlu0 %v1646, 127
      %v1664 = vpop.permute.xlu0 %1663
      %1665 = vrot.lane.b32.xlu0 %v1648, 127
      %v1666 = vpop.permute.xlu0 %1665
      %v1667 = vsel %vm1296, %v1650, %v1652
      %v1668 = vsel %vm1296, %v1652, %v1654
      %v1669 = vsel %vm1296, %v1654, %v1656
      %v1670 = vsel %vm1296, %v1656, %v1658
      %v1671 = vsel %vm1296, %v1658, %v1660
      %v1672 = vsel %vm1296, %v1660, %v1662
      %v1673 = vsel %vm1296, %v1662, %v1664
      %v1674 = vsel %vm1296, %v1664, %v1666
      %v1683 = vsel %vm1248, %v1667, 0.0
      %v1684 = vsel %vm1249, %v1668, 0.0
      %v1685 = vsel %vm1250, %v1669, 0.0
      %v1686 = vsel %vm1251, %v1670, 0.0
      %v1687 = vsel %vm1252, %v1671, 0.0
      %v1688 = vsel %vm1253, %v1672, 0.0
      %v1689 = vsel %vm1254, %v1673, 0.0
      %v1690 = vsel %vm1255, %v1674, 0.0
      %v1691 = vpack.c.bf16 %v1684, %v1683
      %v1692 = vpack.c.bf16 %v1686, %v1685
      %v1693 = vpack.c.bf16 %v1688, %v1687
      %v1694 = vpack.c.bf16 %v1690, %v1689
      %v1699 = vunpack.c.l.b16 %v1196
      %v1700 = vunpack.c.h.b16 %v1196
      %v1701 = vunpack.c.l.b16 %v1197
      %v1702 = vunpack.c.h.b16 %v1197
      %v1703 = vunpack.c.l.b16 %v1198
      %v1704 = vunpack.c.h.b16 %v1198
      %v1705 = vunpack.c.l.b16 %v1199
      %v1706 = vunpack.c.h.b16 %v1199
      %v1707 = vpack.c.b16 %v1699, %v1699
      %v1708 = vpack.c.b16 %v1700, %v1700
      %v1709 = vpack.c.b16 %v1701, %v1701
      %v1710 = vpack.c.b16 %v1702, %v1702
      %v1711 = vpack.c.b16 %v1703, %v1703
      %v1712 = vpack.c.b16 %v1704, %v1704
      %v1713 = vpack.c.b16 %v1705, %v1705
      %v1714 = vpack.c.b16 %v1706, %v1706
      %v1719 = vunpack.c.l.b16 %v1231
      %v1720 = vunpack.c.h.b16 %v1231
      %v1721 = vunpack.c.l.b16 %v1232
      %v1722 = vunpack.c.h.b16 %v1232
      %v1723 = vunpack.c.l.b16 %v1233
      %v1724 = vunpack.c.h.b16 %v1233
      %v1725 = vunpack.c.l.b16 %v1234
      %v1726 = vunpack.c.h.b16 %v1234
      %v1727 = vpack.c.b16 %v1719, %v1719
      %v1728 = vpack.c.b16 %v1720, %v1720
      %v1729 = vpack.c.b16 %v1721, %v1721
      %v1730 = vpack.c.b16 %v1722, %v1722
      %v1731 = vpack.c.b16 %v1723, %v1723
      %v1732 = vpack.c.b16 %v1724, %v1724
      %v1733 = vpack.c.b16 %v1725, %v1725
      %v1734 = vpack.c.b16 %v1726, %v1726
      %v1735 = vrot.slane %v1727, 6
      %v1736 = vrot.slane %v1728, 6
      %v1737 = vrot.slane %v1729, 6
      %v1738 = vrot.slane %v1730, 6
      %v1739 = vrot.slane %v1731, 6
      %v1740 = vrot.slane %v1732, 6
      %v1741 = vrot.slane %v1733, 6
      %v1742 = vrot.slane %v1734, 6
      %v1747 = vunpack.c.l.b16 %v1321
      %v1748 = vunpack.c.h.b16 %v1321
      %v1749 = vunpack.c.l.b16 %v1322
      %v1750 = vunpack.c.h.b16 %v1322
      %v1751 = vunpack.c.l.b16 %v1323
      %v1752 = vunpack.c.h.b16 %v1323
      %v1753 = vunpack.c.l.b16 %v1324
      %v1754 = vunpack.c.h.b16 %v1324
      %v1755 = vpack.c.b16 %v1747, %v1747
      %v1756 = vpack.c.b16 %v1748, %v1748
      %v1757 = vpack.c.b16 %v1749, %v1749
      %v1758 = vpack.c.b16 %v1750, %v1750
      %v1759 = vpack.c.b16 %v1751, %v1751
      %v1760 = vpack.c.b16 %v1752, %v1752
      %v1761 = vpack.c.b16 %v1753, %v1753
      %v1762 = vpack.c.b16 %v1754, %v1754
      %v1767 = vunpack.c.l.b16 %v1395
      %v1768 = vunpack.c.h.b16 %v1395
      %v1769 = vunpack.c.l.b16 %v1396
      %v1770 = vunpack.c.h.b16 %v1396
      %v1771 = vunpack.c.l.b16 %v1397
      %v1772 = vunpack.c.h.b16 %v1397
      %v1773 = vunpack.c.l.b16 %v1398
      %v1774 = vunpack.c.h.b16 %v1398
      %v1775 = vpack.c.b16 %v1767, %v1767
      %v1776 = vpack.c.b16 %v1768, %v1768
      %v1777 = vpack.c.b16 %v1769, %v1769
      %v1778 = vpack.c.b16 %v1770, %v1770
      %v1779 = vpack.c.b16 %v1771, %v1771
      %v1780 = vpack.c.b16 %v1772, %v1772
      %v1781 = vpack.c.b16 %v1773, %v1773
      %v1782 = vpack.c.b16 %v1774, %v1774
      %v1783 = vrot.slane %v1775, 2
      %v1784 = vrot.slane %v1776, 2
      %v1785 = vrot.slane %v1777, 2
      %v1786 = vrot.slane %v1778, 2
      %v1787 = vrot.slane %v1779, 2
      %v1788 = vrot.slane %v1780, 2
      %v1789 = vrot.slane %v1781, 2
      %v1790 = vrot.slane %v1782, 2
      %v1796 = vunpack.c.l.b16 %v1435
      %v1797 = vunpack.c.h.b16 %v1435
      %v1798 = vunpack.c.l.b16 %v1436
      %v1799 = vunpack.c.h.b16 %v1436
      %v1800 = vunpack.c.l.b16 %v1437
      %v1801 = vunpack.c.h.b16 %v1437
      %v1802 = vunpack.c.l.b16 %v1438
      %v1803 = vunpack.c.h.b16 %v1438
      %v1804 = vunpack.c.l.b16 %v1439
      %v1805 = vpack.c.b16 %v1796, %v1796
      %v1806 = vpack.c.b16 %v1797, %v1797
      %v1807 = vpack.c.b16 %v1798, %v1798
      %v1808 = vpack.c.b16 %v1799, %v1799
      %v1809 = vpack.c.b16 %v1800, %v1800
      %v1810 = vpack.c.b16 %v1801, %v1801
      %v1811 = vpack.c.b16 %v1802, %v1802
      %v1812 = vpack.c.b16 %v1803, %v1803
      %v1813 = vpack.c.b16 %v1804, %v1804
      %1814 = vrot.lane.b32.xlu0 %v1805, 64
      %v1815 = vpop.permute.xlu0 %1814
      %1816 = vrot.lane.b32.xlu0 %v1806, 64
      %v1817 = vpop.permute.xlu0 %1816
      %1818 = vrot.lane.b32.xlu0 %v1807, 64
      %v1819 = vpop.permute.xlu0 %1818
      %1820 = vrot.lane.b32.xlu0 %v1808, 64
      %v1821 = vpop.permute.xlu0 %1820
      %1822 = vrot.lane.b32.xlu0 %v1809, 64
      %v1823 = vpop.permute.xlu0 %1822
      %1824 = vrot.lane.b32.xlu0 %v1810, 64
      %v1825 = vpop.permute.xlu0 %1824
      %1826 = vrot.lane.b32.xlu0 %v1811, 64
      %v1827 = vpop.permute.xlu0 %1826
      %1828 = vrot.lane.b32.xlu0 %v1812, 64
      %v1829 = vpop.permute.xlu0 %1828
      %1830 = vrot.lane.b32.xlu0 %v1813, 64
      %v1831 = vpop.permute.xlu0 %1830
      %vm1832 = vcmask 523264
      %v1833 = vsel %vm1832, %v1815, %v1817
      %v1834 = vsel %vm1832, %v1817, %v1819
      %v1835 = vsel %vm1832, %v1819, %v1821
      %v1836 = vsel %vm1832, %v1821, %v1823
      %v1837 = vsel %vm1832, %v1823, %v1825
      %v1838 = vsel %vm1832, %v1825, %v1827
      %v1839 = vsel %vm1832, %v1827, %v1829
      %v1840 = vsel %vm1832, %v1829, %v1831
      %v1845 = vunpack.c.l.b16 %v1510
      %v1846 = vunpack.c.h.b16 %v1510
      %v1847 = vunpack.c.l.b16 %v1511
      %v1848 = vunpack.c.h.b16 %v1511
      %v1849 = vunpack.c.l.b16 %v1512
      %v1850 = vunpack.c.h.b16 %v1512
      %v1851 = vunpack.c.l.b16 %v1513
      %v1852 = vunpack.c.h.b16 %v1513
      %v1853 = vpack.c.b16 %v1845, %v1845
      %v1854 = vpack.c.b16 %v1846, %v1846
      %v1855 = vpack.c.b16 %v1847, %v1847
      %v1856 = vpack.c.b16 %v1848, %v1848
      %v1857 = vpack.c.b16 %v1849, %v1849
      %v1858 = vpack.c.b16 %v1850, %v1850
      %v1859 = vpack.c.b16 %v1851, %v1851
      %v1860 = vpack.c.b16 %v1852, %v1852
      %v1861 = vrot.slane %v1853, 6
      %v1862 = vrot.slane %v1854, 6
      %v1863 = vrot.slane %v1855, 6
      %v1864 = vrot.slane %v1856, 6
      %v1865 = vrot.slane %v1857, 6
      %v1866 = vrot.slane %v1858, 6
      %v1867 = vrot.slane %v1859, 6
      %v1868 = vrot.slane %v1860, 6
      %v1873 = vunpack.c.l.b16 %v1583
      %v1874 = vunpack.c.h.b16 %v1583
      %v1875 = vunpack.c.l.b16 %v1584
      %v1876 = vunpack.c.h.b16 %v1584
      %v1877 = vunpack.c.l.b16 %v1585
      %v1878 = vunpack.c.h.b16 %v1585
      %v1879 = vunpack.c.l.b16 %v1586
      %v1880 = vunpack.c.h.b16 %v1586
      %v1881 = vpack.c.b16 %v1873, %v1873
      %v1882 = vpack.c.b16 %v1874, %v1874
      %v1883 = vpack.c.b16 %v1875, %v1875
      %v1884 = vpack.c.b16 %v1876, %v1876
      %v1885 = vpack.c.b16 %v1877, %v1877
      %v1886 = vpack.c.b16 %v1878, %v1878
      %v1887 = vpack.c.b16 %v1879, %v1879
      %v1888 = vpack.c.b16 %v1880, %v1880
      %v1893 = vunpack.c.l.b16 %v1618
      %v1894 = vunpack.c.h.b16 %v1618
      %v1895 = vunpack.c.l.b16 %v1619
      %v1896 = vunpack.c.h.b16 %v1619
      %v1897 = vunpack.c.l.b16 %v1620
      %v1898 = vunpack.c.h.b16 %v1620
      %v1899 = vunpack.c.l.b16 %v1621
      %v1900 = vunpack.c.h.b16 %v1621
      %v1901 = vpack.c.b16 %v1893, %v1893
      %v1902 = vpack.c.b16 %v1894, %v1894
      %v1903 = vpack.c.b16 %v1895, %v1895
      %v1904 = vpack.c.b16 %v1896, %v1896
      %v1905 = vpack.c.b16 %v1897, %v1897
      %v1906 = vpack.c.b16 %v1898, %v1898
      %v1907 = vpack.c.b16 %v1899, %v1899
      %v1908 = vpack.c.b16 %v1900, %v1900
      %v1909 = vrot.slane %v1901, 2
      %v1910 = vrot.slane %v1902, 2
      %v1911 = vrot.slane %v1903, 2
      %v1912 = vrot.slane %v1904, 2
      %v1913 = vrot.slane %v1905, 2
      %v1914 = vrot.slane %v1906, 2
      %v1915 = vrot.slane %v1907, 2
      %v1916 = vrot.slane %v1908, 2
      %v1921 = vunpack.c.l.b16 %v1691
      %v1922 = vunpack.c.h.b16 %v1691
      %v1923 = vunpack.c.l.b16 %v1692
      %v1924 = vunpack.c.h.b16 %v1692
      %v1925 = vunpack.c.l.b16 %v1693
      %v1926 = vunpack.c.h.b16 %v1693
      %v1927 = vunpack.c.l.b16 %v1694
      %v1928 = vunpack.c.h.b16 %v1694
      %v1929 = vpack.c.b16 %v1921, %v1921
      %v1930 = vpack.c.b16 %v1922, %v1922
      %v1931 = vpack.c.b16 %v1923, %v1923
      %v1932 = vpack.c.b16 %v1924, %v1924
      %v1933 = vpack.c.b16 %v1925, %v1925
      %v1934 = vpack.c.b16 %v1926, %v1926
      %v1935 = vpack.c.b16 %v1927, %v1927
      %v1936 = vpack.c.b16 %v1928, %v1928
      %v1939 = vsel %vm454, %v1707, %v1735
      %v1942 = vsel %vm454, %v1708, %v1736
      %v1945 = vsel %vm454, %v1709, %v1737
      %v1948 = vsel %vm454, %v1710, %v1738
      %v1951 = vsel %vm454, %v1711, %v1739
      %v1954 = vsel %vm454, %v1712, %v1740
      %v1957 = vsel %vm454, %v1713, %v1741
      %v1960 = vsel %vm454, %v1714, %v1742
      %v1962 = vsel %vm465, %v1939, %v1755
      %v1964 = vsel %vm465, %v1942, %v1756
      %v1966 = vsel %vm465, %v1945, %v1757
      %v1968 = vsel %vm465, %v1948, %v1758
      %v1970 = vsel %vm465, %v1951, %v1759
      %v1972 = vsel %vm465, %v1954, %v1760
      %v1974 = vsel %vm465, %v1957, %v1761
      %v1976 = vsel %vm465, %v1960, %v1762
      %v1978 = vsel %vm476, %v1962, %v1783
      %v1981 = vsel %vm476, %v1964, %v1784
      %v1984 = vsel %vm476, %v1966, %v1785
      %v1987 = vsel %vm476, %v1968, %v1786
      %v1990 = vsel %vm476, %v1970, %v1787
      %v1993 = vsel %vm476, %v1972, %v1788
      %v1996 = vsel %vm476, %v1974, %v1789
      %v1999 = vsel %vm476, %v1976, %v1790
      %v2003 = vsel %vm454, %v1833, %v1861
      %v2006 = vsel %vm454, %v1834, %v1862
      %v2009 = vsel %vm454, %v1835, %v1863
      %v2012 = vsel %vm454, %v1836, %v1864
      %v2015 = vsel %vm454, %v1837, %v1865
      %v2018 = vsel %vm454, %v1838, %v1866
      %v2021 = vsel %vm454, %v1839, %v1867
      %v2024 = vsel %vm454, %v1840, %v1868
      %v2026 = vsel %vm465, %v2003, %v1881
      %v2028 = vsel %vm465, %v2006, %v1882
      %v2030 = vsel %vm465, %v2009, %v1883
      %v2032 = vsel %vm465, %v2012, %v1884
      %v2034 = vsel %vm465, %v2015, %v1885
      %v2036 = vsel %vm465, %v2018, %v1886
      %v2038 = vsel %vm465, %v2021, %v1887
      %v2040 = vsel %vm465, %v2024, %v1888
      %v2042 = vsel %vm476, %v2026, %v1909
      %v2045 = vsel %vm476, %v2028, %v1910
      %v2048 = vsel %vm476, %v2030, %v1911
      %v2051 = vsel %vm476, %v2032, %v1912
      %v2054 = vsel %vm476, %v2034, %v1913
      %v2057 = vsel %vm476, %v2036, %v1914
      %v2060 = vsel %vm476, %v2038, %v1915
      %v2063 = vsel %vm476, %v2040, %v1916
      %v2065 = vld [vmem:[%s3] sm:$0xf]
      %v2066 = vld [vmem:[%s3 + $0x4] sm:$0xf]
      %v2067 = vld [vmem:[%s4] sm:$0xff]
      %v2068 = vld [vmem:[%s4 + $0x8] sm:$0xff]
      %2070 = vset.pattern.permute.xlu0 0
      %2071 = vperm.xlu0 %2070, %v2067
      %v2072 = vpop.permute.xlu0 %2071
      %2075 = vset.pattern.permute.xlu0 0
      %2076 = vperm.xlu0 %2075, %v2068
      %v2077 = vpop.permute.xlu0 %2076
      %v2081 = vunpack.c.l.b16 %v2065
      %v2082 = vunpack.c.l.b16 %v2066
      %v2083 = vpack.c.b16 %v2082, %v2081
      %vm2084 = vcmask 293888
      %v2086 = vsel %vm2084, %v2083, 0
      %v2089 = vsel %vm454, %v1929, 0
      %v2092 = vsel %vm454, %v1930, 0
      %v2095 = vsel %vm454, %v1931, 0
      %v2098 = vsel %vm454, %v1932, 0
      %v2101 = vsel %vm454, %v1933, 0
      %v2104 = vsel %vm454, %v1934, 0
      %v2107 = vsel %vm454, %v1935, 0
      %v2110 = vsel %vm454, %v1936, 0
      %2112 = vmatpush.bf16.msra.mxu0 0
      %2113 = vmatpush.bf16.msra.mxu0 0
      %2114 = vmatpush.bf16.msra.mxu0 0
      %2115 = vmatpush.bf16.msra.mxu0 0
      %2116 = vmatpush.bf16.msra.mxu0 0
      %2117 = vmatpush.bf16.msra.mxu0 %v2089
      %2118 = vmatpush.bf16.msra.mxu0 %v2042
      %2119 = vmatpush.bf16.msra.mxu0 %v1978
      %2120 = vmatmul.bf16.gmra.mxu0 %v2086
      %v2121 = vpop.f32.mrf.mxu0
      %v2122 = vadd.f32 %v2072, %v2121
      %v2123 = vpop.f32.mrf.mxu0
      %v2124 = vadd.f32 %v2077, %v2123
      %2125 = vdwg.mxu0
      %2126 = vmatpush.bf16.msra.mxu0 0
      %2127 = vmatpush.bf16.msra.mxu0 0
      %2128 = vmatpush.bf16.msra.mxu0 0
      %2129 = vmatpush.bf16.msra.mxu0 0
      %2130 = vmatpush.bf16.msra.mxu0 0
      %2131 = vmatpush.bf16.msra.mxu0 %v2092
      %2132 = vmatpush.bf16.msra.mxu0 %v2045
      %2133 = vmatpush.bf16.msra.mxu0 %v1981
      %2134 = vmatmul.bf16.gmra.mxu0 %v2086
      %v2135 = vpop.f32.mrf.mxu0
      %v2136 = vadd.f32 %v2072, %v2135
      %v2137 = vpop.f32.mrf.mxu0
      %v2138 = vadd.f32 %v2077, %v2137
      %2139 = vdwg.mxu0
      %2140 = vmatpush.bf16.msra.mxu0 0
      %2141 = vmatpush.bf16.msra.mxu0 0
      %2142 = vmatpush.bf16.msra.mxu0 0
      %2143 = vmatpush.bf16.msra.mxu0 0
      %2144 = vmatpush.bf16.msra.mxu0 0
      %2145 = vmatpush.bf16.msra.mxu0 %v2095
      %2146 = vmatpush.bf16.msra.mxu0 %v2048
      %2147 = vmatpush.bf16.msra.mxu0 %v1984
      %2148 = vmatmul.bf16.gmra.mxu0 %v2086
      %v2149 = vpop.f32.mrf.mxu0
      %v2150 = vadd.f32 %v2072, %v2149
      %v2151 = vpop.f32.mrf.mxu0
      %v2152 = vadd.f32 %v2077, %v2151
      %2153 = vdwg.mxu0
      %2154 = vmatpush.bf16.msra.mxu0 0
      %2155 = vmatpush.bf16.msra.mxu0 0
      %2156 = vmatpush.bf16.msra.mxu0 0
      %2157 = vmatpush.bf16.msra.mxu0 0
      %2158 = vmatpush.bf16.msra.mxu0 0
      %2159 = vmatpush.bf16.msra.mxu0 %v2098
      %2160 = vmatpush.bf16.msra.mxu0 %v2051
      %2161 = vmatpush.bf16.msra.mxu0 %v1987
      %2162 = vmatmul.bf16.gmra.mxu0 %v2086
      %v2163 = vpop.f32.mrf.mxu0
      %v2164 = vadd.f32 %v2072, %v2163
      %v2165 = vpop.f32.mrf.mxu0
      %v2166 = vadd.f32 %v2077, %v2165
      %2167 = vdwg.mxu0
      %2168 = vmatpush.bf16.msra.mxu0 0
      %2169 = vmatpush.bf16.msra.mxu0 0
      %2170 = vmatpush.bf16.msra.mxu0 0
      %2171 = vmatpush.bf16.msra.mxu0 0
      %2172 = vmatpush.bf16.msra.mxu0 0
      %2173 = vmatpush.bf16.msra.mxu0 %v2101
      %2174 = vmatpush.bf16.msra.mxu0 %v2054
      %2175 = vmatpush.bf16.msra.mxu0 %v1990
      %2176 = vmatmul.bf16.gmra.mxu0 %v2086
      %v2177 = vpop.f32.mrf.mxu0
      %v2178 = vadd.f32 %v2072, %v2177
      %v2179 = vpop.f32.mrf.mxu0
      %v2180 = vadd.f32 %v2077, %v2179
      %2181 = vdwg.mxu0
      %2182 = vmatpush.bf16.msra.mxu0 0
      %2183 = vmatpush.bf16.msra.mxu0 0
      %2184 = vmatpush.bf16.msra.mxu0 0
      %2185 = vmatpush.bf16.msra.mxu0 0
      %2186 = vmatpush.bf16.msra.mxu0 0
      %2187 = vmatpush.bf16.msra.mxu0 %v2104
      %2188 = vmatpush.bf16.msra.mxu0 %v2057
      %2189 = vmatpush.bf16.msra.mxu0 %v1993
      %2190 = vmatmul.bf16.gmra.mxu0 %v2086
      %v2191 = vpop.f32.mrf.mxu0
      %v2192 = vadd.f32 %v2072, %v2191
      %v2193 = vpop.f32.mrf.mxu0
      %v2194 = vadd.f32 %v2077, %v2193
      %2195 = vdwg.mxu0
      %2196 = vmatpush.bf16.msra.mxu0 0
      %2197 = vmatpush.bf16.msra.mxu0 0
      %2198 = vmatpush.bf16.msra.mxu0 0
      %2199 = vmatpush.bf16.msra.mxu0 0
      %2200 = vmatpush.bf16.msra.mxu0 0
      %2201 = vmatpush.bf16.msra.mxu0 %v2107
      %2202 = vmatpush.bf16.msra.mxu0 %v2060
      %2203 = vmatpush.bf16.msra.mxu0 %v1996
      %2204 = vmatmul.bf16.gmra.mxu0 %v2086
      %v2205 = vpop.f32.mrf.mxu0
      %v2206 = vadd.f32 %v2072, %v2205
      %v2207 = vpop.f32.mrf.mxu0
      %v2208 = vadd.f32 %v2077, %v2207
      %2209 = vdwg.mxu0
      %2210 = vmatpush.bf16.msra.mxu0 0
      %2211 = vmatpush.bf16.msra.mxu0 0
      %2212 = vmatpush.bf16.msra.mxu0 0
      %2213 = vmatpush.bf16.msra.mxu0 0
      %2214 = vmatpush.bf16.msra.mxu0 0
      %2215 = vmatpush.bf16.msra.mxu0 %v2110
      %2216 = vmatpush.bf16.msra.mxu0 %v2063
      %2217 = vmatpush.bf16.msra.mxu0 %v1999
      %2218 = vmatmul.bf16.gmra.mxu0 %v2086
      %v2219 = vpop.f32.mrf.mxu0
      %v2220 = vadd.f32 %v2072, %v2219
      %v2221 = vpop.f32.mrf.mxu0
      %v2222 = vadd.f32 %v2077, %v2221
      %2223 = vdwg.mxu0
      %v2224 = vmax.f32 %v2122, 0.0
      %v2225 = vmax.f32 %v2136, 0.0
      %v2226 = vmax.f32 %v2150, 0.0
      %v2227 = vmax.f32 %v2164, 0.0
      %v2228 = vmax.f32 %v2178, 0.0
      %v2229 = vmax.f32 %v2192, 0.0
      %v2230 = vmax.f32 %v2206, 0.0
      %v2231 = vmax.f32 %v2220, 0.0
      %v2232 = vmax.f32 %v2124, 0.0
      %v2233 = vmax.f32 %v2138, 0.0
      %v2234 = vmax.f32 %v2152, 0.0
      %v2235 = vmax.f32 %v2166, 0.0
      %v2236 = vmax.f32 %v2180, 0.0
      %v2237 = vmax.f32 %v2194, 0.0
      %v2238 = vmax.f32 %v2208, 0.0
      %v2239 = vmax.f32 %v2222, 0.0
      %v2240 = vld [vmem:[%s5] sm:$0x3]
      %v2241 = vpack.c.bf16 %v2232, %v2224
      %v2242 = vpack.c.bf16 %v2233, %v2225
      %v2243 = vpack.c.bf16 %v2234, %v2226
      %v2244 = vpack.c.bf16 %v2235, %v2227
      %v2245 = vpack.c.bf16 %v2236, %v2228
      %v2246 = vpack.c.bf16 %v2237, %v2229
      %v2247 = vpack.c.bf16 %v2238, %v2230
      %v2248 = vpack.c.bf16 %v2239, %v2231
      %v2249 = vld [vmem:[%s6] sm:$0x7]
      %2251 = vset.pattern.permute.xlu0 0
      %2252 = vperm.xlu0 %2251, %v2249
      %v2253 = vpop.permute.xlu0 %2252
      %v2256 = vsel %vm328, %v2240, 0
      %2258 = vmatpush.bf16.msra.mxu0 0
      %2259 = vmatpush.bf16.msra.mxu0 0
      %2260 = vmatpush.bf16.msra.mxu0 0
      %2261 = vmatpush.bf16.msra.mxu0 0
      %2262 = vmatpush.bf16.msra.mxu0 0
      %2263 = vmatpush.bf16.msra.mxu0 0
      %2264 = vmatpush.bf16.msra.mxu0 0
      %2265 = vmatpush.bf16.msra.mxu0 %v2241
      %2266 = vmatmul.bf16.gmra.mxu0 %v2256
      %v2267 = vpop.f32.mrf.mxu0
      %v2268 = vadd.f32 %v2253, %v2267
      %v2269 = vpop.f32.mrf.mxu0
      %2270 = vdwg.mxu0
      %2271 = vmatpush.bf16.msra.mxu0 0
      %2272 = vmatpush.bf16.msra.mxu0 0
      %2273 = vmatpush.bf16.msra.mxu0 0
      %2274 = vmatpush.bf16.msra.mxu0 0
      %2275 = vmatpush.bf16.msra.mxu0 0
      %2276 = vmatpush.bf16.msra.mxu0 0
      %2277 = vmatpush.bf16.msra.mxu0 0
      %2278 = vmatpush.bf16.msra.mxu0 %v2242
      %2279 = vmatmul.bf16.gmra.mxu0 %v2256
      %v2280 = vpop.f32.mrf.mxu0
      %v2281 = vadd.f32 %v2253, %v2280
      %v2282 = vpop.f32.mrf.mxu0
      %2283 = vdwg.mxu0
      %2284 = vmatpush.bf16.msra.mxu0 0
      %2285 = vmatpush.bf16.msra.mxu0 0
      %2286 = vmatpush.bf16.msra.mxu0 0
      %2287 = vmatpush.bf16.msra.mxu0 0
      %2288 = vmatpush.bf16.msra.mxu0 0
      %2289 = vmatpush.bf16.msra.mxu0 0
      %2290 = vmatpush.bf16.msra.mxu0 0
      %2291 = vmatpush.bf16.msra.mxu0 %v2243
      %2292 = vmatmul.bf16.gmra.mxu0 %v2256
      %v2293 = vpop.f32.mrf.mxu0
      %v2294 = vadd.f32 %v2253, %v2293
      %v2295 = vpop.f32.mrf.mxu0
      %2296 = vdwg.mxu0
      %2297 = vmatpush.bf16.msra.mxu0 0
      %2298 = vmatpush.bf16.msra.mxu0 0
      %2299 = vmatpush.bf16.msra.mxu0 0
      %2300 = vmatpush.bf16.msra.mxu0 0
      %2301 = vmatpush.bf16.msra.mxu0 0
      %2302 = vmatpush.bf16.msra.mxu0 0
      %2303 = vmatpush.bf16.msra.mxu0 0
      %2304 = vmatpush.bf16.msra.mxu0 %v2244
      %2305 = vmatmul.bf16.gmra.mxu0 %v2256
      %v2306 = vpop.f32.mrf.mxu0
      %v2307 = vadd.f32 %v2253, %v2306
      %v2308 = vpop.f32.mrf.mxu0
      %2309 = vdwg.mxu0
      %2310 = vmatpush.bf16.msra.mxu0 0
      %2311 = vmatpush.bf16.msra.mxu0 0
      %2312 = vmatpush.bf16.msra.mxu0 0
      %2313 = vmatpush.bf16.msra.mxu0 0
      %2314 = vmatpush.bf16.msra.mxu0 0
      %2315 = vmatpush.bf16.msra.mxu0 0
      %2316 = vmatpush.bf16.msra.mxu0 0
      %2317 = vmatpush.bf16.msra.mxu0 %v2245
      %2318 = vmatmul.bf16.gmra.mxu0 %v2256
      %v2319 = vpop.f32.mrf.mxu0
      %v2320 = vadd.f32 %v2253, %v2319
      %v2321 = vpop.f32.mrf.mxu0
      %2322 = vdwg.mxu0
      %2323 = vmatpush.bf16.msra.mxu0 0
      %2324 = vmatpush.bf16.msra.mxu0 0
      %2325 = vmatpush.bf16.msra.mxu0 0
      %2326 = vmatpush.bf16.msra.mxu0 0
      %2327 = vmatpush.bf16.msra.mxu0 0
      %2328 = vmatpush.bf16.msra.mxu0 0
      %2329 = vmatpush.bf16.msra.mxu0 0
      %2330 = vmatpush.bf16.msra.mxu0 %v2246
      %2331 = vmatmul.bf16.gmra.mxu0 %v2256
      %v2332 = vpop.f32.mrf.mxu0
      %v2333 = vadd.f32 %v2253, %v2332
      %v2334 = vpop.f32.mrf.mxu0
      %2335 = vdwg.mxu0
      %2336 = vmatpush.bf16.msra.mxu0 0
      %2337 = vmatpush.bf16.msra.mxu0 0
      %2338 = vmatpush.bf16.msra.mxu0 0
      %2339 = vmatpush.bf16.msra.mxu0 0
      %2340 = vmatpush.bf16.msra.mxu0 0
      %2341 = vmatpush.bf16.msra.mxu0 0
      %2342 = vmatpush.bf16.msra.mxu0 0
      %2343 = vmatpush.bf16.msra.mxu0 %v2247
      %2344 = vmatmul.bf16.gmra.mxu0 %v2256
      %v2345 = vpop.f32.mrf.mxu0
      %v2346 = vadd.f32 %v2253, %v2345
      %v2347 = vpop.f32.mrf.mxu0
      %2348 = vdwg.mxu0
      %2349 = vmatpush.bf16.msra.mxu0 0
      %2350 = vmatpush.bf16.msra.mxu0 0
      %2351 = vmatpush.bf16.msra.mxu0 0
      %2352 = vmatpush.bf16.msra.mxu0 0
      %2353 = vmatpush.bf16.msra.mxu0 0
      %2354 = vmatpush.bf16.msra.mxu0 0
      %2355 = vmatpush.bf16.msra.mxu0 0
      %2356 = vmatpush.bf16.msra.mxu0 %v2248
      %2357 = vmatmul.bf16.gmra.mxu0 %v2256
      %v2358 = vpop.f32.mrf.mxu0
      %v2359 = vadd.f32 %v2253, %v2358
      %v2360 = vpop.f32.mrf.mxu0
      %2361 = vdwg.mxu0
      %v2370 = vrot.slane %v2281, 4
      %v2371 = vrot.slane %v2307, 4
      %v2372 = vrot.slane %v2333, 4
      %v2373 = vrot.slane %v2359, 4
      %v2374 = vsel %vm465, %v2268, %v2370
      %v2375 = vsel %vm465, %v2294, %v2371
      %v2376 = vsel %vm465, %v2320, %v2372
      %v2377 = vsel %vm465, %v2346, %v2373
      %2382 = vst [vmem:[%s320] sm:$0x77] %v2374
      %2383 = vst [vmem:[%s320 + $0x8] sm:$0x77] %v2375
      %2384 = vst [vmem:[%s320 + $0x10] sm:$0x77] %v2376
      %2385 = vst [vmem:[%s320 + $0x18] sm:$0x77] %v2377
      %s2386 = smul.u32 8, %s23
      %p2387 = scmp.lt.s32.totalorder %s22, 1
      %s2388 = scalar_select %p2387, %s22, 1
      %p2389 = scmp.lt.s32.totalorder %s2386, 31
      %s2390 = scalar_select %p2389, %s2386, 31
      %s2391 = smul.addr %s2388, 32
      %s2392 = sadd.s32 %s2390, %s2391
      %s2393 = smul.addr %s2392, 4
      %s2394 = scalar_lea.vmem %s7, %s2393
      // Predicated region
      $region49: #{gan_seg_model_forward.1} parent=47 // pred_check
        %p2395 = pneg %p207
      $region50: #{gan_seg_model_forward.1} parent=47 // pred_check_branch
        %2397 = sbr.rel (%p2395) target = $region52
      $region51: #{gan_seg_model_forward.1} parent=47 // pred_region
        %s2398 = smul.u32 8, %s23
      $region52: #{gan_seg_model_forward.1} parent=47 // pred_fallthru
        _
    $region48: #{gan_seg_model_forward.1} parent=5 // pred_fallthru
      _
    %p2399 = scmp.le.s32.totalorder 2, %s13
    // Predicated region
    $region53: #{gan_seg_model_forward.1} parent=5 // pred_check
      %p2400 = pneg %p2399
    $region54: #{gan_seg_model_forward.1} parent=5 // pred_check_branch
      %2402 = sbr.rel (%p2400) target = $region56
    $region55: #{gan_seg_model_forward.1} parent=5 // pred_region
      %s2403 = ssub.s32 %s13, 2
      // Predicated region
      $region57: #{gan_seg_model_forward.1} parent=55 // pred_check
        %p2404 = pneg %p213
      $region58: #{gan_seg_model_forward.1} parent=55 // pred_check_branch
        %2406 = sbr.rel (%p2404) target = $region60
      $region59: #{gan_seg_model_forward.1} parent=55 // pred_region
        %s2407 = smul.u32 8, %s25
        %p2408 = scmp.lt.s32.totalorder %s24, 1
        %s2409 = scalar_select %p2408, %s24, 1
        %p2410 = scmp.lt.s32.totalorder %s2407, 31
        %s2411 = scalar_select %p2410, %s2407, 31
        %s2412 = smul.addr %s2409, 32
        %s2413 = sadd.s32 %s2411, %s2412
        %s2414 = smul.addr %s2413, 4
        %s2415 = scalar_lea.vmem %s7, %s2414
      $region60: #{gan_seg_model_forward.1} parent=55 // pred_fallthru
        _
    $region56: #{gan_seg_model_forward.1} parent=5 // pred_fallthru
      _
  $region6: #{gan_seg_model_forward.1} parent=0 // loop_footer
    %s17 = sadd.s32 1, %s13
  $region7: #{gan_seg_model_forward.1} parent=0 // loop_footer_branch
    %12 = sbr.rel target = $region3
  $region8: #{gan_seg_model_forward.1} parent=0 // loop_exit
    _

</llo_original>
